<compile_context>
chip_gen: v7x
topology: tpu7x:2x2x1
jax: 0.10.0
libtpu: 0.0.40
codegen_flags: <defaults>
</compile_context>

<pallas_src>
import functools

import jax
import jax.numpy as jnp
from jax.experimental import pallas as pl
from jax.experimental.pallas import tpu as pltpu


def lstm_classifier_kernel(tok_ref, eidx_ref, emb_ref, wih_ref, whh_ref,
                           b_ref, wlin_ref, blin_ref, out_ref,
                           x_ref, gx_ref):
    # Static shapes:
    #   tok_ref  (T*BP,)    int32 SMEM   time-major tokens, row r = t*BP + b
    #   eidx_ref (BP, 1)    int32 VMEM   end index per (padded) batch row
    #   emb_ref  (vocab, D) f32   VMEM   embedding table (resident)
    #   wih_ref  (D, 4D)    cdt   VMEM   W_ih^T, gate cols (i, f, o, g)
    #   whh_ref  (D, 4D)    cdt   VMEM   W_hh^T, gate cols (i, f, o, g)
    #   b_ref    (1, 4D)    f32   VMEM   b_ih + b_hh (permuted)
    #   wlin_ref (1, D), blin_ref (1, 1) f32      classifier head
    #   x_ref    (T*BP, D)  f32 scratch  gathered embeddings
    #   gx_ref   (T*BP, 4D) f32 scratch  x @ W_ih^T + b for all steps
    BP = eidx_ref.shape[0]
    D = whh_ref.shape[0]
    TB = x_ref.shape[0]
    T = TB // BP
    cdt = whh_ref.dtype

    # ---- Fused embedding gather: dynamic-row load from the resident table,
    # static-row store into the time-major activation slab.
    for r in range(TB):
        x_ref[pl.ds(r, 1), :] = emb_ref[pl.ds(tok_ref[r], 1), :]

    # ---- Hoisted, non-recurrent half of the gates for ALL timesteps: one
    # (T*BP, D) @ (D, 4D) MXU matmul, bias folded in exactly once (f32 accum).
    gx_ref[...] = jnp.dot(x_ref[...].astype(cdt), wih_ref[...],
                          preferred_element_type=jnp.float32) + b_ref[...]

    eidx = eidx_ref[...]                          # (BP, 1) int32, hoisted
    h = jnp.zeros((BP, D), jnp.float32)
    c = jnp.zeros((BP, D), jnp.float32)
    h_sel = jnp.zeros((BP, D), jnp.float32)       # h_t at t == end_idx[b]

    # Fully unrolled serial recurrence (T small & static); only the recurrent
    # h_{t-1} @ W_hh^T matmul sits on the critical path.  Per-step gx reads
    # start at t*BP (multiple of 8) -> sublane-tile aligned.
    # TODO(synk): hold W_hh^T weight-stationary across the unrolled steps via
    # pltpu.matmul_push_rhs / matmul_acc_lhs / matmul_pop to skip the per-step
    # systolic-array refill.
    for t in range(T):
        gates = gx_ref[pl.ds(t * BP, BP), :] + jnp.dot(
            h.astype(cdt), whh_ref[...],
            preferred_element_type=jnp.float32)   # (BP, 4D) f32

        # Gate columns permuted to (i, f, o, g): one contiguous sigmoid pass
        # over the first 3D lanes, tanh on the last D lanes (f32 gate math).
        sg = jax.nn.sigmoid(gates[:, :3 * D])
        i = sg[:, 0 * D:1 * D]
        f = sg[:, 1 * D:2 * D]
        o = sg[:, 2 * D:3 * D]
        g = jnp.tanh(gates[:, 3 * D:])

        c = f * c + i * g
        h = o * jnp.tanh(c)
        h_sel = jnp.where(eidx == t, h, h_sel)

    # Linear(D, 1) applied once: single lane reduction + bias, single store.
    logit = (jnp.sum(h_sel * wlin_ref[...], axis=-1, keepdims=True)
             + blin_ref[...])
    out_ref[...] = logit.astype(out_ref.dtype)


@functools.partial(jax.jit, static_argnames=("compute_dtype",))
def spam_classifier_forward(tokens, end_idx, params,
                            compute_dtype=jnp.bfloat16):
    """emb -> 1-layer LSTM -> lin(h[end_idx]); matches SpamClassifier.forward."""
    W_emb, W_ih, W_hh, b_ih, b_hh, W_lin, b_lin = params
    B, T = tokens.shape
    D = W_emb.shape[1]
    BP = max(8, ((B + 7) // 8) * 8)     # pad batch to an 8-sublane multiple

    def perm_gates(w):
        # PyTorch gate-row order (i, f, g, o) -> (i, f, o, g) so the kernel
        # runs one contiguous sigmoid over the first 3D gate columns.
        return jnp.concatenate(
            [w[:2 * D], w[3 * D:4 * D], w[2 * D:3 * D]], axis=0)

    wih_t = perm_gates(W_ih).T.astype(compute_dtype)           # (D, 4D)
    whh_t = perm_gates(W_hh).T.astype(compute_dtype)           # (D, 4D)
    b = perm_gates(b_ih + b_hh).reshape(1, 4 * D).astype(jnp.float32)
    wlin = W_lin.reshape(1, D).astype(jnp.float32)
    blin = b_lin.reshape(1, 1).astype(jnp.float32)
    emb = W_emb.astype(jnp.float32)                            # (vocab, D)

    # Time-major flattened tokens for the in-kernel gather.  Padded batch
    # rows use token 0 and end_idx = -1 (never selected; rows discarded).
    tok_p = jnp.zeros((BP, T), jnp.int32).at[:B].set(tokens.astype(jnp.int32))
    tok_flat = jnp.transpose(tok_p, (1, 0)).reshape(T * BP)
    eidx_p = jnp.full((BP, 1), -1, jnp.int32).at[:B, 0].set(
        end_idx.astype(jnp.int32))
    # NOTE: any end_idx outside [0, T) yields logit == b_lin for that row
    # (same as the zero-initialised h_sel); callers must respect the contract.

    smem = pl.BlockSpec(memory_space=pltpu.MemorySpace.SMEM)
    vmem = pl.BlockSpec(memory_space=pltpu.MemorySpace.VMEM)

    out = pl.pallas_call(
        lstm_classifier_kernel,
        out_shape=jax.ShapeDtypeStruct((BP, 1), jnp.float32),
        in_specs=[smem] + [vmem] * 7,              # full arrays, resident once
        out_specs=vmem,
        scratch_shapes=[
            pltpu.VMEM((T * BP, D), jnp.float32),      # gathered embeddings
            pltpu.VMEM((T * BP, 4 * D), jnp.float32),  # precomputed input gates
        ],
    )(tok_flat, eidx_p, emb, wih_t, whh_t, b, wlin, blin)

    # TODO(synk): at production batch sizes, add a batch grid axis with
    # dimension_semantics=("parallel",) so both v7x TensorCores get work, and
    # stream gx in time chunks once T*B grows past the VMEM budget.
    return out[:B, 0]                                          # (B,)


def ref_forward(tokens, end_idx, params):
    """Pure-JAX reference mirroring the PyTorch module semantics (f32)."""
    W_emb, W_ih, W_hh, b_ih, b_hh, W_lin, b_lin = params
    x = W_emb[tokens]
    B, T, D = x.shape
    h = jnp.zeros((B, D), jnp.float32)
    c = jnp.zeros((B, D), jnp.float32)
    hs = []
    for t in range(T):
        gates = x[:, t] @ W_ih.T + h @ W_hh.T + b_ih + b_hh
        i = jax.nn.sigmoid(gates[:, :D])
        f = jax.nn.sigmoid(gates[:, D:2 * D])
        g = jnp.tanh(gates[:, 2 * D:3 * D])
        o = jax.nn.sigmoid(gates[:, 3 * D:])
        c = f * c + i * g
        h = o * jnp.tanh(c)
        hs.append(h)
    hs = jnp.stack(hs, axis=1)                                 # (B, T, D)
    y = hs[jnp.arange(B), end_idx]                             # (B, D)
    return (y @ W_lin.T + b_lin).reshape(-1)


def init_params(key, vocab=128, d=128):
    ks = jax.random.split(key, 7)
    scale = 0.1
    W_emb = jax.random.normal(ks[0], (vocab, d), jnp.float32)
    W_ih = jax.random.uniform(ks[1], (4 * d, d), jnp.float32, -scale, scale)
    W_hh = jax.random.uniform(ks[2], (4 * d, d), jnp.float32, -scale, scale)
    b_ih = jax.random.uniform(ks[3], (4 * d,), jnp.float32, -scale, scale)
    b_hh = jax.random.uniform(ks[4], (4 * d,), jnp.float32, -scale, scale)
    W_lin = jax.random.uniform(ks[5], (1, d), jnp.float32, -scale, scale)
    b_lin = jax.random.uniform(ks[6], (1,), jnp.float32, -scale, scale)
    return (W_emb, W_ih, W_hh, b_ih, b_hh, W_lin, b_lin)


if __name__ == "__main__":
    B, T, D, VOCAB = 2, 8, 128, 128
    key = jax.random.PRNGKey(0)
    k_tok, k_idx, k_par = jax.random.split(key, 3)

    tokens = jax.random.randint(k_tok, (B, T), 0, VOCAB, dtype=jnp.int32)
    end_idx = jax.random.randint(k_idx, (B,), 0, T, dtype=jnp.int32)
    params = init_params(k_par, vocab=VOCAB, d=D)

    ref = jax.block_until_ready(ref_forward(tokens, end_idx, params))

    # f32 matmul-input path: tight check against the f32 reference.
    out_f32 = jax.block_until_ready(
        spam_classifier_forward(tokens, end_idx, params,
                                compute_dtype=jnp.float32))
    assert out_f32.shape == (B,)
    assert jnp.allclose(out_f32, ref, atol=1e-3, rtol=1e-3), (out_f32, ref)

    # Default bf16 matmul-input path (f32 accumulation + f32 gate math).
    out_bf16 = jax.block_until_ready(
        spam_classifier_forward(tokens, end_idx, params))
    assert out_bf16.shape == (B,)
    assert jnp.all(jnp.isfinite(out_bf16))
    assert jnp.allclose(out_bf16, ref, atol=5e-2, rtol=5e-2), (out_bf16, ref)

    print("KERNEL_OK")
</pallas_src>

<mosaic_0001>
module attributes {stable_mosaic.version = 11 : i64} {
  func.func @lstm_classifier_kernel(%arg0: memref<64xi32, #tpu.memory_space<smem>>, %arg1: memref<8x1xi32, #tpu.memory_space<vmem>>, %arg2: memref<128x128xf32, #tpu.memory_space<vmem>>, %arg3: memref<128x512xf32, #tpu.memory_space<vmem>>, %arg4: memref<128x512xf32, #tpu.memory_space<vmem>>, %arg5: memref<1x512xf32, #tpu.memory_space<vmem>>, %arg6: memref<1x128xf32, #tpu.memory_space<vmem>>, %arg7: memref<1x1xf32, #tpu.memory_space<vmem>>, %arg8: memref<8x1xf32, #tpu.memory_space<vmem>>, %arg9: memref<64x128xf32, #tpu.memory_space<vmem>>, %arg10: memref<64x512xf32, #tpu.memory_space<vmem>>) attributes {dimension_semantics = [], scalar_prefetch = 0 : i64, scratch_operands = 2 : i64, tpu.core_type = #tpu.core_type<tc>} {
    %c0 = arith.constant 0 : index
    %0 = memref.load %arg0[%c0] : memref<64xi32, #tpu.memory_space<smem>>
    %1 = arith.index_cast %0 : i32 to index
    %c0_0 = arith.constant 0 : index
    %2 = vector.load %arg2[%1, %c0_0] : memref<128x128xf32, #tpu.memory_space<vmem>>, vector<1x128xf32>
    %c0_1 = arith.constant 0 : index
    %c0_2 = arith.constant 0 : index
    %3 = vector.load %arg9[%c0_1, %c0_2] : memref<64x128xf32, #tpu.memory_space<vmem>>, vector<1x128xf32>
    tpu.vector_store %arg9[%c0_1, %c0_2], %2 {strides = array<i32>} : memref<64x128xf32, #tpu.memory_space<vmem>>, vector<1x128xf32>,
    %c1 = arith.constant 1 : index
    %4 = memref.load %arg0[%c1] : memref<64xi32, #tpu.memory_space<smem>>
    %5 = arith.index_cast %4 : i32 to index
    %c0_3 = arith.constant 0 : index
    %6 = vector.load %arg2[%5, %c0_3] : memref<128x128xf32, #tpu.memory_space<vmem>>, vector<1x128xf32>
    %c1_4 = arith.constant 1 : index
    %c0_5 = arith.constant 0 : index
    %7 = vector.load %arg9[%c1_4, %c0_5] : memref<64x128xf32, #tpu.memory_space<vmem>>, vector<1x128xf32>
    tpu.vector_store %arg9[%c1_4, %c0_5], %6 {strides = array<i32>} : memref<64x128xf32, #tpu.memory_space<vmem>>, vector<1x128xf32>,
    %c2 = arith.constant 2 : index
    %8 = memref.load %arg0[%c2] : memref<64xi32, #tpu.memory_space<smem>>
    %9 = arith.index_cast %8 : i32 to index
    %c0_6 = arith.constant 0 : index
    %10 = vector.load %arg2[%9, %c0_6] : memref<128x128xf32, #tpu.memory_space<vmem>>, vector<1x128xf32>
    %c2_7 = arith.constant 2 : index
    %c0_8 = arith.constant 0 : index
    %11 = vector.load %arg9[%c2_7, %c0_8] : memref<64x128xf32, #tpu.memory_space<vmem>>, vector<1x128xf32>
    tpu.vector_store %arg9[%c2_7, %c0_8], %10 {strides = array<i32>} : memref<64x128xf32, #tpu.memory_space<vmem>>, vector<1x128xf32>,
    %c3 = arith.constant 3 : index
    %12 = memref.load %arg0[%c3] : memref<64xi32, #tpu.memory_space<smem>>
    %13 = arith.index_cast %12 : i32 to index
    %c0_9 = arith.constant 0 : index
    %14 = vector.load %arg2[%13, %c0_9] : memref<128x128xf32, #tpu.memory_space<vmem>>, vector<1x128xf32>
    %c3_10 = arith.constant 3 : index
    %c0_11 = arith.constant 0 : index
    %15 = vector.load %arg9[%c3_10, %c0_11] : memref<64x128xf32, #tpu.memory_space<vmem>>, vector<1x128xf32>
    tpu.vector_store %arg9[%c3_10, %c0_11], %14 {strides = array<i32>} : memref<64x128xf32, #tpu.memory_space<vmem>>, vector<1x128xf32>,
    %c4 = arith.constant 4 : index
    %16 = memref.load %arg0[%c4] : memref<64xi32, #tpu.memory_space<smem>>
    %17 = arith.index_cast %16 : i32 to index
    %c0_12 = arith.constant 0 : index
    %18 = vector.load %arg2[%17, %c0_12] : memref<128x128xf32, #tpu.memory_space<vmem>>, vector<1x128xf32>
    %c4_13 = arith.constant 4 : index
    %c0_14 = arith.constant 0 : index
    %19 = vector.load %arg9[%c4_13, %c0_14] : memref<64x128xf32, #tpu.memory_space<vmem>>, vector<1x128xf32>
    tpu.vector_store %arg9[%c4_13, %c0_14], %18 {strides = array<i32>} : memref<64x128xf32, #tpu.memory_space<vmem>>, vector<1x128xf32>,
    %c5 = arith.constant 5 : index
    %20 = memref.load %arg0[%c5] : memref<64xi32, #tpu.memory_space<smem>>
    %21 = arith.index_cast %20 : i32 to index
    %c0_15 = arith.constant 0 : index
    %22 = vector.load %arg2[%21, %c0_15] : memref<128x128xf32, #tpu.memory_space<vmem>>, vector<1x128xf32>
    %c5_16 = arith.constant 5 : index
    %c0_17 = arith.constant 0 : index
    %23 = vector.load %arg9[%c5_16, %c0_17] : memref<64x128xf32, #tpu.memory_space<vmem>>, vector<1x128xf32>
    tpu.vector_store %arg9[%c5_16, %c0_17], %22 {strides = array<i32>} : memref<64x128xf32, #tpu.memory_space<vmem>>, vector<1x128xf32>,
    %c6 = arith.constant 6 : index
    %24 = memref.load %arg0[%c6] : memref<64xi32, #tpu.memory_space<smem>>
    %25 = arith.index_cast %24 : i32 to index
    %c0_18 = arith.constant 0 : index
    %26 = vector.load %arg2[%25, %c0_18] : memref<128x128xf32, #tpu.memory_space<vmem>>, vector<1x128xf32>
    %c6_19 = arith.constant 6 : index
    %c0_20 = arith.constant 0 : index
    %27 = vector.load %arg9[%c6_19, %c0_20] : memref<64x128xf32, #tpu.memory_space<vmem>>, vector<1x128xf32>
    tpu.vector_store %arg9[%c6_19, %c0_20], %26 {strides = array<i32>} : memref<64x128xf32, #tpu.memory_space<vmem>>, vector<1x128xf32>,
    %c7 = arith.constant 7 : index
    %28 = memref.load %arg0[%c7] : memref<64xi32, #tpu.memory_space<smem>>
    %29 = arith.index_cast %28 : i32 to index
    %c0_21 = arith.constant 0 : index
    %30 = vector.load %arg2[%29, %c0_21] : memref<128x128xf32, #tpu.memory_space<vmem>>, vector<1x128xf32>
    %c7_22 = arith.constant 7 : index
    %c0_23 = arith.constant 0 : index
    %31 = vector.load %arg9[%c7_22, %c0_23] : memref<64x128xf32, #tpu.memory_space<vmem>>, vector<1x128xf32>
    tpu.vector_store %arg9[%c7_22, %c0_23], %30 {strides = array<i32>} : memref<64x128xf32, #tpu.memory_space<vmem>>, vector<1x128xf32>,
    %c8 = arith.constant 8 : index
    %32 = memref.load %arg0[%c8] : memref<64xi32, #tpu.memory_space<smem>>
    %33 = arith.index_cast %32 : i32 to index
    %c0_24 = arith.constant 0 : index
    %34 = vector.load %arg2[%33, %c0_24] : memref<128x128xf32, #tpu.memory_space<vmem>>, vector<1x128xf32>
    %c8_25 = arith.constant 8 : index
    %c0_26 = arith.constant 0 : index
    %35 = vector.load %arg9[%c8_25, %c0_26] : memref<64x128xf32, #tpu.memory_space<vmem>>, vector<1x128xf32>
    tpu.vector_store %arg9[%c8_25, %c0_26], %34 {strides = array<i32>} : memref<64x128xf32, #tpu.memory_space<vmem>>, vector<1x128xf32>,
    %c9 = arith.constant 9 : index
    %36 = memref.load %arg0[%c9] : memref<64xi32, #tpu.memory_space<smem>>
    %37 = arith.index_cast %36 : i32 to index
    %c0_27 = arith.constant 0 : index
    %38 = vector.load %arg2[%37, %c0_27] : memref<128x128xf32, #tpu.memory_space<vmem>>, vector<1x128xf32>
    %c9_28 = arith.constant 9 : index
    %c0_29 = arith.constant 0 : index
    %39 = vector.load %arg9[%c9_28, %c0_29] : memref<64x128xf32, #tpu.memory_space<vmem>>, vector<1x128xf32>
    tpu.vector_store %arg9[%c9_28, %c0_29], %38 {strides = array<i32>} : memref<64x128xf32, #tpu.memory_space<vmem>>, vector<1x128xf32>,
    %c10 = arith.constant 10 : index
    %40 = memref.load %arg0[%c10] : memref<64xi32, #tpu.memory_space<smem>>
    %41 = arith.index_cast %40 : i32 to index
    %c0_30 = arith.constant 0 : index
    %42 = vector.load %arg2[%41, %c0_30] : memref<128x128xf32, #tpu.memory_space<vmem>>, vector<1x128xf32>
    %c10_31 = arith.constant 10 : index
    %c0_32 = arith.constant 0 : index
    %43 = vector.load %arg9[%c10_31, %c0_32] : memref<64x128xf32, #tpu.memory_space<vmem>>, vector<1x128xf32>
    tpu.vector_store %arg9[%c10_31, %c0_32], %42 {strides = array<i32>} : memref<64x128xf32, #tpu.memory_space<vmem>>, vector<1x128xf32>,
    %c11 = arith.constant 11 : index
    %44 = memref.load %arg0[%c11] : memref<64xi32, #tpu.memory_space<smem>>
    %45 = arith.index_cast %44 : i32 to index
    %c0_33 = arith.constant 0 : index
    %46 = vector.load %arg2[%45, %c0_33] : memref<128x128xf32, #tpu.memory_space<vmem>>, vector<1x128xf32>
    %c11_34 = arith.constant 11 : index
    %c0_35 = arith.constant 0 : index
    %47 = vector.load %arg9[%c11_34, %c0_35] : memref<64x128xf32, #tpu.memory_space<vmem>>, vector<1x128xf32>
    tpu.vector_store %arg9[%c11_34, %c0_35], %46 {strides = array<i32>} : memref<64x128xf32, #tpu.memory_space<vmem>>, vector<1x128xf32>,
    %c12 = arith.constant 12 : index
    %48 = memref.load %arg0[%c12] : memref<64xi32, #tpu.memory_space<smem>>
    %49 = arith.index_cast %48 : i32 to index
    %c0_36 = arith.constant 0 : index
    %50 = vector.load %arg2[%49, %c0_36] : memref<128x128xf32, #tpu.memory_space<vmem>>, vector<1x128xf32>
    %c12_37 = arith.constant 12 : index
    %c0_38 = arith.constant 0 : index
    %51 = vector.load %arg9[%c12_37, %c0_38] : memref<64x128xf32, #tpu.memory_space<vmem>>, vector<1x128xf32>
    tpu.vector_store %arg9[%c12_37, %c0_38], %50 {strides = array<i32>} : memref<64x128xf32, #tpu.memory_space<vmem>>, vector<1x128xf32>,
    %c13 = arith.constant 13 : index
    %52 = memref.load %arg0[%c13] : memref<64xi32, #tpu.memory_space<smem>>
    %53 = arith.index_cast %52 : i32 to index
    %c0_39 = arith.constant 0 : index
    %54 = vector.load %arg2[%53, %c0_39] : memref<128x128xf32, #tpu.memory_space<vmem>>, vector<1x128xf32>
    %c13_40 = arith.constant 13 : index
    %c0_41 = arith.constant 0 : index
    %55 = vector.load %arg9[%c13_40, %c0_41] : memref<64x128xf32, #tpu.memory_space<vmem>>, vector<1x128xf32>
    tpu.vector_store %arg9[%c13_40, %c0_41], %54 {strides = array<i32>} : memref<64x128xf32, #tpu.memory_space<vmem>>, vector<1x128xf32>,
    %c14 = arith.constant 14 : index
    %56 = memref.load %arg0[%c14] : memref<64xi32, #tpu.memory_space<smem>>
    %57 = arith.index_cast %56 : i32 to index
    %c0_42 = arith.constant 0 : index
    %58 = vector.load %arg2[%57, %c0_42] : memref<128x128xf32, #tpu.memory_space<vmem>>, vector<1x128xf32>
    %c14_43 = arith.constant 14 : index
    %c0_44 = arith.constant 0 : index
    %59 = vector.load %arg9[%c14_43, %c0_44] : memref<64x128xf32, #tpu.memory_space<vmem>>, vector<1x128xf32>
    tpu.vector_store %arg9[%c14_43, %c0_44], %58 {strides = array<i32>} : memref<64x128xf32, #tpu.memory_space<vmem>>, vector<1x128xf32>,
    %c15 = arith.constant 15 : index
    %60 = memref.load %arg0[%c15] : memref<64xi32, #tpu.memory_space<smem>>
    %61 = arith.index_cast %60 : i32 to index
    %c0_45 = arith.constant 0 : index
    %62 = vector.load %arg2[%61, %c0_45] : memref<128x128xf32, #tpu.memory_space<vmem>>, vector<1x128xf32>
    %c15_46 = arith.constant 15 : index
    %c0_47 = arith.constant 0 : index
    %63 = vector.load %arg9[%c15_46, %c0_47] : memref<64x128xf32, #tpu.memory_space<vmem>>, vector<1x128xf32>
    tpu.vector_store %arg9[%c15_46, %c0_47], %62 {strides = array<i32>} : memref<64x128xf32, #tpu.memory_space<vmem>>, vector<1x128xf32>,
    %c16 = arith.constant 16 : index
    %64 = memref.load %arg0[%c16] : memref<64xi32, #tpu.memory_space<smem>>
    %65 = arith.index_cast %64 : i32 to index
    %c0_48 = arith.constant 0 : index
    %66 = vector.load %arg2[%65, %c0_48] : memref<128x128xf32, #tpu.memory_space<vmem>>, vector<1x128xf32>
    %c16_49 = arith.constant 16 : index
    %c0_50 = arith.constant 0 : index
    %67 = vector.load %arg9[%c16_49, %c0_50] : memref<64x128xf32, #tpu.memory_space<vmem>>, vector<1x128xf32>
    tpu.vector_store %arg9[%c16_49, %c0_50], %66 {strides = array<i32>} : memref<64x128xf32, #tpu.memory_space<vmem>>, vector<1x128xf32>,
    %c17 = arith.constant 17 : index
    %68 = memref.load %arg0[%c17] : memref<64xi32, #tpu.memory_space<smem>>
    %69 = arith.index_cast %68 : i32 to index
    %c0_51 = arith.constant 0 : index
    %70 = vector.load %arg2[%69, %c0_51] : memref<128x128xf32, #tpu.memory_space<vmem>>, vector<1x128xf32>
    %c17_52 = arith.constant 17 : index
    %c0_53 = arith.constant 0 : index
    %71 = vector.load %arg9[%c17_52, %c0_53] : memref<64x128xf32, #tpu.memory_space<vmem>>, vector<1x128xf32>
    tpu.vector_store %arg9[%c17_52, %c0_53], %70 {strides = array<i32>} : memref<64x128xf32, #tpu.memory_space<vmem>>, vector<1x128xf32>,
    %c18 = arith.constant 18 : index
    %72 = memref.load %arg0[%c18] : memref<64xi32, #tpu.memory_space<smem>>
    %73 = arith.index_cast %72 : i32 to index
    %c0_54 = arith.constant 0 : index
    %74 = vector.load %arg2[%73, %c0_54] : memref<128x128xf32, #tpu.memory_space<vmem>>, vector<1x128xf32>
    %c18_55 = arith.constant 18 : index
    %c0_56 = arith.constant 0 : index
    %75 = vector.load %arg9[%c18_55, %c0_56] : memref<64x128xf32, #tpu.memory_space<vmem>>, vector<1x128xf32>
    tpu.vector_store %arg9[%c18_55, %c0_56], %74 {strides = array<i32>} : memref<64x128xf32, #tpu.memory_space<vmem>>, vector<1x128xf32>,
    %c19 = arith.constant 19 : index
    %76 = memref.load %arg0[%c19] : memref<64xi32, #tpu.memory_space<smem>>
    %77 = arith.index_cast %76 : i32 to index
    %c0_57 = arith.constant 0 : index
    %78 = vector.load %arg2[%77, %c0_57] : memref<128x128xf32, #tpu.memory_space<vmem>>, vector<1x128xf32>
    %c19_58 = arith.constant 19 : index
    %c0_59 = arith.constant 0 : index
    %79 = vector.load %arg9[%c19_58, %c0_59] : memref<64x128xf32, #tpu.memory_space<vmem>>, vector<1x128xf32>
    tpu.vector_store %arg9[%c19_58, %c0_59], %78 {strides = array<i32>} : memref<64x128xf32, #tpu.memory_space<vmem>>, vector<1x128xf32>,
    %c20 = arith.constant 20 : index
    %80 = memref.load %arg0[%c20] : memref<64xi32, #tpu.memory_space<smem>>
    %81 = arith.index_cast %80 : i32 to index
    %c0_60 = arith.constant 0 : index
    %82 = vector.load %arg2[%81, %c0_60] : memref<128x128xf32, #tpu.memory_space<vmem>>, vector<1x128xf32>
    %c20_61 = arith.constant 20 : index
    %c0_62 = arith.constant 0 : index
    %83 = vector.load %arg9[%c20_61, %c0_62] : memref<64x128xf32, #tpu.memory_space<vmem>>, vector<1x128xf32>
    tpu.vector_store %arg9[%c20_61, %c0_62], %82 {strides = array<i32>} : memref<64x128xf32, #tpu.memory_space<vmem>>, vector<1x128xf32>,
    %c21 = arith.constant 21 : index
    %84 = memref.load %arg0[%c21] : memref<64xi32, #tpu.memory_space<smem>>
    %85 = arith.index_cast %84 : i32 to index
    %c0_63 = arith.constant 0 : index
    %86 = vector.load %arg2[%85, %c0_63] : memref<128x128xf32, #tpu.memory_space<vmem>>, vector<1x128xf32>
    %c21_64 = arith.constant 21 : index
    %c0_65 = arith.constant 0 : index
    %87 = vector.load %arg9[%c21_64, %c0_65] : memref<64x128xf32, #tpu.memory_space<vmem>>, vector<1x128xf32>
    tpu.vector_store %arg9[%c21_64, %c0_65], %86 {strides = array<i32>} : memref<64x128xf32, #tpu.memory_space<vmem>>, vector<1x128xf32>,
    %c22 = arith.constant 22 : index
    %88 = memref.load %arg0[%c22] : memref<64xi32, #tpu.memory_space<smem>>
    %89 = arith.index_cast %88 : i32 to index
    %c0_66 = arith.constant 0 : index
    %90 = vector.load %arg2[%89, %c0_66] : memref<128x128xf32, #tpu.memory_space<vmem>>, vector<1x128xf32>
    %c22_67 = arith.constant 22 : index
    %c0_68 = arith.constant 0 : index
    %91 = vector.load %arg9[%c22_67, %c0_68] : memref<64x128xf32, #tpu.memory_space<vmem>>, vector<1x128xf32>
    tpu.vector_store %arg9[%c22_67, %c0_68], %90 {strides = array<i32>} : memref<64x128xf32, #tpu.memory_space<vmem>>, vector<1x128xf32>,
    %c23 = arith.constant 23 : index
    %92 = memref.load %arg0[%c23] : memref<64xi32, #tpu.memory_space<smem>>
    %93 = arith.index_cast %92 : i32 to index
    %c0_69 = arith.constant 0 : index
    %94 = vector.load %arg2[%93, %c0_69] : memref<128x128xf32, #tpu.memory_space<vmem>>, vector<1x128xf32>
    %c23_70 = arith.constant 23 : index
    %c0_71 = arith.constant 0 : index
    %95 = vector.load %arg9[%c23_70, %c0_71] : memref<64x128xf32, #tpu.memory_space<vmem>>, vector<1x128xf32>
    tpu.vector_store %arg9[%c23_70, %c0_71], %94 {strides = array<i32>} : memref<64x128xf32, #tpu.memory_space<vmem>>, vector<1x128xf32>,
    %c24 = arith.constant 24 : index
    %96 = memref.load %arg0[%c24] : memref<64xi32, #tpu.memory_space<smem>>
    %97 = arith.index_cast %96 : i32 to index
    %c0_72 = arith.constant 0 : index
    %98 = vector.load %arg2[%97, %c0_72] : memref<128x128xf32, #tpu.memory_space<vmem>>, vector<1x128xf32>
    %c24_73 = arith.constant 24 : index
    %c0_74 = arith.constant 0 : index
    %99 = vector.load %arg9[%c24_73, %c0_74] : memref<64x128xf32, #tpu.memory_space<vmem>>, vector<1x128xf32>
    tpu.vector_store %arg9[%c24_73, %c0_74], %98 {strides = array<i32>} : memref<64x128xf32, #tpu.memory_space<vmem>>, vector<1x128xf32>,
    %c25 = arith.constant 25 : index
    %100 = memref.load %arg0[%c25] : memref<64xi32, #tpu.memory_space<smem>>
    %101 = arith.index_cast %100 : i32 to index
    %c0_75 = arith.constant 0 : index
    %102 = vector.load %arg2[%101, %c0_75] : memref<128x128xf32, #tpu.memory_space<vmem>>, vector<1x128xf32>
    %c25_76 = arith.constant 25 : index
    %c0_77 = arith.constant 0 : index
    %103 = vector.load %arg9[%c25_76, %c0_77] : memref<64x128xf32, #tpu.memory_space<vmem>>, vector<1x128xf32>
    tpu.vector_store %arg9[%c25_76, %c0_77], %102 {strides = array<i32>} : memref<64x128xf32, #tpu.memory_space<vmem>>, vector<1x128xf32>,
    %c26 = arith.constant 26 : index
    %104 = memref.load %arg0[%c26] : memref<64xi32, #tpu.memory_space<smem>>
    %105 = arith.index_cast %104 : i32 to index
    %c0_78 = arith.constant 0 : index
    %106 = vector.load %arg2[%105, %c0_78] : memref<128x128xf32, #tpu.memory_space<vmem>>, vector<1x128xf32>
    %c26_79 = arith.constant 26 : index
    %c0_80 = arith.constant 0 : index
    %107 = vector.load %arg9[%c26_79, %c0_80] : memref<64x128xf32, #tpu.memory_space<vmem>>, vector<1x128xf32>
    tpu.vector_store %arg9[%c26_79, %c0_80], %106 {strides = array<i32>} : memref<64x128xf32, #tpu.memory_space<vmem>>, vector<1x128xf32>,
    %c27 = arith.constant 27 : index
    %108 = memref.load %arg0[%c27] : memref<64xi32, #tpu.memory_space<smem>>
    %109 = arith.index_cast %108 : i32 to index
    %c0_81 = arith.constant 0 : index
    %110 = vector.load %arg2[%109, %c0_81] : memref<128x128xf32, #tpu.memory_space<vmem>>, vector<1x128xf32>
    %c27_82 = arith.constant 27 : index
    %c0_83 = arith.constant 0 : index
    %111 = vector.load %arg9[%c27_82, %c0_83] : memref<64x128xf32, #tpu.memory_space<vmem>>, vector<1x128xf32>
    tpu.vector_store %arg9[%c27_82, %c0_83], %110 {strides = array<i32>} : memref<64x128xf32, #tpu.memory_space<vmem>>, vector<1x128xf32>,
    %c28 = arith.constant 28 : index
    %112 = memref.load %arg0[%c28] : memref<64xi32, #tpu.memory_space<smem>>
    %113 = arith.index_cast %112 : i32 to index
    %c0_84 = arith.constant 0 : index
    %114 = vector.load %arg2[%113, %c0_84] : memref<128x128xf32, #tpu.memory_space<vmem>>, vector<1x128xf32>
    %c28_85 = arith.constant 28 : index
    %c0_86 = arith.constant 0 : index
    %115 = vector.load %arg9[%c28_85, %c0_86] : memref<64x128xf32, #tpu.memory_space<vmem>>, vector<1x128xf32>
    tpu.vector_store %arg9[%c28_85, %c0_86], %114 {strides = array<i32>} : memref<64x128xf32, #tpu.memory_space<vmem>>, vector<1x128xf32>,
    %c29 = arith.constant 29 : index
    %116 = memref.load %arg0[%c29] : memref<64xi32, #tpu.memory_space<smem>>
    %117 = arith.index_cast %116 : i32 to index
    %c0_87 = arith.constant 0 : index
    %118 = vector.load %arg2[%117, %c0_87] : memref<128x128xf32, #tpu.memory_space<vmem>>, vector<1x128xf32>
    %c29_88 = arith.constant 29 : index
    %c0_89 = arith.constant 0 : index
    %119 = vector.load %arg9[%c29_88, %c0_89] : memref<64x128xf32, #tpu.memory_space<vmem>>, vector<1x128xf32>
    tpu.vector_store %arg9[%c29_88, %c0_89], %118 {strides = array<i32>} : memref<64x128xf32, #tpu.memory_space<vmem>>, vector<1x128xf32>,
    %c30 = arith.constant 30 : index
    %120 = memref.load %arg0[%c30] : memref<64xi32, #tpu.memory_space<smem>>
    %121 = arith.index_cast %120 : i32 to index
    %c0_90 = arith.constant 0 : index
    %122 = vector.load %arg2[%121, %c0_90] : memref<128x128xf32, #tpu.memory_space<vmem>>, vector<1x128xf32>
    %c30_91 = arith.constant 30 : index
    %c0_92 = arith.constant 0 : index
    %123 = vector.load %arg9[%c30_91, %c0_92] : memref<64x128xf32, #tpu.memory_space<vmem>>, vector<1x128xf32>
    tpu.vector_store %arg9[%c30_91, %c0_92], %122 {strides = array<i32>} : memref<64x128xf32, #tpu.memory_space<vmem>>, vector<1x128xf32>,
    %c31 = arith.constant 31 : index
    %124 = memref.load %arg0[%c31] : memref<64xi32, #tpu.memory_space<smem>>
    %125 = arith.index_cast %124 : i32 to index
    %c0_93 = arith.constant 0 : index
    %126 = vector.load %arg2[%125, %c0_93] : memref<128x128xf32, #tpu.memory_space<vmem>>, vector<1x128xf32>
    %c31_94 = arith.constant 31 : index
    %c0_95 = arith.constant 0 : index
    %127 = vector.load %arg9[%c31_94, %c0_95] : memref<64x128xf32, #tpu.memory_space<vmem>>, vector<1x128xf32>
    tpu.vector_store %arg9[%c31_94, %c0_95], %126 {strides = array<i32>} : memref<64x128xf32, #tpu.memory_space<vmem>>, vector<1x128xf32>,
    %c32 = arith.constant 32 : index
    %128 = memref.load %arg0[%c32] : memref<64xi32, #tpu.memory_space<smem>>
    %129 = arith.index_cast %128 : i32 to index
    %c0_96 = arith.constant 0 : index
    %130 = vector.load %arg2[%129, %c0_96] : memref<128x128xf32, #tpu.memory_space<vmem>>, vector<1x128xf32>
    %c32_97 = arith.constant 32 : index
    %c0_98 = arith.constant 0 : index
    %131 = vector.load %arg9[%c32_97, %c0_98] : memref<64x128xf32, #tpu.memory_space<vmem>>, vector<1x128xf32>
    tpu.vector_store %arg9[%c32_97, %c0_98], %130 {strides = array<i32>} : memref<64x128xf32, #tpu.memory_space<vmem>>, vector<1x128xf32>,
    %c33 = arith.constant 33 : index
    %132 = memref.load %arg0[%c33] : memref<64xi32, #tpu.memory_space<smem>>
    %133 = arith.index_cast %132 : i32 to index
    %c0_99 = arith.constant 0 : index
    %134 = vector.load %arg2[%133, %c0_99] : memref<128x128xf32, #tpu.memory_space<vmem>>, vector<1x128xf32>
    %c33_100 = arith.constant 33 : index
    %c0_101 = arith.constant 0 : index
    %135 = vector.load %arg9[%c33_100, %c0_101] : memref<64x128xf32, #tpu.memory_space<vmem>>, vector<1x128xf32>
    tpu.vector_store %arg9[%c33_100, %c0_101], %134 {strides = array<i32>} : memref<64x128xf32, #tpu.memory_space<vmem>>, vector<1x128xf32>,
    %c34 = arith.constant 34 : index
    %136 = memref.load %arg0[%c34] : memref<64xi32, #tpu.memory_space<smem>>
    %137 = arith.index_cast %136 : i32 to index
    %c0_102 = arith.constant 0 : index
    %138 = vector.load %arg2[%137, %c0_102] : memref<128x128xf32, #tpu.memory_space<vmem>>, vector<1x128xf32>
    %c34_103 = arith.constant 34 : index
    %c0_104 = arith.constant 0 : index
    %139 = vector.load %arg9[%c34_103, %c0_104] : memref<64x128xf32, #tpu.memory_space<vmem>>, vector<1x128xf32>
    tpu.vector_store %arg9[%c34_103, %c0_104], %138 {strides = array<i32>} : memref<64x128xf32, #tpu.memory_space<vmem>>, vector<1x128xf32>,
    %c35 = arith.constant 35 : index
    %140 = memref.load %arg0[%c35] : memref<64xi32, #tpu.memory_space<smem>>
    %141 = arith.index_cast %140 : i32 to index
    %c0_105 = arith.constant 0 : index
    %142 = vector.load %arg2[%141, %c0_105] : memref<128x128xf32, #tpu.memory_space<vmem>>, vector<1x128xf32>
    %c35_106 = arith.constant 35 : index
    %c0_107 = arith.constant 0 : index
    %143 = vector.load %arg9[%c35_106, %c0_107] : memref<64x128xf32, #tpu.memory_space<vmem>>, vector<1x128xf32>
    tpu.vector_store %arg9[%c35_106, %c0_107], %142 {strides = array<i32>} : memref<64x128xf32, #tpu.memory_space<vmem>>, vector<1x128xf32>,
    %c36 = arith.constant 36 : index
    %144 = memref.load %arg0[%c36] : memref<64xi32, #tpu.memory_space<smem>>
    %145 = arith.index_cast %144 : i32 to index
    %c0_108 = arith.constant 0 : index
    %146 = vector.load %arg2[%145, %c0_108] : memref<128x128xf32, #tpu.memory_space<vmem>>, vector<1x128xf32>
    %c36_109 = arith.constant 36 : index
    %c0_110 = arith.constant 0 : index
    %147 = vector.load %arg9[%c36_109, %c0_110] : memref<64x128xf32, #tpu.memory_space<vmem>>, vector<1x128xf32>
    tpu.vector_store %arg9[%c36_109, %c0_110], %146 {strides = array<i32>} : memref<64x128xf32, #tpu.memory_space<vmem>>, vector<1x128xf32>,
    %c37 = arith.constant 37 : index
    %148 = memref.load %arg0[%c37] : memref<64xi32, #tpu.memory_space<smem>>
    %149 = arith.index_cast %148 : i32 to index
    %c0_111 = arith.constant 0 : index
    %150 = vector.load %arg2[%149, %c0_111] : memref<128x128xf32, #tpu.memory_space<vmem>>, vector<1x128xf32>
    %c37_112 = arith.constant 37 : index
    %c0_113 = arith.constant 0 : index
    %151 = vector.load %arg9[%c37_112, %c0_113] : memref<64x128xf32, #tpu.memory_space<vmem>>, vector<1x128xf32>
    tpu.vector_store %arg9[%c37_112, %c0_113], %150 {strides = array<i32>} : memref<64x128xf32, #tpu.memory_space<vmem>>, vector<1x128xf32>,
    %c38 = arith.constant 38 : index
    %152 = memref.load %arg0[%c38] : memref<64xi32, #tpu.memory_space<smem>>
    %153 = arith.index_cast %152 : i32 to index
    %c0_114 = arith.constant 0 : index
    %154 = vector.load %arg2[%153, %c0_114] : memref<128x128xf32, #tpu.memory_space<vmem>>, vector<1x128xf32>
    %c38_115 = arith.constant 38 : index
    %c0_116 = arith.constant 0 : index
    %155 = vector.load %arg9[%c38_115, %c0_116] : memref<64x128xf32, #tpu.memory_space<vmem>>, vector<1x128xf32>
    tpu.vector_store %arg9[%c38_115, %c0_116], %154 {strides = array<i32>} : memref<64x128xf32, #tpu.memory_space<vmem>>, vector<1x128xf32>,
    %c39 = arith.constant 39 : index
    %156 = memref.load %arg0[%c39] : memref<64xi32, #tpu.memory_space<smem>>
    %157 = arith.index_cast %156 : i32 to index
    %c0_117 = arith.constant 0 : index
    %158 = vector.load %arg2[%157, %c0_117] : memref<128x128xf32, #tpu.memory_space<vmem>>, vector<1x128xf32>
    %c39_118 = arith.constant 39 : index
    %c0_119 = arith.constant 0 : index
    %159 = vector.load %arg9[%c39_118, %c0_119] : memref<64x128xf32, #tpu.memory_space<vmem>>, vector<1x128xf32>
    tpu.vector_store %arg9[%c39_118, %c0_119], %158 {strides = array<i32>} : memref<64x128xf32, #tpu.memory_space<vmem>>, vector<1x128xf32>,
    %c40 = arith.constant 40 : index
    %160 = memref.load %arg0[%c40] : memref<64xi32, #tpu.memory_space<smem>>
    %161 = arith.index_cast %160 : i32 to index
    %c0_120 = arith.constant 0 : index
    %162 = vector.load %arg2[%161, %c0_120] : memref<128x128xf32, #tpu.memory_space<vmem>>, vector<1x128xf32>
    %c40_121 = arith.constant 40 : index
    %c0_122 = arith.constant 0 : index
    %163 = vector.load %arg9[%c40_121, %c0_122] : memref<64x128xf32, #tpu.memory_space<vmem>>, vector<1x128xf32>
    tpu.vector_store %arg9[%c40_121, %c0_122], %162 {strides = array<i32>} : memref<64x128xf32, #tpu.memory_space<vmem>>, vector<1x128xf32>,
    %c41 = arith.constant 41 : index
    %164 = memref.load %arg0[%c41] : memref<64xi32, #tpu.memory_space<smem>>
    %165 = arith.index_cast %164 : i32 to index
    %c0_123 = arith.constant 0 : index
    %166 = vector.load %arg2[%165, %c0_123] : memref<128x128xf32, #tpu.memory_space<vmem>>, vector<1x128xf32>
    %c41_124 = arith.constant 41 : index
    %c0_125 = arith.constant 0 : index
    %167 = vector.load %arg9[%c41_124, %c0_125] : memref<64x128xf32, #tpu.memory_space<vmem>>, vector<1x128xf32>
    tpu.vector_store %arg9[%c41_124, %c0_125], %166 {strides = array<i32>} : memref<64x128xf32, #tpu.memory_space<vmem>>, vector<1x128xf32>,
    %c42 = arith.constant 42 : index
    %168 = memref.load %arg0[%c42] : memref<64xi32, #tpu.memory_space<smem>>
    %169 = arith.index_cast %168 : i32 to index
    %c0_126 = arith.constant 0 : index
    %170 = vector.load %arg2[%169, %c0_126] : memref<128x128xf32, #tpu.memory_space<vmem>>, vector<1x128xf32>
    %c42_127 = arith.constant 42 : index
    %c0_128 = arith.constant 0 : index
    %171 = vector.load %arg9[%c42_127, %c0_128] : memref<64x128xf32, #tpu.memory_space<vmem>>, vector<1x128xf32>
    tpu.vector_store %arg9[%c42_127, %c0_128], %170 {strides = array<i32>} : memref<64x128xf32, #tpu.memory_space<vmem>>, vector<1x128xf32>,
    %c43 = arith.constant 43 : index
    %172 = memref.load %arg0[%c43] : memref<64xi32, #tpu.memory_space<smem>>
    %173 = arith.index_cast %172 : i32 to index
    %c0_129 = arith.constant 0 : index
    %174 = vector.load %arg2[%173, %c0_129] : memref<128x128xf32, #tpu.memory_space<vmem>>, vector<1x128xf32>
    %c43_130 = arith.constant 43 : index
    %c0_131 = arith.constant 0 : index
    %175 = vector.load %arg9[%c43_130, %c0_131] : memref<64x128xf32, #tpu.memory_space<vmem>>, vector<1x128xf32>
    tpu.vector_store %arg9[%c43_130, %c0_131], %174 {strides = array<i32>} : memref<64x128xf32, #tpu.memory_space<vmem>>, vector<1x128xf32>,
    %c44 = arith.constant 44 : index
    %176 = memref.load %arg0[%c44] : memref<64xi32, #tpu.memory_space<smem>>
    %177 = arith.index_cast %176 : i32 to index
    %c0_132 = arith.constant 0 : index
    %178 = vector.load %arg2[%177, %c0_132] : memref<128x128xf32, #tpu.memory_space<vmem>>, vector<1x128xf32>
    %c44_133 = arith.constant 44 : index
    %c0_134 = arith.constant 0 : index
    %179 = vector.load %arg9[%c44_133, %c0_134] : memref<64x128xf32, #tpu.memory_space<vmem>>, vector<1x128xf32>
    tpu.vector_store %arg9[%c44_133, %c0_134], %178 {strides = array<i32>} : memref<64x128xf32, #tpu.memory_space<vmem>>, vector<1x128xf32>,
    %c45 = arith.constant 45 : index
    %180 = memref.load %arg0[%c45] : memref<64xi32, #tpu.memory_space<smem>>
    %181 = arith.index_cast %180 : i32 to index
    %c0_135 = arith.constant 0 : index
    %182 = vector.load %arg2[%181, %c0_135] : memref<128x128xf32, #tpu.memory_space<vmem>>, vector<1x128xf32>
    %c45_136 = arith.constant 45 : index
    %c0_137 = arith.constant 0 : index
    %183 = vector.load %arg9[%c45_136, %c0_137] : memref<64x128xf32, #tpu.memory_space<vmem>>, vector<1x128xf32>
    tpu.vector_store %arg9[%c45_136, %c0_137], %182 {strides = array<i32>} : memref<64x128xf32, #tpu.memory_space<vmem>>, vector<1x128xf32>,
    %c46 = arith.constant 46 : index
    %184 = memref.load %arg0[%c46] : memref<64xi32, #tpu.memory_space<smem>>
    %185 = arith.index_cast %184 : i32 to index
    %c0_138 = arith.constant 0 : index
    %186 = vector.load %arg2[%185, %c0_138] : memref<128x128xf32, #tpu.memory_space<vmem>>, vector<1x128xf32>
    %c46_139 = arith.constant 46 : index
    %c0_140 = arith.constant 0 : index
    %187 = vector.load %arg9[%c46_139, %c0_140] : memref<64x128xf32, #tpu.memory_space<vmem>>, vector<1x128xf32>
    tpu.vector_store %arg9[%c46_139, %c0_140], %186 {strides = array<i32>} : memref<64x128xf32, #tpu.memory_space<vmem>>, vector<1x128xf32>,
    %c47 = arith.constant 47 : index
    %188 = memref.load %arg0[%c47] : memref<64xi32, #tpu.memory_space<smem>>
    %189 = arith.index_cast %188 : i32 to index
    %c0_141 = arith.constant 0 : index
    %190 = vector.load %arg2[%189, %c0_141] : memref<128x128xf32, #tpu.memory_space<vmem>>, vector<1x128xf32>
    %c47_142 = arith.constant 47 : index
    %c0_143 = arith.constant 0 : index
    %191 = vector.load %arg9[%c47_142, %c0_143] : memref<64x128xf32, #tpu.memory_space<vmem>>, vector<1x128xf32>
    tpu.vector_store %arg9[%c47_142, %c0_143], %190 {strides = array<i32>} : memref<64x128xf32, #tpu.memory_space<vmem>>, vector<1x128xf32>,
    %c48 = arith.constant 48 : index
    %192 = memref.load %arg0[%c48] : memref<64xi32, #tpu.memory_space<smem>>
    %193 = arith.index_cast %192 : i32 to index
    %c0_144 = arith.constant 0 : index
    %194 = vector.load %arg2[%193, %c0_144] : memref<128x128xf32, #tpu.memory_space<vmem>>, vector<1x128xf32>
    %c48_145 = arith.constant 48 : index
    %c0_146 = arith.constant 0 : index
    %195 = vector.load %arg9[%c48_145, %c0_146] : memref<64x128xf32, #tpu.memory_space<vmem>>, vector<1x128xf32>
    tpu.vector_store %arg9[%c48_145, %c0_146], %194 {strides = array<i32>} : memref<64x128xf32, #tpu.memory_space<vmem>>, vector<1x128xf32>,
    %c49 = arith.constant 49 : index
    %196 = memref.load %arg0[%c49] : memref<64xi32, #tpu.memory_space<smem>>
    %197 = arith.index_cast %196 : i32 to index
    %c0_147 = arith.constant 0 : index
    %198 = vector.load %arg2[%197, %c0_147] : memref<128x128xf32, #tpu.memory_space<vmem>>, vector<1x128xf32>
    %c49_148 = arith.constant 49 : index
    %c0_149 = arith.constant 0 : index
    %199 = vector.load %arg9[%c49_148, %c0_149] : memref<64x128xf32, #tpu.memory_space<vmem>>, vector<1x128xf32>
    tpu.vector_store %arg9[%c49_148, %c0_149], %198 {strides = array<i32>} : memref<64x128xf32, #tpu.memory_space<vmem>>, vector<1x128xf32>,
    %c50 = arith.constant 50 : index
    %200 = memref.load %arg0[%c50] : memref<64xi32, #tpu.memory_space<smem>>
    %201 = arith.index_cast %200 : i32 to index
    %c0_150 = arith.constant 0 : index
    %202 = vector.load %arg2[%201, %c0_150] : memref<128x128xf32, #tpu.memory_space<vmem>>, vector<1x128xf32>
    %c50_151 = arith.constant 50 : index
    %c0_152 = arith.constant 0 : index
    %203 = vector.load %arg9[%c50_151, %c0_152] : memref<64x128xf32, #tpu.memory_space<vmem>>, vector<1x128xf32>
    tpu.vector_store %arg9[%c50_151, %c0_152], %202 {strides = array<i32>} : memref<64x128xf32, #tpu.memory_space<vmem>>, vector<1x128xf32>,
    %c51 = arith.constant 51 : index
    %204 = memref.load %arg0[%c51] : memref<64xi32, #tpu.memory_space<smem>>
    %205 = arith.index_cast %204 : i32 to index
    %c0_153 = arith.constant 0 : index
    %206 = vector.load %arg2[%205, %c0_153] : memref<128x128xf32, #tpu.memory_space<vmem>>, vector<1x128xf32>
    %c51_154 = arith.constant 51 : index
    %c0_155 = arith.constant 0 : index
    %207 = vector.load %arg9[%c51_154, %c0_155] : memref<64x128xf32, #tpu.memory_space<vmem>>, vector<1x128xf32>
    tpu.vector_store %arg9[%c51_154, %c0_155], %206 {strides = array<i32>} : memref<64x128xf32, #tpu.memory_space<vmem>>, vector<1x128xf32>,
    %c52 = arith.constant 52 : index
    %208 = memref.load %arg0[%c52] : memref<64xi32, #tpu.memory_space<smem>>
    %209 = arith.index_cast %208 : i32 to index
    %c0_156 = arith.constant 0 : index
    %210 = vector.load %arg2[%209, %c0_156] : memref<128x128xf32, #tpu.memory_space<vmem>>, vector<1x128xf32>
    %c52_157 = arith.constant 52 : index
    %c0_158 = arith.constant 0 : index
    %211 = vector.load %arg9[%c52_157, %c0_158] : memref<64x128xf32, #tpu.memory_space<vmem>>, vector<1x128xf32>
    tpu.vector_store %arg9[%c52_157, %c0_158], %210 {strides = array<i32>} : memref<64x128xf32, #tpu.memory_space<vmem>>, vector<1x128xf32>,
    %c53 = arith.constant 53 : index
    %212 = memref.load %arg0[%c53] : memref<64xi32, #tpu.memory_space<smem>>
    %213 = arith.index_cast %212 : i32 to index
    %c0_159 = arith.constant 0 : index
    %214 = vector.load %arg2[%213, %c0_159] : memref<128x128xf32, #tpu.memory_space<vmem>>, vector<1x128xf32>
    %c53_160 = arith.constant 53 : index
    %c0_161 = arith.constant 0 : index
    %215 = vector.load %arg9[%c53_160, %c0_161] : memref<64x128xf32, #tpu.memory_space<vmem>>, vector<1x128xf32>
    tpu.vector_store %arg9[%c53_160, %c0_161], %214 {strides = array<i32>} : memref<64x128xf32, #tpu.memory_space<vmem>>, vector<1x128xf32>,
    %c54 = arith.constant 54 : index
    %216 = memref.load %arg0[%c54] : memref<64xi32, #tpu.memory_space<smem>>
    %217 = arith.index_cast %216 : i32 to index
    %c0_162 = arith.constant 0 : index
    %218 = vector.load %arg2[%217, %c0_162] : memref<128x128xf32, #tpu.memory_space<vmem>>, vector<1x128xf32>
    %c54_163 = arith.constant 54 : index
    %c0_164 = arith.constant 0 : index
    %219 = vector.load %arg9[%c54_163, %c0_164] : memref<64x128xf32, #tpu.memory_space<vmem>>, vector<1x128xf32>
    tpu.vector_store %arg9[%c54_163, %c0_164], %218 {strides = array<i32>} : memref<64x128xf32, #tpu.memory_space<vmem>>, vector<1x128xf32>,
    %c55 = arith.constant 55 : index
    %220 = memref.load %arg0[%c55] : memref<64xi32, #tpu.memory_space<smem>>
    %221 = arith.index_cast %220 : i32 to index
    %c0_165 = arith.constant 0 : index
    %222 = vector.load %arg2[%221, %c0_165] : memref<128x128xf32, #tpu.memory_space<vmem>>, vector<1x128xf32>
    %c55_166 = arith.constant 55 : index
    %c0_167 = arith.constant 0 : index
    %223 = vector.load %arg9[%c55_166, %c0_167] : memref<64x128xf32, #tpu.memory_space<vmem>>, vector<1x128xf32>
    tpu.vector_store %arg9[%c55_166, %c0_167], %222 {strides = array<i32>} : memref<64x128xf32, #tpu.memory_space<vmem>>, vector<1x128xf32>,
    %c56 = arith.constant 56 : index
    %224 = memref.load %arg0[%c56] : memref<64xi32, #tpu.memory_space<smem>>
    %225 = arith.index_cast %224 : i32 to index
    %c0_168 = arith.constant 0 : index
    %226 = vector.load %arg2[%225, %c0_168] : memref<128x128xf32, #tpu.memory_space<vmem>>, vector<1x128xf32>
    %c56_169 = arith.constant 56 : index
    %c0_170 = arith.constant 0 : index
    %227 = vector.load %arg9[%c56_169, %c0_170] : memref<64x128xf32, #tpu.memory_space<vmem>>, vector<1x128xf32>
    tpu.vector_store %arg9[%c56_169, %c0_170], %226 {strides = array<i32>} : memref<64x128xf32, #tpu.memory_space<vmem>>, vector<1x128xf32>,
    %c57 = arith.constant 57 : index
    %228 = memref.load %arg0[%c57] : memref<64xi32, #tpu.memory_space<smem>>
    %229 = arith.index_cast %228 : i32 to index
    %c0_171 = arith.constant 0 : index
    %230 = vector.load %arg2[%229, %c0_171] : memref<128x128xf32, #tpu.memory_space<vmem>>, vector<1x128xf32>
    %c57_172 = arith.constant 57 : index
    %c0_173 = arith.constant 0 : index
    %231 = vector.load %arg9[%c57_172, %c0_173] : memref<64x128xf32, #tpu.memory_space<vmem>>, vector<1x128xf32>
    tpu.vector_store %arg9[%c57_172, %c0_173], %230 {strides = array<i32>} : memref<64x128xf32, #tpu.memory_space<vmem>>, vector<1x128xf32>,
    %c58 = arith.constant 58 : index
    %232 = memref.load %arg0[%c58] : memref<64xi32, #tpu.memory_space<smem>>
    %233 = arith.index_cast %232 : i32 to index
    %c0_174 = arith.constant 0 : index
    %234 = vector.load %arg2[%233, %c0_174] : memref<128x128xf32, #tpu.memory_space<vmem>>, vector<1x128xf32>
    %c58_175 = arith.constant 58 : index
    %c0_176 = arith.constant 0 : index
    %235 = vector.load %arg9[%c58_175, %c0_176] : memref<64x128xf32, #tpu.memory_space<vmem>>, vector<1x128xf32>
    tpu.vector_store %arg9[%c58_175, %c0_176], %234 {strides = array<i32>} : memref<64x128xf32, #tpu.memory_space<vmem>>, vector<1x128xf32>,
    %c59 = arith.constant 59 : index
    %236 = memref.load %arg0[%c59] : memref<64xi32, #tpu.memory_space<smem>>
    %237 = arith.index_cast %236 : i32 to index
    %c0_177 = arith.constant 0 : index
    %238 = vector.load %arg2[%237, %c0_177] : memref<128x128xf32, #tpu.memory_space<vmem>>, vector<1x128xf32>
    %c59_178 = arith.constant 59 : index
    %c0_179 = arith.constant 0 : index
    %239 = vector.load %arg9[%c59_178, %c0_179] : memref<64x128xf32, #tpu.memory_space<vmem>>, vector<1x128xf32>
    tpu.vector_store %arg9[%c59_178, %c0_179], %238 {strides = array<i32>} : memref<64x128xf32, #tpu.memory_space<vmem>>, vector<1x128xf32>,
    %c60 = arith.constant 60 : index
    %240 = memref.load %arg0[%c60] : memref<64xi32, #tpu.memory_space<smem>>
    %241 = arith.index_cast %240 : i32 to index
    %c0_180 = arith.constant 0 : index
    %242 = vector.load %arg2[%241, %c0_180] : memref<128x128xf32, #tpu.memory_space<vmem>>, vector<1x128xf32>
    %c60_181 = arith.constant 60 : index
    %c0_182 = arith.constant 0 : index
    %243 = vector.load %arg9[%c60_181, %c0_182] : memref<64x128xf32, #tpu.memory_space<vmem>>, vector<1x128xf32>
    tpu.vector_store %arg9[%c60_181, %c0_182], %242 {strides = array<i32>} : memref<64x128xf32, #tpu.memory_space<vmem>>, vector<1x128xf32>,
    %c61 = arith.constant 61 : index
    %244 = memref.load %arg0[%c61] : memref<64xi32, #tpu.memory_space<smem>>
    %245 = arith.index_cast %244 : i32 to index
    %c0_183 = arith.constant 0 : index
    %246 = vector.load %arg2[%245, %c0_183] : memref<128x128xf32, #tpu.memory_space<vmem>>, vector<1x128xf32>
    %c61_184 = arith.constant 61 : index
    %c0_185 = arith.constant 0 : index
    %247 = vector.load %arg9[%c61_184, %c0_185] : memref<64x128xf32, #tpu.memory_space<vmem>>, vector<1x128xf32>
    tpu.vector_store %arg9[%c61_184, %c0_185], %246 {strides = array<i32>} : memref<64x128xf32, #tpu.memory_space<vmem>>, vector<1x128xf32>,
    %c62 = arith.constant 62 : index
    %248 = memref.load %arg0[%c62] : memref<64xi32, #tpu.memory_space<smem>>
    %249 = arith.index_cast %248 : i32 to index
    %c0_186 = arith.constant 0 : index
    %250 = vector.load %arg2[%249, %c0_186] : memref<128x128xf32, #tpu.memory_space<vmem>>, vector<1x128xf32>
    %c62_187 = arith.constant 62 : index
    %c0_188 = arith.constant 0 : index
    %251 = vector.load %arg9[%c62_187, %c0_188] : memref<64x128xf32, #tpu.memory_space<vmem>>, vector<1x128xf32>
    tpu.vector_store %arg9[%c62_187, %c0_188], %250 {strides = array<i32>} : memref<64x128xf32, #tpu.memory_space<vmem>>, vector<1x128xf32>,
    %c63 = arith.constant 63 : index
    %252 = memref.load %arg0[%c63] : memref<64xi32, #tpu.memory_space<smem>>
    %253 = arith.index_cast %252 : i32 to index
    %c0_189 = arith.constant 0 : index
    %254 = vector.load %arg2[%253, %c0_189] : memref<128x128xf32, #tpu.memory_space<vmem>>, vector<1x128xf32>
    %c63_190 = arith.constant 63 : index
    %c0_191 = arith.constant 0 : index
    %255 = vector.load %arg9[%c63_190, %c0_191] : memref<64x128xf32, #tpu.memory_space<vmem>>, vector<1x128xf32>
    tpu.vector_store %arg9[%c63_190, %c0_191], %254 {strides = array<i32>} : memref<64x128xf32, #tpu.memory_space<vmem>>, vector<1x128xf32>,
    %c0_192 = arith.constant 0 : index
    %c0_193 = arith.constant 0 : index
    %256 = vector.load %arg9[%c0_192, %c0_193] : memref<64x128xf32, #tpu.memory_space<vmem>>, vector<64x128xf32>
    %c0_194 = arith.constant 0 : index
    %c0_195 = arith.constant 0 : index
    %257 = vector.load %arg3[%c0_194, %c0_195] : memref<128x512xf32, #tpu.memory_space<vmem>>, vector<128x512xf32>
    %cst = arith.constant dense<0.000000e+00> : vector<64x512xf32>
    %258 = tpu.matmul %256, %257, %cst {dimension_numbers = #tpu.dot_dimension_numbers<[1], [0], [0], [1], [0, 0, 1, 1], [], []>} : vector<64x128xf32>, vector<128x512xf32>, vector<64x512xf32> -> vector<64x512xf32>
    %c0_196 = arith.constant 0 : index
    %c0_197 = arith.constant 0 : index
    %259 = vector.load %arg5[%c0_196, %c0_197] : memref<1x512xf32, #tpu.memory_space<vmem>>, vector<1x512xf32>
    %260 = vector.broadcast %259 : vector<1x512xf32> to vector<64x512xf32>
    %261 = arith.addf %258, %260 : vector<64x512xf32>
    %c0_198 = arith.constant 0 : index
    %c0_199 = arith.constant 0 : index
    %262 = vector.load %arg10[%c0_198, %c0_199] : memref<64x512xf32, #tpu.memory_space<vmem>>, vector<64x512xf32>
    tpu.vector_store %arg10[%c0_198, %c0_199], %261 {strides = array<i32>} : memref<64x512xf32, #tpu.memory_space<vmem>>, vector<64x512xf32>,
    %c0_200 = arith.constant 0 : index
    %c0_201 = arith.constant 0 : index
    %263 = vector.load %arg1[%c0_200, %c0_201] : memref<8x1xi32, #tpu.memory_space<vmem>>, vector<8x1xi32>
    %cst_202 = arith.constant 0.000000e+00 : f32
    %264 = vector.broadcast %cst_202 : f32 to vector<8x128xf32>
    %cst_203 = arith.constant 0.000000e+00 : f32
    %265 = vector.broadcast %cst_203 : f32 to vector<8x128xf32>
    %cst_204 = arith.constant 0.000000e+00 : f32
    %266 = vector.broadcast %cst_204 : f32 to vector<8x128xf32>
    %c0_205 = arith.constant 0 : index
    %c0_206 = arith.constant 0 : index
    %267 = vector.load %arg10[%c0_205, %c0_206] : memref<64x512xf32, #tpu.memory_space<vmem>>, vector<8x512xf32>
    %c0_207 = arith.constant 0 : index
    %c0_208 = arith.constant 0 : index
    %268 = vector.load %arg4[%c0_207, %c0_208] : memref<128x512xf32, #tpu.memory_space<vmem>>, vector<128x512xf32>
    %cst_209 = arith.constant dense<0.000000e+00> : vector<8x512xf32>
    %269 = tpu.matmul %264, %268, %cst_209 {dimension_numbers = #tpu.dot_dimension_numbers<[1], [0], [0], [1], [0, 0, 1, 1], [], []>} : vector<8x128xf32>, vector<128x512xf32>, vector<8x512xf32> -> vector<8x512xf32>
    %270 = arith.addf %267, %269 : vector<8x512xf32>
    %271 = vector.extract_strided_slice %270 {offsets = [0, 0], sizes = [8, 384], strides = [1, 1]} : vector<8x512xf32> to vector<8x384xf32>
    %272 = arith.negf %271 : vector<8x384xf32>
    %273 = math.exp %272 : vector<8x384xf32>
    %cst_210 = arith.constant 1.000000e+00 : f32
    %274 = vector.broadcast %cst_210 : f32 to vector<8x384xf32>
    %275 = arith.addf %274, %273 : vector<8x384xf32>
    %276 = arith.divf %274, %275 : vector<8x384xf32>
    %277 = vector.extract_strided_slice %276 {offsets = [0, 0], sizes = [8, 128], strides = [1, 1]} : vector<8x384xf32> to vector<8x128xf32>
    %278 = vector.extract_strided_slice %276 {offsets = [0, 128], sizes = [8, 128], strides = [1, 1]} : vector<8x384xf32> to vector<8x128xf32>
    %279 = vector.extract_strided_slice %276 {offsets = [0, 256], sizes = [8, 128], strides = [1, 1]} : vector<8x384xf32> to vector<8x128xf32>
    %280 = vector.extract_strided_slice %270 {offsets = [0, 384], sizes = [8, 128], strides = [1, 1]} : vector<8x512xf32> to vector<8x128xf32>
    %281 = math.tanh %280 : vector<8x128xf32>
    %282 = arith.mulf %278, %265 : vector<8x128xf32>
    %283 = arith.mulf %277, %281 : vector<8x128xf32>
    %284 = arith.addf %282, %283 : vector<8x128xf32>
    %285 = math.tanh %284 : vector<8x128xf32>
    %286 = arith.mulf %279, %285 : vector<8x128xf32>
    %c0_i32 = arith.constant 0 : i32
    %287 = vector.broadcast %c0_i32 : i32 to vector<8x1xi32>
    %288 = arith.cmpi eq, %263, %287 : vector<8x1xi32>
    %289 = vector.shape_cast %288 : vector<8x1xi1> to vector<8x1xi1>
    %290 = vector.broadcast %289 : vector<8x1xi1> to vector<8x128xi1>
    %291 = arith.select %290, %286, %266 : vector<8x128xi1>, vector<8x128xf32>
    %c8_211 = arith.constant 8 : index
    %c0_212 = arith.constant 0 : index
    %292 = vector.load %arg10[%c8_211, %c0_212] : memref<64x512xf32, #tpu.memory_space<vmem>>, vector<8x512xf32>
    %c0_213 = arith.constant 0 : index
    %c0_214 = arith.constant 0 : index
    %293 = vector.load %arg4[%c0_213, %c0_214] : memref<128x512xf32, #tpu.memory_space<vmem>>, vector<128x512xf32>
    %cst_215 = arith.constant dense<0.000000e+00> : vector<8x512xf32>
    %294 = tpu.matmul %286, %293, %cst_215 {dimension_numbers = #tpu.dot_dimension_numbers<[1], [0], [0], [1], [0, 0, 1, 1], [], []>} : vector<8x128xf32>, vector<128x512xf32>, vector<8x512xf32> -> vector<8x512xf32>
    %295 = arith.addf %292, %294 : vector<8x512xf32>
    %296 = vector.extract_strided_slice %295 {offsets = [0, 0], sizes = [8, 384], strides = [1, 1]} : vector<8x512xf32> to vector<8x384xf32>
    %297 = arith.negf %296 : vector<8x384xf32>
    %298 = math.exp %297 : vector<8x384xf32>
    %cst_216 = arith.constant 1.000000e+00 : f32
    %299 = vector.broadcast %cst_216 : f32 to vector<8x384xf32>
    %300 = arith.addf %299, %298 : vector<8x384xf32>
    %301 = arith.divf %299, %300 : vector<8x384xf32>
    %302 = vector.extract_strided_slice %301 {offsets = [0, 0], sizes = [8, 128], strides = [1, 1]} : vector<8x384xf32> to vector<8x128xf32>
    %303 = vector.extract_strided_slice %301 {offsets = [0, 128], sizes = [8, 128], strides = [1, 1]} : vector<8x384xf32> to vector<8x128xf32>
    %304 = vector.extract_strided_slice %301 {offsets = [0, 256], sizes = [8, 128], strides = [1, 1]} : vector<8x384xf32> to vector<8x128xf32>
    %305 = vector.extract_strided_slice %295 {offsets = [0, 384], sizes = [8, 128], strides = [1, 1]} : vector<8x512xf32> to vector<8x128xf32>
    %306 = math.tanh %305 : vector<8x128xf32>
    %307 = arith.mulf %303, %284 : vector<8x128xf32>
    %308 = arith.mulf %302, %306 : vector<8x128xf32>
    %309 = arith.addf %307, %308 : vector<8x128xf32>
    %310 = math.tanh %309 : vector<8x128xf32>
    %311 = arith.mulf %304, %310 : vector<8x128xf32>
    %c1_i32 = arith.constant 1 : i32
    %312 = vector.broadcast %c1_i32 : i32 to vector<8x1xi32>
    %313 = arith.cmpi eq, %263, %312 : vector<8x1xi32>
    %314 = vector.shape_cast %313 : vector<8x1xi1> to vector<8x1xi1>
    %315 = vector.broadcast %314 : vector<8x1xi1> to vector<8x128xi1>
    %316 = arith.select %315, %311, %291 : vector<8x128xi1>, vector<8x128xf32>
    %c16_217 = arith.constant 16 : index
    %c0_218 = arith.constant 0 : index
    %317 = vector.load %arg10[%c16_217, %c0_218] : memref<64x512xf32, #tpu.memory_space<vmem>>, vector<8x512xf32>
    %c0_219 = arith.constant 0 : index
    %c0_220 = arith.constant 0 : index
    %318 = vector.load %arg4[%c0_219, %c0_220] : memref<128x512xf32, #tpu.memory_space<vmem>>, vector<128x512xf32>
    %cst_221 = arith.constant dense<0.000000e+00> : vector<8x512xf32>
    %319 = tpu.matmul %311, %318, %cst_221 {dimension_numbers = #tpu.dot_dimension_numbers<[1], [0], [0], [1], [0, 0, 1, 1], [], []>} : vector<8x128xf32>, vector<128x512xf32>, vector<8x512xf32> -> vector<8x512xf32>
    %320 = arith.addf %317, %319 : vector<8x512xf32>
    %321 = vector.extract_strided_slice %320 {offsets = [0, 0], sizes = [8, 384], strides = [1, 1]} : vector<8x512xf32> to vector<8x384xf32>
    %322 = arith.negf %321 : vector<8x384xf32>
    %323 = math.exp %322 : vector<8x384xf32>
    %cst_222 = arith.constant 1.000000e+00 : f32
    %324 = vector.broadcast %cst_222 : f32 to vector<8x384xf32>
    %325 = arith.addf %324, %323 : vector<8x384xf32>
    %326 = arith.divf %324, %325 : vector<8x384xf32>
    %327 = vector.extract_strided_slice %326 {offsets = [0, 0], sizes = [8, 128], strides = [1, 1]} : vector<8x384xf32> to vector<8x128xf32>
    %328 = vector.extract_strided_slice %326 {offsets = [0, 128], sizes = [8, 128], strides = [1, 1]} : vector<8x384xf32> to vector<8x128xf32>
    %329 = vector.extract_strided_slice %326 {offsets = [0, 256], sizes = [8, 128], strides = [1, 1]} : vector<8x384xf32> to vector<8x128xf32>
    %330 = vector.extract_strided_slice %320 {offsets = [0, 384], sizes = [8, 128], strides = [1, 1]} : vector<8x512xf32> to vector<8x128xf32>
    %331 = math.tanh %330 : vector<8x128xf32>
    %332 = arith.mulf %328, %309 : vector<8x128xf32>
    %333 = arith.mulf %327, %331 : vector<8x128xf32>
    %334 = arith.addf %332, %333 : vector<8x128xf32>
    %335 = math.tanh %334 : vector<8x128xf32>
    %336 = arith.mulf %329, %335 : vector<8x128xf32>
    %c2_i32 = arith.constant 2 : i32
    %337 = vector.broadcast %c2_i32 : i32 to vector<8x1xi32>
    %338 = arith.cmpi eq, %263, %337 : vector<8x1xi32>
    %339 = vector.shape_cast %338 : vector<8x1xi1> to vector<8x1xi1>
    %340 = vector.broadcast %339 : vector<8x1xi1> to vector<8x128xi1>
    %341 = arith.select %340, %336, %316 : vector<8x128xi1>, vector<8x128xf32>
    %c24_223 = arith.constant 24 : index
    %c0_224 = arith.constant 0 : index
    %342 = vector.load %arg10[%c24_223, %c0_224] : memref<64x512xf32, #tpu.memory_space<vmem>>, vector<8x512xf32>
    %c0_225 = arith.constant 0 : index
    %c0_226 = arith.constant 0 : index
    %343 = vector.load %arg4[%c0_225, %c0_226] : memref<128x512xf32, #tpu.memory_space<vmem>>, vector<128x512xf32>
    %cst_227 = arith.constant dense<0.000000e+00> : vector<8x512xf32>
    %344 = tpu.matmul %336, %343, %cst_227 {dimension_numbers = #tpu.dot_dimension_numbers<[1], [0], [0], [1], [0, 0, 1, 1], [], []>} : vector<8x128xf32>, vector<128x512xf32>, vector<8x512xf32> -> vector<8x512xf32>
    %345 = arith.addf %342, %344 : vector<8x512xf32>
    %346 = vector.extract_strided_slice %345 {offsets = [0, 0], sizes = [8, 384], strides = [1, 1]} : vector<8x512xf32> to vector<8x384xf32>
    %347 = arith.negf %346 : vector<8x384xf32>
    %348 = math.exp %347 : vector<8x384xf32>
    %cst_228 = arith.constant 1.000000e+00 : f32
    %349 = vector.broadcast %cst_228 : f32 to vector<8x384xf32>
    %350 = arith.addf %349, %348 : vector<8x384xf32>
    %351 = arith.divf %349, %350 : vector<8x384xf32>
    %352 = vector.extract_strided_slice %351 {offsets = [0, 0], sizes = [8, 128], strides = [1, 1]} : vector<8x384xf32> to vector<8x128xf32>
    %353 = vector.extract_strided_slice %351 {offsets = [0, 128], sizes = [8, 128], strides = [1, 1]} : vector<8x384xf32> to vector<8x128xf32>
    %354 = vector.extract_strided_slice %351 {offsets = [0, 256], sizes = [8, 128], strides = [1, 1]} : vector<8x384xf32> to vector<8x128xf32>
    %355 = vector.extract_strided_slice %345 {offsets = [0, 384], sizes = [8, 128], strides = [1, 1]} : vector<8x512xf32> to vector<8x128xf32>
    %356 = math.tanh %355 : vector<8x128xf32>
    %357 = arith.mulf %353, %334 : vector<8x128xf32>
    %358 = arith.mulf %352, %356 : vector<8x128xf32>
    %359 = arith.addf %357, %358 : vector<8x128xf32>
    %360 = math.tanh %359 : vector<8x128xf32>
    %361 = arith.mulf %354, %360 : vector<8x128xf32>
    %c3_i32 = arith.constant 3 : i32
    %362 = vector.broadcast %c3_i32 : i32 to vector<8x1xi32>
    %363 = arith.cmpi eq, %263, %362 : vector<8x1xi32>
    %364 = vector.shape_cast %363 : vector<8x1xi1> to vector<8x1xi1>
    %365 = vector.broadcast %364 : vector<8x1xi1> to vector<8x128xi1>
    %366 = arith.select %365, %361, %341 : vector<8x128xi1>, vector<8x128xf32>
    %c32_229 = arith.constant 32 : index
    %c0_230 = arith.constant 0 : index
    %367 = vector.load %arg10[%c32_229, %c0_230] : memref<64x512xf32, #tpu.memory_space<vmem>>, vector<8x512xf32>
    %c0_231 = arith.constant 0 : index
    %c0_232 = arith.constant 0 : index
    %368 = vector.load %arg4[%c0_231, %c0_232] : memref<128x512xf32, #tpu.memory_space<vmem>>, vector<128x512xf32>
    %cst_233 = arith.constant dense<0.000000e+00> : vector<8x512xf32>
    %369 = tpu.matmul %361, %368, %cst_233 {dimension_numbers = #tpu.dot_dimension_numbers<[1], [0], [0], [1], [0, 0, 1, 1], [], []>} : vector<8x128xf32>, vector<128x512xf32>, vector<8x512xf32> -> vector<8x512xf32>
    %370 = arith.addf %367, %369 : vector<8x512xf32>
    %371 = vector.extract_strided_slice %370 {offsets = [0, 0], sizes = [8, 384], strides = [1, 1]} : vector<8x512xf32> to vector<8x384xf32>
    %372 = arith.negf %371 : vector<8x384xf32>
    %373 = math.exp %372 : vector<8x384xf32>
    %cst_234 = arith.constant 1.000000e+00 : f32
    %374 = vector.broadcast %cst_234 : f32 to vector<8x384xf32>
    %375 = arith.addf %374, %373 : vector<8x384xf32>
    %376 = arith.divf %374, %375 : vector<8x384xf32>
    %377 = vector.extract_strided_slice %376 {offsets = [0, 0], sizes = [8, 128], strides = [1, 1]} : vector<8x384xf32> to vector<8x128xf32>
    %378 = vector.extract_strided_slice %376 {offsets = [0, 128], sizes = [8, 128], strides = [1, 1]} : vector<8x384xf32> to vector<8x128xf32>
    %379 = vector.extract_strided_slice %376 {offsets = [0, 256], sizes = [8, 128], strides = [1, 1]} : vector<8x384xf32> to vector<8x128xf32>
    %380 = vector.extract_strided_slice %370 {offsets = [0, 384], sizes = [8, 128], strides = [1, 1]} : vector<8x512xf32> to vector<8x128xf32>
    %381 = math.tanh %380 : vector<8x128xf32>
    %382 = arith.mulf %378, %359 : vector<8x128xf32>
    %383 = arith.mulf %377, %381 : vector<8x128xf32>
    %384 = arith.addf %382, %383 : vector<8x128xf32>
    %385 = math.tanh %384 : vector<8x128xf32>
    %386 = arith.mulf %379, %385 : vector<8x128xf32>
    %c4_i32 = arith.constant 4 : i32
    %387 = vector.broadcast %c4_i32 : i32 to vector<8x1xi32>
    %388 = arith.cmpi eq, %263, %387 : vector<8x1xi32>
    %389 = vector.shape_cast %388 : vector<8x1xi1> to vector<8x1xi1>
    %390 = vector.broadcast %389 : vector<8x1xi1> to vector<8x128xi1>
    %391 = arith.select %390, %386, %366 : vector<8x128xi1>, vector<8x128xf32>
    %c40_235 = arith.constant 40 : index
    %c0_236 = arith.constant 0 : index
    %392 = vector.load %arg10[%c40_235, %c0_236] : memref<64x512xf32, #tpu.memory_space<vmem>>, vector<8x512xf32>
    %c0_237 = arith.constant 0 : index
    %c0_238 = arith.constant 0 : index
    %393 = vector.load %arg4[%c0_237, %c0_238] : memref<128x512xf32, #tpu.memory_space<vmem>>, vector<128x512xf32>
    %cst_239 = arith.constant dense<0.000000e+00> : vector<8x512xf32>
    %394 = tpu.matmul %386, %393, %cst_239 {dimension_numbers = #tpu.dot_dimension_numbers<[1], [0], [0], [1], [0, 0, 1, 1], [], []>} : vector<8x128xf32>, vector<128x512xf32>, vector<8x512xf32> -> vector<8x512xf32>
    %395 = arith.addf %392, %394 : vector<8x512xf32>
    %396 = vector.extract_strided_slice %395 {offsets = [0, 0], sizes = [8, 384], strides = [1, 1]} : vector<8x512xf32> to vector<8x384xf32>
    %397 = arith.negf %396 : vector<8x384xf32>
    %398 = math.exp %397 : vector<8x384xf32>
    %cst_240 = arith.constant 1.000000e+00 : f32
    %399 = vector.broadcast %cst_240 : f32 to vector<8x384xf32>
    %400 = arith.addf %399, %398 : vector<8x384xf32>
    %401 = arith.divf %399, %400 : vector<8x384xf32>
    %402 = vector.extract_strided_slice %401 {offsets = [0, 0], sizes = [8, 128], strides = [1, 1]} : vector<8x384xf32> to vector<8x128xf32>
    %403 = vector.extract_strided_slice %401 {offsets = [0, 128], sizes = [8, 128], strides = [1, 1]} : vector<8x384xf32> to vector<8x128xf32>
    %404 = vector.extract_strided_slice %401 {offsets = [0, 256], sizes = [8, 128], strides = [1, 1]} : vector<8x384xf32> to vector<8x128xf32>
    %405 = vector.extract_strided_slice %395 {offsets = [0, 384], sizes = [8, 128], strides = [1, 1]} : vector<8x512xf32> to vector<8x128xf32>
    %406 = math.tanh %405 : vector<8x128xf32>
    %407 = arith.mulf %403, %384 : vector<8x128xf32>
    %408 = arith.mulf %402, %406 : vector<8x128xf32>
    %409 = arith.addf %407, %408 : vector<8x128xf32>
    %410 = math.tanh %409 : vector<8x128xf32>
    %411 = arith.mulf %404, %410 : vector<8x128xf32>
    %c5_i32 = arith.constant 5 : i32
    %412 = vector.broadcast %c5_i32 : i32 to vector<8x1xi32>
    %413 = arith.cmpi eq, %263, %412 : vector<8x1xi32>
    %414 = vector.shape_cast %413 : vector<8x1xi1> to vector<8x1xi1>
    %415 = vector.broadcast %414 : vector<8x1xi1> to vector<8x128xi1>
    %416 = arith.select %415, %411, %391 : vector<8x128xi1>, vector<8x128xf32>
    %c48_241 = arith.constant 48 : index
    %c0_242 = arith.constant 0 : index
    %417 = vector.load %arg10[%c48_241, %c0_242] : memref<64x512xf32, #tpu.memory_space<vmem>>, vector<8x512xf32>
    %c0_243 = arith.constant 0 : index
    %c0_244 = arith.constant 0 : index
    %418 = vector.load %arg4[%c0_243, %c0_244] : memref<128x512xf32, #tpu.memory_space<vmem>>, vector<128x512xf32>
    %cst_245 = arith.constant dense<0.000000e+00> : vector<8x512xf32>
    %419 = tpu.matmul %411, %418, %cst_245 {dimension_numbers = #tpu.dot_dimension_numbers<[1], [0], [0], [1], [0, 0, 1, 1], [], []>} : vector<8x128xf32>, vector<128x512xf32>, vector<8x512xf32> -> vector<8x512xf32>
    %420 = arith.addf %417, %419 : vector<8x512xf32>
    %421 = vector.extract_strided_slice %420 {offsets = [0, 0], sizes = [8, 384], strides = [1, 1]} : vector<8x512xf32> to vector<8x384xf32>
    %422 = arith.negf %421 : vector<8x384xf32>
    %423 = math.exp %422 : vector<8x384xf32>
    %cst_246 = arith.constant 1.000000e+00 : f32
    %424 = vector.broadcast %cst_246 : f32 to vector<8x384xf32>
    %425 = arith.addf %424, %423 : vector<8x384xf32>
    %426 = arith.divf %424, %425 : vector<8x384xf32>
    %427 = vector.extract_strided_slice %426 {offsets = [0, 0], sizes = [8, 128], strides = [1, 1]} : vector<8x384xf32> to vector<8x128xf32>
    %428 = vector.extract_strided_slice %426 {offsets = [0, 128], sizes = [8, 128], strides = [1, 1]} : vector<8x384xf32> to vector<8x128xf32>
    %429 = vector.extract_strided_slice %426 {offsets = [0, 256], sizes = [8, 128], strides = [1, 1]} : vector<8x384xf32> to vector<8x128xf32>
    %430 = vector.extract_strided_slice %420 {offsets = [0, 384], sizes = [8, 128], strides = [1, 1]} : vector<8x512xf32> to vector<8x128xf32>
    %431 = math.tanh %430 : vector<8x128xf32>
    %432 = arith.mulf %428, %409 : vector<8x128xf32>
    %433 = arith.mulf %427, %431 : vector<8x128xf32>
    %434 = arith.addf %432, %433 : vector<8x128xf32>
    %435 = math.tanh %434 : vector<8x128xf32>
    %436 = arith.mulf %429, %435 : vector<8x128xf32>
    %c6_i32 = arith.constant 6 : i32
    %437 = vector.broadcast %c6_i32 : i32 to vector<8x1xi32>
    %438 = arith.cmpi eq, %263, %437 : vector<8x1xi32>
    %439 = vector.shape_cast %438 : vector<8x1xi1> to vector<8x1xi1>
    %440 = vector.broadcast %439 : vector<8x1xi1> to vector<8x128xi1>
    %441 = arith.select %440, %436, %416 : vector<8x128xi1>, vector<8x128xf32>
    %c56_247 = arith.constant 56 : index
    %c0_248 = arith.constant 0 : index
    %442 = vector.load %arg10[%c56_247, %c0_248] : memref<64x512xf32, #tpu.memory_space<vmem>>, vector<8x512xf32>
    %c0_249 = arith.constant 0 : index
    %c0_250 = arith.constant 0 : index
    %443 = vector.load %arg4[%c0_249, %c0_250] : memref<128x512xf32, #tpu.memory_space<vmem>>, vector<128x512xf32>
    %cst_251 = arith.constant dense<0.000000e+00> : vector<8x512xf32>
    %444 = tpu.matmul %436, %443, %cst_251 {dimension_numbers = #tpu.dot_dimension_numbers<[1], [0], [0], [1], [0, 0, 1, 1], [], []>} : vector<8x128xf32>, vector<128x512xf32>, vector<8x512xf32> -> vector<8x512xf32>
    %445 = arith.addf %442, %444 : vector<8x512xf32>
    %446 = vector.extract_strided_slice %445 {offsets = [0, 0], sizes = [8, 384], strides = [1, 1]} : vector<8x512xf32> to vector<8x384xf32>
    %447 = arith.negf %446 : vector<8x384xf32>
    %448 = math.exp %447 : vector<8x384xf32>
    %cst_252 = arith.constant 1.000000e+00 : f32
    %449 = vector.broadcast %cst_252 : f32 to vector<8x384xf32>
    %450 = arith.addf %449, %448 : vector<8x384xf32>
    %451 = arith.divf %449, %450 : vector<8x384xf32>
    %452 = vector.extract_strided_slice %451 {offsets = [0, 0], sizes = [8, 128], strides = [1, 1]} : vector<8x384xf32> to vector<8x128xf32>
    %453 = vector.extract_strided_slice %451 {offsets = [0, 128], sizes = [8, 128], strides = [1, 1]} : vector<8x384xf32> to vector<8x128xf32>
    %454 = vector.extract_strided_slice %451 {offsets = [0, 256], sizes = [8, 128], strides = [1, 1]} : vector<8x384xf32> to vector<8x128xf32>
    %455 = vector.extract_strided_slice %445 {offsets = [0, 384], sizes = [8, 128], strides = [1, 1]} : vector<8x512xf32> to vector<8x128xf32>
    %456 = math.tanh %455 : vector<8x128xf32>
    %457 = arith.mulf %453, %434 : vector<8x128xf32>
    %458 = arith.mulf %452, %456 : vector<8x128xf32>
    %459 = arith.addf %457, %458 : vector<8x128xf32>
    %460 = math.tanh %459 : vector<8x128xf32>
    %461 = arith.mulf %454, %460 : vector<8x128xf32>
    %c7_i32 = arith.constant 7 : i32
    %462 = vector.broadcast %c7_i32 : i32 to vector<8x1xi32>
    %463 = arith.cmpi eq, %263, %462 : vector<8x1xi32>
    %464 = vector.shape_cast %463 : vector<8x1xi1> to vector<8x1xi1>
    %465 = vector.broadcast %464 : vector<8x1xi1> to vector<8x128xi1>
    %466 = arith.select %465, %461, %441 : vector<8x128xi1>, vector<8x128xf32>
    %c0_253 = arith.constant 0 : index
    %c0_254 = arith.constant 0 : index
    %467 = vector.load %arg6[%c0_253, %c0_254] : memref<1x128xf32, #tpu.memory_space<vmem>>, vector<1x128xf32>
    %468 = vector.broadcast %467 : vector<1x128xf32> to vector<8x128xf32>
    %469 = arith.mulf %466, %468 : vector<8x128xf32>
    %cst_255 = arith.constant dense<0.000000e+00> : vector<8xf32>
    %470 = vector.multi_reduction <add>, %469, %cst_255 [1] : vector<8x128xf32> to vector<8xf32>
    %471 = vector.shape_cast %470 : vector<8xf32> to vector<8x1xf32>
    %c0_256 = arith.constant 0 : index
    %c0_257 = arith.constant 0 : index
    %472 = vector.load %arg7[%c0_256, %c0_257] : memref<1x1xf32, #tpu.memory_space<vmem>>, vector<1x1xf32>
    %473 = vector.broadcast %472 : vector<1x1xf32> to vector<8x1xf32>
    %474 = arith.addf %471, %473 : vector<8x1xf32>
    %c0_258 = arith.constant 0 : index
    %c0_259 = arith.constant 0 : index
    %475 = vector.load %arg8[%c0_258, %c0_259] : memref<8x1xf32, #tpu.memory_space<vmem>>, vector<8x1xf32>
    tpu.vector_store %arg8[%c0_258, %c0_259], %474 {strides = array<i32>} : memref<8x1xf32, #tpu.memory_space<vmem>>, vector<8x1xf32>,
    return
  }
}

</mosaic_0001>

<llo_original>
// kernel: spam_classifier_forward.1
$region0: #{spam_classifier_forward.1}
  #allocation0 [shape = 'u32[]', space=smem, size = 0x4, offset = 0x4, fixed_abs, tag = 'smem constant byte address 0x4 - core index']
  #allocation1 [shape = 'u32[144,128]{1,0:T(1,128)}', space=vmem, size = 0x12000, scoped, tag = 'internal scratch']
  #allocation2 [shape = 'f32[64,128]{1,0:T(8,128)}', space=vmem, size = 0x8000, scoped, tag = 'scratch operand']
  #allocation3 [shape = 'f32[64,512]{1,0:T(8,128)}', space=vmem, size = 0x20000, scoped, tag = 'scratch operand']
  #allocation4 [shape = 'f32[1,1]{1,0:T(1,128)S(1)}', space=vmem, size = 0x200, scoped, tag = 'scoped memory for spam_classifier_forward.1']
  %s0 = inlined_call_operand.vmem [shape: s32[64], index: 0, kind: input, shape index: {}]
  %s1 = inlined_call_operand.vmem [shape: s32[8,1], index: 1, kind: input, shape index: {}]
  %s2 = inlined_call_operand.vmem [shape: f32[128,128], index: 2, kind: input, shape index: {}]
  %s3 = inlined_call_operand.vmem [shape: f32[128,512], index: 3, kind: input, shape index: {}]
  %s4 = inlined_call_operand.vmem [shape: f32[128,512], index: 4, kind: input, shape index: {}]
  %s5 = inlined_call_operand.vmem [shape: f32[1,512], index: 5, kind: input, shape index: {}]
  %s6 = inlined_call_operand.vmem [shape: f32[1,128], index: 6, kind: input, shape index: {}]
  %s7 = inlined_call_operand.<no memory space> [shape: f32[1,1], index: 7, kind: input, shape index: {}]
  %s8 = inlined_call_operand.vmem [shape: f32[8,1], index: 8, kind: output, shape index: {}]
  %s9 = sld [smem:[#allocation0]]
  $region46: #{spam_classifier_forward.1} parent=0
    _
  %s11 = ssub.s32 1, %s9
  %s12 = scalar_select 0, %s11, %s9
  %v13 = vstv %s7
  %14 = vst [vmem:[#allocation4] sm:$0x1] %v13
  $region1: #{spam_classifier_forward.1} parent=0
    #allocation5 [shape = 'u8[512]{0}', space=smem, size = 0x200, scoped, tag = 'input window, operand 0, single buffered']
    #allocation6 [shape = 's32[1]{0}', space=sflag, size = 0x4, scoped, tag = 'scoped memory for spam_classifier_forward.1']
    %15 = vsyncpa [#allocation6], 0
    // Predicated region
    $region2: #{spam_classifier_forward.1} parent=1 // pred_check
      _
    $region3: #{spam_classifier_forward.1} parent=1 // pred_check_branch
      %17 = sbr.rel (0) target = $region5
    $region4: #{spam_classifier_forward.1} parent=1 // pred_region
      %s19 = ssub.s32 16, 16
      %20 = vsyncadd [#allocation6], %s19
      %s22 = sshll.u32 %s0, 4
      %s23 = int_to_ptr.vmem [resolvable:$true] %s22
      %25 = dma.vmem_to_smem %s23, 16, [#allocation5], [#allocation6]
    $region5: #{spam_classifier_forward.1} parent=1 // pred_fallthru
      _
    // Predicated region
    $region6: #{spam_classifier_forward.1} parent=1 // pred_check
      _
    $region7: #{spam_classifier_forward.1} parent=1 // pred_check_branch
      %27 = sbr.rel (0) target = $region9
    $region8: #{spam_classifier_forward.1} parent=1 // pred_region
      _
    $region9: #{spam_classifier_forward.1} parent=1 // pred_fallthru
      _
    // Predicated region
    $region10: #{spam_classifier_forward.1} parent=1 // pred_check
      _
    $region11: #{spam_classifier_forward.1} parent=1 // pred_check_branch
      %29 = sbr.rel (0) target = $region13
    $region12: #{spam_classifier_forward.1} parent=1 // pred_region
      _
    $region13: #{spam_classifier_forward.1} parent=1 // pred_fallthru
      _
    // Predicated region
    $region14: #{spam_classifier_forward.1} parent=1 // pred_check
      _
    $region15: #{spam_classifier_forward.1} parent=1 // pred_check_branch
      %31 = sbr.rel (0) target = $region17
    $region16: #{spam_classifier_forward.1} parent=1 // pred_region
      _
    $region17: #{spam_classifier_forward.1} parent=1 // pred_fallthru
      _
    // Predicated region
    $region18: #{spam_classifier_forward.1} parent=1 // pred_check
      _
    $region19: #{spam_classifier_forward.1} parent=1 // pred_check_branch
      %33 = sbr.rel (0) target = $region21
    $region20: #{spam_classifier_forward.1} parent=1 // pred_region
      _
    $region21: #{spam_classifier_forward.1} parent=1 // pred_fallthru
      _
    // Predicated region
    $region22: #{spam_classifier_forward.1} parent=1 // pred_check
      _
    $region23: #{spam_classifier_forward.1} parent=1 // pred_check_branch
      %35 = sbr.rel (0) target = $region25
    $region24: #{spam_classifier_forward.1} parent=1 // pred_region
      _
    $region25: #{spam_classifier_forward.1} parent=1 // pred_fallthru
      _
    // Predicated region
    $region26: #{spam_classifier_forward.1} parent=1 // pred_check
      _
    $region27: #{spam_classifier_forward.1} parent=1 // pred_check_branch
      %37 = sbr.rel (0) target = $region29
    $region28: #{spam_classifier_forward.1} parent=1 // pred_region
      _
    $region29: #{spam_classifier_forward.1} parent=1 // pred_fallthru
      _
    // Predicated region
    $region30: #{spam_classifier_forward.1} parent=1 // pred_check
      _
    $region31: #{spam_classifier_forward.1} parent=1 // pred_check_branch
      %39 = sbr.rel (0) target = $region33
    $region32: #{spam_classifier_forward.1} parent=1 // pred_region
      _
    $region33: #{spam_classifier_forward.1} parent=1 // pred_fallthru
      _
    // Predicated region
    $region34: #{spam_classifier_forward.1} parent=1 // pred_check
      _
    $region35: #{spam_classifier_forward.1} parent=1 // pred_check_branch
      %41 = sbr.rel (0) target = $region37
    $region36: #{spam_classifier_forward.1} parent=1 // pred_region
      %42 = dma.done [#allocation6], 16
    $region37: #{spam_classifier_forward.1} parent=1 // pred_fallthru
      _
    %43 = sfence
    %s44 = sld [smem:[#allocation5]]
    %s45 = scalar_lea.vmem %s2, %s44
    %v46 = vld [vmem:[%s45] sm:$0x1]
    %47 = vst [vmem:[#allocation2] sm:$0x1] %v46
    %s48 = sld [smem:[#allocation5 + $0x1]]
    %s49 = scalar_lea.vmem %s2, %s48
    %v50 = vld [vmem:[%s49] sm:$0x1]
    %51 = vst [vmem:[#allocation2 + $0x1] sm:$0x1] %v50
    %s52 = sld [smem:[#allocation5 + $0x2]]
    %s53 = scalar_lea.vmem %s2, %s52
    %v54 = vld [vmem:[%s53] sm:$0x1]
    %55 = vst [vmem:[#allocation2 + $0x2] sm:$0x1] %v54
    %s56 = sld [smem:[#allocation5 + $0x3]]
    %s57 = scalar_lea.vmem %s2, %s56
    %v58 = vld [vmem:[%s57] sm:$0x1]
    %59 = vst [vmem:[#allocation2 + $0x3] sm:$0x1] %v58
    %s60 = sld [smem:[#allocation5 + $0x4]]
    %s61 = scalar_lea.vmem %s2, %s60
    %v62 = vld [vmem:[%s61] sm:$0x1]
    %63 = vst [vmem:[#allocation2 + $0x4] sm:$0x1] %v62
    %s64 = sld [smem:[#allocation5 + $0x5]]
    %s65 = scalar_lea.vmem %s2, %s64
    %v66 = vld [vmem:[%s65] sm:$0x1]
    %67 = vst [vmem:[#allocation2 + $0x5] sm:$0x1] %v66
    %s68 = sld [smem:[#allocation5 + $0x6]]
    %s69 = scalar_lea.vmem %s2, %s68
    %v70 = vld [vmem:[%s69] sm:$0x1]
    %71 = vst [vmem:[#allocation2 + $0x6] sm:$0x1] %v70
    %s72 = sld [smem:[#allocation5 + $0x7]]
    %s73 = scalar_lea.vmem %s2, %s72
    %v74 = vld [vmem:[%s73] sm:$0x1]
    %75 = vst [vmem:[#allocation2 + $0x7] sm:$0x1] %v74
    %s76 = sld [smem:[#allocation5 + $0x8]]
    %s77 = scalar_lea.vmem %s2, %s76
    %v78 = vld [vmem:[%s77] sm:$0x1]
    %79 = vst [vmem:[#allocation2 + $0x8] sm:$0x1] %v78
    %s80 = sld [smem:[#allocation5 + $0x9]]
    %s81 = scalar_lea.vmem %s2, %s80
    %v82 = vld [vmem:[%s81] sm:$0x1]
    %83 = vst [vmem:[#allocation2 + $0x9] sm:$0x1] %v82
    %s84 = sld [smem:[#allocation5 + $0xa]]
    %s85 = scalar_lea.vmem %s2, %s84
    %v86 = vld [vmem:[%s85] sm:$0x1]
    %87 = vst [vmem:[#allocation2 + $0xa] sm:$0x1] %v86
    %s88 = sld [smem:[#allocation5 + $0xb]]
    %s89 = scalar_lea.vmem %s2, %s88
    %v90 = vld [vmem:[%s89] sm:$0x1]
    %91 = vst [vmem:[#allocation2 + $0xb] sm:$0x1] %v90
    %s92 = sld [smem:[#allocation5 + $0xc]]
    %s93 = scalar_lea.vmem %s2, %s92
    %v94 = vld [vmem:[%s93] sm:$0x1]
    %95 = vst [vmem:[#allocation2 + $0xc] sm:$0x1] %v94
    %s96 = sld [smem:[#allocation5 + $0xd]]
    %s97 = scalar_lea.vmem %s2, %s96
    %v98 = vld [vmem:[%s97] sm:$0x1]
    %99 = vst [vmem:[#allocation2 + $0xd] sm:$0x1] %v98
    %s100 = sld [smem:[#allocation5 + $0xe]]
    %s101 = scalar_lea.vmem %s2, %s100
    %v102 = vld [vmem:[%s101] sm:$0x1]
    %103 = vst [vmem:[#allocation2 + $0xe] sm:$0x1] %v102
    %s104 = sld [smem:[#allocation5 + $0xf]]
    %s105 = scalar_lea.vmem %s2, %s104
    %v106 = vld [vmem:[%s105] sm:$0x1]
    %107 = vst [vmem:[#allocation2 + $0xf] sm:$0x1] %v106
    %s108 = sld [smem:[#allocation5 + $0x10]]
    %s109 = scalar_lea.vmem %s2, %s108
    %v110 = vld [vmem:[%s109] sm:$0x1]
    %111 = vst [vmem:[#allocation2 + $0x10] sm:$0x1] %v110
    %s112 = sld [smem:[#allocation5 + $0x11]]
    %s113 = scalar_lea.vmem %s2, %s112
    %v114 = vld [vmem:[%s113] sm:$0x1]
    %115 = vst [vmem:[#allocation2 + $0x11] sm:$0x1] %v114
    %s116 = sld [smem:[#allocation5 + $0x12]]
    %s117 = scalar_lea.vmem %s2, %s116
    %v118 = vld [vmem:[%s117] sm:$0x1]
    %119 = vst [vmem:[#allocation2 + $0x12] sm:$0x1] %v118
    %s120 = sld [smem:[#allocation5 + $0x13]]
    %s121 = scalar_lea.vmem %s2, %s120
    %v122 = vld [vmem:[%s121] sm:$0x1]
    %123 = vst [vmem:[#allocation2 + $0x13] sm:$0x1] %v122
    %s124 = sld [smem:[#allocation5 + $0x14]]
    %s125 = scalar_lea.vmem %s2, %s124
    %v126 = vld [vmem:[%s125] sm:$0x1]
    %127 = vst [vmem:[#allocation2 + $0x14] sm:$0x1] %v126
    %s128 = sld [smem:[#allocation5 + $0x15]]
    %s129 = scalar_lea.vmem %s2, %s128
    %v130 = vld [vmem:[%s129] sm:$0x1]
    %131 = vst [vmem:[#allocation2 + $0x15] sm:$0x1] %v130
    %s132 = sld [smem:[#allocation5 + $0x16]]
    %s133 = scalar_lea.vmem %s2, %s132
    %v134 = vld [vmem:[%s133] sm:$0x1]
    %135 = vst [vmem:[#allocation2 + $0x16] sm:$0x1] %v134
    %s136 = sld [smem:[#allocation5 + $0x17]]
    %s137 = scalar_lea.vmem %s2, %s136
    %v138 = vld [vmem:[%s137] sm:$0x1]
    %139 = vst [vmem:[#allocation2 + $0x17] sm:$0x1] %v138
    %s140 = sld [smem:[#allocation5 + $0x18]]
    %s141 = scalar_lea.vmem %s2, %s140
    %v142 = vld [vmem:[%s141] sm:$0x1]
    %143 = vst [vmem:[#allocation2 + $0x18] sm:$0x1] %v142
    %s144 = sld [smem:[#allocation5 + $0x19]]
    %s145 = scalar_lea.vmem %s2, %s144
    %v146 = vld [vmem:[%s145] sm:$0x1]
    %147 = vst [vmem:[#allocation2 + $0x19] sm:$0x1] %v146
    %s148 = sld [smem:[#allocation5 + $0x1a]]
    %s149 = scalar_lea.vmem %s2, %s148
    %v150 = vld [vmem:[%s149] sm:$0x1]
    %151 = vst [vmem:[#allocation2 + $0x1a] sm:$0x1] %v150
    %s152 = sld [smem:[#allocation5 + $0x1b]]
    %s153 = scalar_lea.vmem %s2, %s152
    %v154 = vld [vmem:[%s153] sm:$0x1]
    %155 = vst [vmem:[#allocation2 + $0x1b] sm:$0x1] %v154
    %s156 = sld [smem:[#allocation5 + $0x1c]]
    %s157 = scalar_lea.vmem %s2, %s156
    %v158 = vld [vmem:[%s157] sm:$0x1]
    %159 = vst [vmem:[#allocation2 + $0x1c] sm:$0x1] %v158
    %s160 = sld [smem:[#allocation5 + $0x1d]]
    %s161 = scalar_lea.vmem %s2, %s160
    %v162 = vld [vmem:[%s161] sm:$0x1]
    %163 = vst [vmem:[#allocation2 + $0x1d] sm:$0x1] %v162
    %s164 = sld [smem:[#allocation5 + $0x1e]]
    %s165 = scalar_lea.vmem %s2, %s164
    %v166 = vld [vmem:[%s165] sm:$0x1]
    %167 = vst [vmem:[#allocation2 + $0x1e] sm:$0x1] %v166
    %s168 = sld [smem:[#allocation5 + $0x1f]]
    %s169 = scalar_lea.vmem %s2, %s168
    %v170 = vld [vmem:[%s169] sm:$0x1]
    %171 = vst [vmem:[#allocation2 + $0x1f] sm:$0x1] %v170
    %s172 = sld [smem:[#allocation5 + $0x20]]
    %s173 = scalar_lea.vmem %s2, %s172
    %v174 = vld [vmem:[%s173] sm:$0x1]
    %175 = vst [vmem:[#allocation2 + $0x20] sm:$0x1] %v174
    %s176 = sld [smem:[#allocation5 + $0x21]]
    %s177 = scalar_lea.vmem %s2, %s176
    %v178 = vld [vmem:[%s177] sm:$0x1]
    %179 = vst [vmem:[#allocation2 + $0x21] sm:$0x1] %v178
    %s180 = sld [smem:[#allocation5 + $0x22]]
    %s181 = scalar_lea.vmem %s2, %s180
    %v182 = vld [vmem:[%s181] sm:$0x1]
    %183 = vst [vmem:[#allocation2 + $0x22] sm:$0x1] %v182
    %s184 = sld [smem:[#allocation5 + $0x23]]
    %s185 = scalar_lea.vmem %s2, %s184
    %v186 = vld [vmem:[%s185] sm:$0x1]
    %187 = vst [vmem:[#allocation2 + $0x23] sm:$0x1] %v186
    %s188 = sld [smem:[#allocation5 + $0x24]]
    %s189 = scalar_lea.vmem %s2, %s188
    %v190 = vld [vmem:[%s189] sm:$0x1]
    %191 = vst [vmem:[#allocation2 + $0x24] sm:$0x1] %v190
    %s192 = sld [smem:[#allocation5 + $0x25]]
    %s193 = scalar_lea.vmem %s2, %s192
    %v194 = vld [vmem:[%s193] sm:$0x1]
    %195 = vst [vmem:[#allocation2 + $0x25] sm:$0x1] %v194
    %s196 = sld [smem:[#allocation5 + $0x26]]
    %s197 = scalar_lea.vmem %s2, %s196
    %v198 = vld [vmem:[%s197] sm:$0x1]
    %199 = vst [vmem:[#allocation2 + $0x26] sm:$0x1] %v198
    %s200 = sld [smem:[#allocation5 + $0x27]]
    %s201 = scalar_lea.vmem %s2, %s200
    %v202 = vld [vmem:[%s201] sm:$0x1]
    %203 = vst [vmem:[#allocation2 + $0x27] sm:$0x1] %v202
    %s204 = sld [smem:[#allocation5 + $0x28]]
    %s205 = scalar_lea.vmem %s2, %s204
    %v206 = vld [vmem:[%s205] sm:$0x1]
    %207 = vst [vmem:[#allocation2 + $0x28] sm:$0x1] %v206
    %s208 = sld [smem:[#allocation5 + $0x29]]
    %s209 = scalar_lea.vmem %s2, %s208
    %v210 = vld [vmem:[%s209] sm:$0x1]
    %211 = vst [vmem:[#allocation2 + $0x29] sm:$0x1] %v210
    %s212 = sld [smem:[#allocation5 + $0x2a]]
    %s213 = scalar_lea.vmem %s2, %s212
    %v214 = vld [vmem:[%s213] sm:$0x1]
    %215 = vst [vmem:[#allocation2 + $0x2a] sm:$0x1] %v214
    %s216 = sld [smem:[#allocation5 + $0x2b]]
    %s217 = scalar_lea.vmem %s2, %s216
    %v218 = vld [vmem:[%s217] sm:$0x1]
    %219 = vst [vmem:[#allocation2 + $0x2b] sm:$0x1] %v218
    %s220 = sld [smem:[#allocation5 + $0x2c]]
    %s221 = scalar_lea.vmem %s2, %s220
    %v222 = vld [vmem:[%s221] sm:$0x1]
    %223 = vst [vmem:[#allocation2 + $0x2c] sm:$0x1] %v222
    %s224 = sld [smem:[#allocation5 + $0x2d]]
    %s225 = scalar_lea.vmem %s2, %s224
    %v226 = vld [vmem:[%s225] sm:$0x1]
    %227 = vst [vmem:[#allocation2 + $0x2d] sm:$0x1] %v226
    %s228 = sld [smem:[#allocation5 + $0x2e]]
    %s229 = scalar_lea.vmem %s2, %s228
    %v230 = vld [vmem:[%s229] sm:$0x1]
    %231 = vst [vmem:[#allocation2 + $0x2e] sm:$0x1] %v230
    %s232 = sld [smem:[#allocation5 + $0x2f]]
    %s233 = scalar_lea.vmem %s2, %s232
    %v234 = vld [vmem:[%s233] sm:$0x1]
    %235 = vst [vmem:[#allocation2 + $0x2f] sm:$0x1] %v234
    %s236 = sld [smem:[#allocation5 + $0x30]]
    %s237 = scalar_lea.vmem %s2, %s236
    %v238 = vld [vmem:[%s237] sm:$0x1]
    %239 = vst [vmem:[#allocation2 + $0x30] sm:$0x1] %v238
    %s240 = sld [smem:[#allocation5 + $0x31]]
    %s241 = scalar_lea.vmem %s2, %s240
    %v242 = vld [vmem:[%s241] sm:$0x1]
    %243 = vst [vmem:[#allocation2 + $0x31] sm:$0x1] %v242
    %s244 = sld [smem:[#allocation5 + $0x32]]
    %s245 = scalar_lea.vmem %s2, %s244
    %v246 = vld [vmem:[%s245] sm:$0x1]
    %247 = vst [vmem:[#allocation2 + $0x32] sm:$0x1] %v246
    %s248 = sld [smem:[#allocation5 + $0x33]]
    %s249 = scalar_lea.vmem %s2, %s248
    %v250 = vld [vmem:[%s249] sm:$0x1]
    %251 = vst [vmem:[#allocation2 + $0x33] sm:$0x1] %v250
    %s252 = sld [smem:[#allocation5 + $0x34]]
    %s253 = scalar_lea.vmem %s2, %s252
    %v254 = vld [vmem:[%s253] sm:$0x1]
    %255 = vst [vmem:[#allocation2 + $0x34] sm:$0x1] %v254
    %s256 = sld [smem:[#allocation5 + $0x35]]
    %s257 = scalar_lea.vmem %s2, %s256
    %v258 = vld [vmem:[%s257] sm:$0x1]
    %259 = vst [vmem:[#allocation2 + $0x35] sm:$0x1] %v258
    %s260 = sld [smem:[#allocation5 + $0x36]]
    %s261 = scalar_lea.vmem %s2, %s260
    %v262 = vld [vmem:[%s261] sm:$0x1]
    %263 = vst [vmem:[#allocation2 + $0x36] sm:$0x1] %v262
    %s264 = sld [smem:[#allocation5 + $0x37]]
    %s265 = scalar_lea.vmem %s2, %s264
    %v266 = vld [vmem:[%s265] sm:$0x1]
    %267 = vst [vmem:[#allocation2 + $0x37] sm:$0x1] %v266
    %s268 = sld [smem:[#allocation5 + $0x38]]
    %s269 = scalar_lea.vmem %s2, %s268
    %v270 = vld [vmem:[%s269] sm:$0x1]
    %271 = vst [vmem:[#allocation2 + $0x38] sm:$0x1] %v270
    %s272 = sld [smem:[#allocation5 + $0x39]]
    %s273 = scalar_lea.vmem %s2, %s272
    %v274 = vld [vmem:[%s273] sm:$0x1]
    %275 = vst [vmem:[#allocation2 + $0x39] sm:$0x1] %v274
    %s276 = sld [smem:[#allocation5 + $0x3a]]
    %s277 = scalar_lea.vmem %s2, %s276
    %v278 = vld [vmem:[%s277] sm:$0x1]
    %279 = vst [vmem:[#allocation2 + $0x3a] sm:$0x1] %v278
    %s280 = sld [smem:[#allocation5 + $0x3b]]
    %s281 = scalar_lea.vmem %s2, %s280
    %v282 = vld [vmem:[%s281] sm:$0x1]
    %283 = vst [vmem:[#allocation2 + $0x3b] sm:$0x1] %v282
    %s284 = sld [smem:[#allocation5 + $0x3c]]
    %s285 = scalar_lea.vmem %s2, %s284
    %v286 = vld [vmem:[%s285] sm:$0x1]
    %287 = vst [vmem:[#allocation2 + $0x3c] sm:$0x1] %v286
    %s288 = sld [smem:[#allocation5 + $0x3d]]
    %s289 = scalar_lea.vmem %s2, %s288
    %v290 = vld [vmem:[%s289] sm:$0x1]
    %291 = vst [vmem:[#allocation2 + $0x3d] sm:$0x1] %v290
    %s292 = sld [smem:[#allocation5 + $0x3e]]
    %s293 = scalar_lea.vmem %s2, %s292
    %v294 = vld [vmem:[%s293] sm:$0x1]
    %295 = vst [vmem:[#allocation2 + $0x3e] sm:$0x1] %v294
    %s296 = sld [smem:[#allocation5 + $0x3f]]
    %s297 = scalar_lea.vmem %s2, %s296
    %v298 = vld [vmem:[%s297] sm:$0x1]
    %299 = vst [vmem:[#allocation2 + $0x3f] sm:$0x1] %v298
    %v300 = vld [vmem:[#allocation2] sm:$0xff]
    %v301 = vld [vmem:[#allocation2 + $0x8] sm:$0xff]
    %v302 = vld [vmem:[#allocation2 + $0x10] sm:$0xff]
    %v303 = vld [vmem:[#allocation2 + $0x18] sm:$0xff]
    %v304 = vld [vmem:[#allocation2 + $0x20] sm:$0xff]
    %v305 = vld [vmem:[#allocation2 + $0x28] sm:$0xff]
    %v306 = vld [vmem:[#allocation2 + $0x30] sm:$0xff]
    %v307 = vld [vmem:[#allocation2 + $0x38] sm:$0xff]
    %v308 = vld [vmem:[%s3] sm:$0xff]
    %v309 = vld [vmem:[%s3 + $0x8] sm:$0xff]
    %v310 = vld [vmem:[%s3 + $0x10] sm:$0xff]
    %v311 = vld [vmem:[%s3 + $0x18] sm:$0xff]
    %v312 = vld [vmem:[%s3 + $0x20] sm:$0xff]
    %v313 = vld [vmem:[%s3 + $0x28] sm:$0xff]
    %v314 = vld [vmem:[%s3 + $0x30] sm:$0xff]
    %v315 = vld [vmem:[%s3 + $0x38] sm:$0xff]
    %v316 = vld [vmem:[%s3 + $0x40] sm:$0xff]
    %v317 = vld [vmem:[%s3 + $0x48] sm:$0xff]
    %v318 = vld [vmem:[%s3 + $0x50] sm:$0xff]
    %v319 = vld [vmem:[%s3 + $0x58] sm:$0xff]
    %v320 = vld [vmem:[%s3 + $0x60] sm:$0xff]
    %v321 = vld [vmem:[%s3 + $0x68] sm:$0xff]
    %v322 = vld [vmem:[%s3 + $0x70] sm:$0xff]
    %v323 = vld [vmem:[%s3 + $0x78] sm:$0xff]
    %v324 = vld [vmem:[%s3 + $0x80] sm:$0xff]
    %v325 = vld [vmem:[%s3 + $0x88] sm:$0xff]
    %v326 = vld [vmem:[%s3 + $0x90] sm:$0xff]
    %v327 = vld [vmem:[%s3 + $0x98] sm:$0xff]
    %v328 = vld [vmem:[%s3 + $0xa0] sm:$0xff]
    %v329 = vld [vmem:[%s3 + $0xa8] sm:$0xff]
    %v330 = vld [vmem:[%s3 + $0xb0] sm:$0xff]
    %v331 = vld [vmem:[%s3 + $0xb8] sm:$0xff]
    %v332 = vld [vmem:[%s3 + $0xc0] sm:$0xff]
    %v333 = vld [vmem:[%s3 + $0xc8] sm:$0xff]
    %v334 = vld [vmem:[%s3 + $0xd0] sm:$0xff]
    %v335 = vld [vmem:[%s3 + $0xd8] sm:$0xff]
    %v336 = vld [vmem:[%s3 + $0xe0] sm:$0xff]
    %v337 = vld [vmem:[%s3 + $0xe8] sm:$0xff]
    %v338 = vld [vmem:[%s3 + $0xf0] sm:$0xff]
    %v339 = vld [vmem:[%s3 + $0xf8] sm:$0xff]
    %v340 = vld [vmem:[%s3 + $0x100] sm:$0xff]
    %v341 = vld [vmem:[%s3 + $0x108] sm:$0xff]
    %v342 = vld [vmem:[%s3 + $0x110] sm:$0xff]
    %v343 = vld [vmem:[%s3 + $0x118] sm:$0xff]
    %v344 = vld [vmem:[%s3 + $0x120] sm:$0xff]
    %v345 = vld [vmem:[%s3 + $0x128] sm:$0xff]
    %v346 = vld [vmem:[%s3 + $0x130] sm:$0xff]
    %v347 = vld [vmem:[%s3 + $0x138] sm:$0xff]
    %v348 = vld [vmem:[%s3 + $0x140] sm:$0xff]
    %v349 = vld [vmem:[%s3 + $0x148] sm:$0xff]
    %v350 = vld [vmem:[%s3 + $0x150] sm:$0xff]
    %v351 = vld [vmem:[%s3 + $0x158] sm:$0xff]
    %v352 = vld [vmem:[%s3 + $0x160] sm:$0xff]
    %v353 = vld [vmem:[%s3 + $0x168] sm:$0xff]
    %v354 = vld [vmem:[%s3 + $0x170] sm:$0xff]
    %v355 = vld [vmem:[%s3 + $0x178] sm:$0xff]
    %v356 = vld [vmem:[%s3 + $0x180] sm:$0xff]
    %v357 = vld [vmem:[%s3 + $0x188] sm:$0xff]
    %v358 = vld [vmem:[%s3 + $0x190] sm:$0xff]
    %v359 = vld [vmem:[%s3 + $0x198] sm:$0xff]
    %v360 = vld [vmem:[%s3 + $0x1a0] sm:$0xff]
    %v361 = vld [vmem:[%s3 + $0x1a8] sm:$0xff]
    %v362 = vld [vmem:[%s3 + $0x1b0] sm:$0xff]
    %v363 = vld [vmem:[%s3 + $0x1b8] sm:$0xff]
    %v364 = vld [vmem:[%s3 + $0x1c0] sm:$0xff]
    %v365 = vld [vmem:[%s3 + $0x1c8] sm:$0xff]
    %v366 = vld [vmem:[%s3 + $0x1d0] sm:$0xff]
    %v367 = vld [vmem:[%s3 + $0x1d8] sm:$0xff]
    %v368 = vld [vmem:[%s3 + $0x1e0] sm:$0xff]
    %v369 = vld [vmem:[%s3 + $0x1e8] sm:$0xff]
    %v370 = vld [vmem:[%s3 + $0x1f0] sm:$0xff]
    %v371 = vld [vmem:[%s3 + $0x1f8] sm:$0xff]
    %v372 = vld [vmem:[%s5] sm:$0xf]
    %v374 = vlaneseq
    %v375 = vshrl.u32 %v374, 7
    %v376 = vsub.s32 0, %v375
    %v377 = vrot.slane %v372, %v376
    %v378 = vlaneseq
    %v379 = vshrl.u32 %v378, 7
    %v380 = vsub.s32 1, %v379
    %v381 = vrot.slane %v372, %v380
    %v382 = vlaneseq
    %v383 = vshrl.u32 %v382, 7
    %v384 = vsub.s32 2, %v383
    %v385 = vrot.slane %v372, %v384
    %v386 = vlaneseq
    %v387 = vshrl.u32 %v386, 7
    %v388 = vsub.s32 3, %v387
    %v389 = vrot.slane %v372, %v388
    %394 = vmatprep.subr.mxu0 %v309
    %395 = vmatpush1.msra.mxu0 %v308
    %396 = vmatprep.subr.mxu0 %v313
    %397 = vmatpush1.msra.mxu0 %v312
    %398 = vmatprep.subr.mxu0 %v317
    %399 = vmatpush1.msra.mxu0 %v316
    %400 = vmatprep.subr.mxu0 %v321
    %401 = vmatpush1.msra.mxu0 %v320
    %402 = vmatprep.subr.mxu0 %v325
    %403 = vmatpush1.msra.mxu0 %v324
    %404 = vmatprep.subr.mxu0 %v329
    %405 = vmatpush1.msra.mxu0 %v328
    %406 = vmatprep.subr.mxu0 %v333
    %407 = vmatpush1.msra.mxu0 %v332
    %408 = vmatprep.subr.mxu0 %v337
    %409 = vmatpush1.msra.mxu0 %v336
    %410 = vmatprep.subr.mxu0 %v341
    %411 = vmatpush1.msra.mxu0 %v340
    %412 = vmatprep.subr.mxu0 %v345
    %413 = vmatpush1.msra.mxu0 %v344
    %414 = vmatprep.subr.mxu0 %v349
    %415 = vmatpush1.msra.mxu0 %v348
    %416 = vmatprep.subr.mxu0 %v353
    %417 = vmatpush1.msra.mxu0 %v352
    %418 = vmatprep.subr.mxu0 %v357
    %419 = vmatpush1.msra.mxu0 %v356
    %420 = vmatprep.subr.mxu0 %v361
    %421 = vmatpush1.msra.mxu0 %v360
    %422 = vmatprep.subr.mxu0 %v365
    %423 = vmatpush1.msra.mxu0 %v364
    %424 = vmatprep.subr.mxu0 %v369
    %425 = vmatpush1.msra.mxu0 %v368
    %426 = vmatprep.subr.mxu0 0.0
    %427 = vmatpush1.msra.mxu0 0.0
    %428 = vmatprep.subr.mxu0 0.0
    %429 = vmatpush1.msra.mxu0 0.0
    %430 = vmatprep.subr.mxu0 0.0
    %431 = vmatpush1.msra.mxu0 0.0
    %432 = vmatprep.subr.mxu0 0.0
    %433 = vmatpush1.msra.mxu0 0.0
    %434 = vmatprep.subr.mxu0 0.0
    %435 = vmatpush1.msra.mxu0 0.0
    %436 = vmatprep.subr.mxu0 0.0
    %437 = vmatpush1.msra.mxu0 0.0
    %438 = vmatprep.subr.mxu0 0.0
    %439 = vmatpush1.msra.mxu0 0.0
    %440 = vmatprep.subr.mxu0 0.0
    %441 = vmatpush1.msra.mxu0 0.0
    %442 = vmatprep.subr.mxu0 0.0
    %443 = vmatpush1.msra.mxu0 0.0
    %444 = vmatprep.subr.mxu0 0.0
    %445 = vmatpush1.msra.mxu0 0.0
    %446 = vmatprep.subr.mxu0 0.0
    %447 = vmatpush1.msra.mxu0 0.0
    %448 = vmatprep.subr.mxu0 0.0
    %449 = vmatpush1.msra.mxu0 0.0
    %450 = vmatprep.subr.mxu0 0.0
    %451 = vmatpush1.msra.mxu0 0.0
    %452 = vmatprep.subr.mxu0 0.0
    %453 = vmatpush1.msra.mxu0 0.0
    %454 = vmatprep.subr.mxu0 0.0
    %455 = vmatpush1.msra.mxu0 0.0
    %456 = vmatprep.subr.mxu0 0.0
    %457 = vmatpush1.msra.mxu0 0.0
    %458 = vmatprep.mubr.f32.mxu0 0.0
    %459 = vmatmul.mubr.f32.gmra.mrb[0].mxu0 %v300
    %v460 = vpop.f32.mrb[0].mxu0
    %v461 = vadd.f32 %v377, %v460
    %v462 = vpop.f32.mrb[0].mxu0
    %v463 = vadd.f32 %v381, %v462
    %464 = vmatprep.mubr.f32.mxu0 0.0
    %465 = vmatmul.mubr.f32.gmra.mrb[0].mxu0 %v301
    %v466 = vpop.f32.mrb[0].mxu0
    %v467 = vadd.f32 %v377, %v466
    %v468 = vpop.f32.mrb[0].mxu0
    %v469 = vadd.f32 %v381, %v468
    %470 = vmatprep.mubr.f32.mxu0 0.0
    %471 = vmatmul.mubr.f32.gmra.mrb[0].mxu0 %v302
    %v472 = vpop.f32.mrb[0].mxu0
    %v473 = vadd.f32 %v377, %v472
    %v474 = vpop.f32.mrb[0].mxu0
    %v475 = vadd.f32 %v381, %v474
    %476 = vmatprep.mubr.f32.mxu0 0.0
    %477 = vmatmul.mubr.f32.gmra.mrb[0].mxu0 %v303
    %v478 = vpop.f32.mrb[0].mxu0
    %v479 = vadd.f32 %v377, %v478
    %v480 = vpop.f32.mrb[0].mxu0
    %v481 = vadd.f32 %v381, %v480
    %482 = vmatprep.mubr.f32.mxu0 0.0
    %483 = vmatmul.mubr.f32.gmra.mrb[0].mxu0 %v304
    %v484 = vpop.f32.mrb[0].mxu0
    %v485 = vadd.f32 %v377, %v484
    %v486 = vpop.f32.mrb[0].mxu0
    %v487 = vadd.f32 %v381, %v486
    %488 = vmatprep.mubr.f32.mxu0 0.0
    %489 = vmatmul.mubr.f32.gmra.mrb[0].mxu0 %v305
    %v490 = vpop.f32.mrb[0].mxu0
    %v491 = vadd.f32 %v377, %v490
    %v492 = vpop.f32.mrb[0].mxu0
    %v493 = vadd.f32 %v381, %v492
    %494 = vmatprep.mubr.f32.mxu0 0.0
    %495 = vmatmul.mubr.f32.gmra.mrb[0].mxu0 %v306
    %v496 = vpop.f32.mrb[0].mxu0
    %v497 = vadd.f32 %v377, %v496
    %v498 = vpop.f32.mrb[0].mxu0
    %v499 = vadd.f32 %v381, %v498
    %500 = vmatprep.mubr.f32.mxu0 0.0
    %501 = vmatmul.mubr.f32.gmra.mrb[0].mxu0 %v307
    %v502 = vpop.f32.mrb[0].mxu0
    %v503 = vadd.f32 %v377, %v502
    %v504 = vpop.f32.mrb[0].mxu0
    %v505 = vadd.f32 %v381, %v504
    %506 = vdwg.mxu0
    %507 = vmatprep.subr.mxu0 %v311
    %508 = vmatpush1.msra.mxu0 %v310
    %509 = vmatprep.subr.mxu0 %v315
    %510 = vmatpush1.msra.mxu0 %v314
    %511 = vmatprep.subr.mxu0 %v319
    %512 = vmatpush1.msra.mxu0 %v318
    %513 = vmatprep.subr.mxu0 %v323
    %514 = vmatpush1.msra.mxu0 %v322
    %515 = vmatprep.subr.mxu0 %v327
    %516 = vmatpush1.msra.mxu0 %v326
    %517 = vmatprep.subr.mxu0 %v331
    %518 = vmatpush1.msra.mxu0 %v330
    %519 = vmatprep.subr.mxu0 %v335
    %520 = vmatpush1.msra.mxu0 %v334
    %521 = vmatprep.subr.mxu0 %v339
    %522 = vmatpush1.msra.mxu0 %v338
    %523 = vmatprep.subr.mxu0 %v343
    %524 = vmatpush1.msra.mxu0 %v342
    %525 = vmatprep.subr.mxu0 %v347
    %526 = vmatpush1.msra.mxu0 %v346
    %527 = vmatprep.subr.mxu0 %v351
    %528 = vmatpush1.msra.mxu0 %v350
    %529 = vmatprep.subr.mxu0 %v355
    %530 = vmatpush1.msra.mxu0 %v354
    %531 = vmatprep.subr.mxu0 %v359
    %532 = vmatpush1.msra.mxu0 %v358
    %533 = vmatprep.subr.mxu0 %v363
    %534 = vmatpush1.msra.mxu0 %v362
    %535 = vmatprep.subr.mxu0 %v367
    %536 = vmatpush1.msra.mxu0 %v366
    %537 = vmatprep.subr.mxu0 %v371
    %538 = vmatpush1.msra.mxu0 %v370
    %539 = vmatprep.subr.mxu0 0.0
    %540 = vmatpush1.msra.mxu0 0.0
    %541 = vmatprep.subr.mxu0 0.0
    %542 = vmatpush1.msra.mxu0 0.0
    %543 = vmatprep.subr.mxu0 0.0
    %544 = vmatpush1.msra.mxu0 0.0
    %545 = vmatprep.subr.mxu0 0.0
    %546 = vmatpush1.msra.mxu0 0.0
    %547 = vmatprep.subr.mxu0 0.0
    %548 = vmatpush1.msra.mxu0 0.0
    %549 = vmatprep.subr.mxu0 0.0
    %550 = vmatpush1.msra.mxu0 0.0
    %551 = vmatprep.subr.mxu0 0.0
    %552 = vmatpush1.msra.mxu0 0.0
    %553 = vmatprep.subr.mxu0 0.0
    %554 = vmatpush1.msra.mxu0 0.0
    %555 = vmatprep.subr.mxu0 0.0
    %556 = vmatpush1.msra.mxu0 0.0
    %557 = vmatprep.subr.mxu0 0.0
    %558 = vmatpush1.msra.mxu0 0.0
    %559 = vmatprep.subr.mxu0 0.0
    %560 = vmatpush1.msra.mxu0 0.0
    %561 = vmatprep.subr.mxu0 0.0
    %562 = vmatpush1.msra.mxu0 0.0
    %563 = vmatprep.subr.mxu0 0.0
    %564 = vmatpush1.msra.mxu0 0.0
    %565 = vmatprep.subr.mxu0 0.0
    %566 = vmatpush1.msra.mxu0 0.0
    %567 = vmatprep.subr.mxu0 0.0
    %568 = vmatpush1.msra.mxu0 0.0
    %569 = vmatprep.subr.mxu0 0.0
    %570 = vmatpush1.msra.mxu0 0.0
    %571 = vmatprep.mubr.f32.mxu0 0.0
    %572 = vmatmul.mubr.f32.gmra.mrb[0].mxu0 %v300
    %v573 = vpop.f32.mrb[0].mxu0
    %v574 = vadd.f32 %v385, %v573
    %v575 = vpop.f32.mrb[0].mxu0
    %v576 = vadd.f32 %v389, %v575
    %577 = vmatprep.mubr.f32.mxu0 0.0
    %578 = vmatmul.mubr.f32.gmra.mrb[0].mxu0 %v301
    %v579 = vpop.f32.mrb[0].mxu0
    %v580 = vadd.f32 %v385, %v579
    %v581 = vpop.f32.mrb[0].mxu0
    %v582 = vadd.f32 %v389, %v581
    %583 = vmatprep.mubr.f32.mxu0 0.0
    %584 = vmatmul.mubr.f32.gmra.mrb[0].mxu0 %v302
    %v585 = vpop.f32.mrb[0].mxu0
    %v586 = vadd.f32 %v385, %v585
    %v587 = vpop.f32.mrb[0].mxu0
    %v588 = vadd.f32 %v389, %v587
    %589 = vmatprep.mubr.f32.mxu0 0.0
    %590 = vmatmul.mubr.f32.gmra.mrb[0].mxu0 %v303
    %v591 = vpop.f32.mrb[0].mxu0
    %v592 = vadd.f32 %v385, %v591
    %v593 = vpop.f32.mrb[0].mxu0
    %v594 = vadd.f32 %v389, %v593
    %595 = vmatprep.mubr.f32.mxu0 0.0
    %596 = vmatmul.mubr.f32.gmra.mrb[0].mxu0 %v304
    %v597 = vpop.f32.mrb[0].mxu0
    %v598 = vadd.f32 %v385, %v597
    %v599 = vpop.f32.mrb[0].mxu0
    %v600 = vadd.f32 %v389, %v599
    %601 = vmatprep.mubr.f32.mxu0 0.0
    %602 = vmatmul.mubr.f32.gmra.mrb[0].mxu0 %v305
    %v603 = vpop.f32.mrb[0].mxu0
    %v604 = vadd.f32 %v385, %v603
    %v605 = vpop.f32.mrb[0].mxu0
    %v606 = vadd.f32 %v389, %v605
    %607 = vmatprep.mubr.f32.mxu0 0.0
    %608 = vmatmul.mubr.f32.gmra.mrb[0].mxu0 %v306
    %v609 = vpop.f32.mrb[0].mxu0
    %v610 = vadd.f32 %v385, %v609
    %v611 = vpop.f32.mrb[0].mxu0
    %v612 = vadd.f32 %v389, %v611
    %613 = vmatprep.mubr.f32.mxu0 0.0
    %614 = vmatmul.mubr.f32.gmra.mrb[0].mxu0 %v307
    %v615 = vpop.f32.mrb[0].mxu0
    %v616 = vadd.f32 %v385, %v615
    %v617 = vpop.f32.mrb[0].mxu0
    %v618 = vadd.f32 %v389, %v617
    %619 = vdwg.mxu0
    %620 = vst [vmem:[#allocation3] sm:$0xff] %v461
    %621 = vst [vmem:[#allocation3 + $0x8] sm:$0xff] %v463
    %622 = vst [vmem:[#allocation3 + $0x10] sm:$0xff] %v574
    %623 = vst [vmem:[#allocation3 + $0x18] sm:$0xff] %v576
    %624 = vst [vmem:[#allocation3 + $0x20] sm:$0xff] %v467
    %625 = vst [vmem:[#allocation3 + $0x28] sm:$0xff] %v469
    %626 = vst [vmem:[#allocation3 + $0x30] sm:$0xff] %v580
    %627 = vst [vmem:[#allocation3 + $0x38] sm:$0xff] %v582
    %628 = vst [vmem:[#allocation3 + $0x40] sm:$0xff] %v473
    %629 = vst [vmem:[#allocation3 + $0x48] sm:$0xff] %v475
    %630 = vst [vmem:[#allocation3 + $0x50] sm:$0xff] %v586
    %631 = vst [vmem:[#allocation3 + $0x58] sm:$0xff] %v588
    %632 = vst [vmem:[#allocation3 + $0x60] sm:$0xff] %v479
    %633 = vst [vmem:[#allocation3 + $0x68] sm:$0xff] %v481
    %634 = vst [vmem:[#allocation3 + $0x70] sm:$0xff] %v592
    %635 = vst [vmem:[#allocation3 + $0x78] sm:$0xff] %v594
    %636 = vst [vmem:[#allocation3 + $0x80] sm:$0xff] %v485
    %637 = vst [vmem:[#allocation3 + $0x88] sm:$0xff] %v487
    %638 = vst [vmem:[#allocation3 + $0x90] sm:$0xff] %v598
    %639 = vst [vmem:[#allocation3 + $0x98] sm:$0xff] %v600
    %640 = vst [vmem:[#allocation3 + $0xa0] sm:$0xff] %v491
    %641 = vst [vmem:[#allocation3 + $0xa8] sm:$0xff] %v493
    %642 = vst [vmem:[#allocation3 + $0xb0] sm:$0xff] %v604
    %643 = vst [vmem:[#allocation3 + $0xb8] sm:$0xff] %v606
    %644 = vst [vmem:[#allocation3 + $0xc0] sm:$0xff] %v497
    %645 = vst [vmem:[#allocation3 + $0xc8] sm:$0xff] %v499
    %646 = vst [vmem:[#allocation3 + $0xd0] sm:$0xff] %v610
    %647 = vst [vmem:[#allocation3 + $0xd8] sm:$0xff] %v612
    %648 = vst [vmem:[#allocation3 + $0xe0] sm:$0xff] %v503
    %649 = vst [vmem:[#allocation3 + $0xe8] sm:$0xff] %v505
    %650 = vst [vmem:[#allocation3 + $0xf0] sm:$0xff] %v616
    %651 = vst [vmem:[#allocation3 + $0xf8] sm:$0xff] %v618
    %v652 = vld [vmem:[%s1] sm:$0xff]
    %v653 = vld [vmem:[#allocation3] sm:$0xff]
    %v654 = vld [vmem:[#allocation3 + $0x8] sm:$0xff]
    %v655 = vld [vmem:[#allocation3 + $0x10] sm:$0xff]
    %v656 = vld [vmem:[#allocation3 + $0x18] sm:$0xff]
    %v657 = vld [vmem:[%s4] sm:$0xff]
    %v658 = vld [vmem:[%s4 + $0x8] sm:$0xff]
    %v659 = vld [vmem:[%s4 + $0x10] sm:$0xff]
    %v660 = vld [vmem:[%s4 + $0x18] sm:$0xff]
    %v661 = vld [vmem:[%s4 + $0x20] sm:$0xff]
    %v662 = vld [vmem:[%s4 + $0x28] sm:$0xff]
    %v663 = vld [vmem:[%s4 + $0x30] sm:$0xff]
    %v664 = vld [vmem:[%s4 + $0x38] sm:$0xff]
    %v665 = vld [vmem:[%s4 + $0x40] sm:$0xff]
    %v666 = vld [vmem:[%s4 + $0x48] sm:$0xff]
    %v667 = vld [vmem:[%s4 + $0x50] sm:$0xff]
    %v668 = vld [vmem:[%s4 + $0x58] sm:$0xff]
    %v669 = vld [vmem:[%s4 + $0x60] sm:$0xff]
    %v670 = vld [vmem:[%s4 + $0x68] sm:$0xff]
    %v671 = vld [vmem:[%s4 + $0x70] sm:$0xff]
    %v672 = vld [vmem:[%s4 + $0x78] sm:$0xff]
    %v673 = vld [vmem:[%s4 + $0x80] sm:$0xff]
    %v674 = vld [vmem:[%s4 + $0x88] sm:$0xff]
    %v675 = vld [vmem:[%s4 + $0x90] sm:$0xff]
    %v676 = vld [vmem:[%s4 + $0x98] sm:$0xff]
    %v677 = vld [vmem:[%s4 + $0xa0] sm:$0xff]
    %v678 = vld [vmem:[%s4 + $0xa8] sm:$0xff]
    %v679 = vld [vmem:[%s4 + $0xb0] sm:$0xff]
    %v680 = vld [vmem:[%s4 + $0xb8] sm:$0xff]
    %v681 = vld [vmem:[%s4 + $0xc0] sm:$0xff]
    %v682 = vld [vmem:[%s4 + $0xc8] sm:$0xff]
    %v683 = vld [vmem:[%s4 + $0xd0] sm:$0xff]
    %v684 = vld [vmem:[%s4 + $0xd8] sm:$0xff]
    %v685 = vld [vmem:[%s4 + $0xe0] sm:$0xff]
    %v686 = vld [vmem:[%s4 + $0xe8] sm:$0xff]
    %v687 = vld [vmem:[%s4 + $0xf0] sm:$0xff]
    %v688 = vld [vmem:[%s4 + $0xf8] sm:$0xff]
    %v689 = vld [vmem:[%s4 + $0x100] sm:$0xff]
    %v690 = vld [vmem:[%s4 + $0x108] sm:$0xff]
    %v691 = vld [vmem:[%s4 + $0x110] sm:$0xff]
    %v692 = vld [vmem:[%s4 + $0x118] sm:$0xff]
    %v693 = vld [vmem:[%s4 + $0x120] sm:$0xff]
    %v694 = vld [vmem:[%s4 + $0x128] sm:$0xff]
    %v695 = vld [vmem:[%s4 + $0x130] sm:$0xff]
    %v696 = vld [vmem:[%s4 + $0x138] sm:$0xff]
    %v697 = vld [vmem:[%s4 + $0x140] sm:$0xff]
    %v698 = vld [vmem:[%s4 + $0x148] sm:$0xff]
    %v699 = vld [vmem:[%s4 + $0x150] sm:$0xff]
    %v700 = vld [vmem:[%s4 + $0x158] sm:$0xff]
    %v701 = vld [vmem:[%s4 + $0x160] sm:$0xff]
    %v702 = vld [vmem:[%s4 + $0x168] sm:$0xff]
    %v703 = vld [vmem:[%s4 + $0x170] sm:$0xff]
    %v704 = vld [vmem:[%s4 + $0x178] sm:$0xff]
    %v705 = vld [vmem:[%s4 + $0x180] sm:$0xff]
    %v706 = vld [vmem:[%s4 + $0x188] sm:$0xff]
    %v707 = vld [vmem:[%s4 + $0x190] sm:$0xff]
    %v708 = vld [vmem:[%s4 + $0x198] sm:$0xff]
    %v709 = vld [vmem:[%s4 + $0x1a0] sm:$0xff]
    %v710 = vld [vmem:[%s4 + $0x1a8] sm:$0xff]
    %v711 = vld [vmem:[%s4 + $0x1b0] sm:$0xff]
    %v712 = vld [vmem:[%s4 + $0x1b8] sm:$0xff]
    %v713 = vld [vmem:[%s4 + $0x1c0] sm:$0xff]
    %v714 = vld [vmem:[%s4 + $0x1c8] sm:$0xff]
    %v715 = vld [vmem:[%s4 + $0x1d0] sm:$0xff]
    %v716 = vld [vmem:[%s4 + $0x1d8] sm:$0xff]
    %v717 = vld [vmem:[%s4 + $0x1e0] sm:$0xff]
    %v718 = vld [vmem:[%s4 + $0x1e8] sm:$0xff]
    %v719 = vld [vmem:[%s4 + $0x1f0] sm:$0xff]
    %v720 = vld [vmem:[%s4 + $0x1f8] sm:$0xff]
    %721 = vmatprep.subr.mxu0 %v658
    %722 = vmatpush1.msra.mxu0 %v657
    %723 = vmatprep.subr.mxu0 %v662
    %724 = vmatpush1.msra.mxu0 %v661
    %725 = vmatprep.subr.mxu0 %v666
    %726 = vmatpush1.msra.mxu0 %v665
    %727 = vmatprep.subr.mxu0 %v670
    %728 = vmatpush1.msra.mxu0 %v669
    %729 = vmatprep.subr.mxu0 %v674
    %730 = vmatpush1.msra.mxu0 %v673
    %731 = vmatprep.subr.mxu0 %v678
    %732 = vmatpush1.msra.mxu0 %v677
    %733 = vmatprep.subr.mxu0 %v682
    %734 = vmatpush1.msra.mxu0 %v681
    %735 = vmatprep.subr.mxu0 %v686
    %736 = vmatpush1.msra.mxu0 %v685
    %737 = vmatprep.subr.mxu0 %v690
    %738 = vmatpush1.msra.mxu0 %v689
    %739 = vmatprep.subr.mxu0 %v694
    %740 = vmatpush1.msra.mxu0 %v693
    %741 = vmatprep.subr.mxu0 %v698
    %742 = vmatpush1.msra.mxu0 %v697
    %743 = vmatprep.subr.mxu0 %v702
    %744 = vmatpush1.msra.mxu0 %v701
    %745 = vmatprep.subr.mxu0 %v706
    %746 = vmatpush1.msra.mxu0 %v705
    %747 = vmatprep.subr.mxu0 %v710
    %748 = vmatpush1.msra.mxu0 %v709
    %749 = vmatprep.subr.mxu0 %v714
    %750 = vmatpush1.msra.mxu0 %v713
    %751 = vmatprep.subr.mxu0 %v718
    %752 = vmatpush1.msra.mxu0 %v717
    %753 = vmatprep.subr.mxu0 0.0
    %754 = vmatpush1.msra.mxu0 0.0
    %755 = vmatprep.subr.mxu0 0.0
    %756 = vmatpush1.msra.mxu0 0.0
    %757 = vmatprep.subr.mxu0 0.0
    %758 = vmatpush1.msra.mxu0 0.0
    %759 = vmatprep.subr.mxu0 0.0
    %760 = vmatpush1.msra.mxu0 0.0
    %761 = vmatprep.subr.mxu0 0.0
    %762 = vmatpush1.msra.mxu0 0.0
    %763 = vmatprep.subr.mxu0 0.0
    %764 = vmatpush1.msra.mxu0 0.0
    %765 = vmatprep.subr.mxu0 0.0
    %766 = vmatpush1.msra.mxu0 0.0
    %767 = vmatprep.subr.mxu0 0.0
    %768 = vmatpush1.msra.mxu0 0.0
    %769 = vmatprep.subr.mxu0 0.0
    %770 = vmatpush1.msra.mxu0 0.0
    %771 = vmatprep.subr.mxu0 0.0
    %772 = vmatpush1.msra.mxu0 0.0
    %773 = vmatprep.subr.mxu0 0.0
    %774 = vmatpush1.msra.mxu0 0.0
    %775 = vmatprep.subr.mxu0 0.0
    %776 = vmatpush1.msra.mxu0 0.0
    %777 = vmatprep.subr.mxu0 0.0
    %778 = vmatpush1.msra.mxu0 0.0
    %779 = vmatprep.subr.mxu0 0.0
    %780 = vmatpush1.msra.mxu0 0.0
    %781 = vmatprep.subr.mxu0 0.0
    %782 = vmatpush1.msra.mxu0 0.0
    %783 = vmatprep.subr.mxu0 0.0
    %784 = vmatpush1.msra.mxu0 0.0
    %785 = vmatprep.mubr.f32.mxu0 0.0
    %786 = vmatmul.mubr.f32.gmra.mrb[0].mxu0 0.0
    %v787 = vpop.f32.mrb[0].mxu0
    %v788 = vadd.f32 0.0, %v787
    %v789 = vpop.f32.mrb[0].mxu0
    %v790 = vadd.f32 0.0, %v789
    %791 = vdwg.mxu0
    %792 = vmatprep.subr.mxu0 %v660
    %793 = vmatpush1.msra.mxu0 %v659
    %794 = vmatprep.subr.mxu0 %v664
    %795 = vmatpush1.msra.mxu0 %v663
    %796 = vmatprep.subr.mxu0 %v668
    %797 = vmatpush1.msra.mxu0 %v667
    %798 = vmatprep.subr.mxu0 %v672
    %799 = vmatpush1.msra.mxu0 %v671
    %800 = vmatprep.subr.mxu0 %v676
    %801 = vmatpush1.msra.mxu0 %v675
    %802 = vmatprep.subr.mxu0 %v680
    %803 = vmatpush1.msra.mxu0 %v679
    %804 = vmatprep.subr.mxu0 %v684
    %805 = vmatpush1.msra.mxu0 %v683
    %806 = vmatprep.subr.mxu0 %v688
    %807 = vmatpush1.msra.mxu0 %v687
    %808 = vmatprep.subr.mxu0 %v692
    %809 = vmatpush1.msra.mxu0 %v691
    %810 = vmatprep.subr.mxu0 %v696
    %811 = vmatpush1.msra.mxu0 %v695
    %812 = vmatprep.subr.mxu0 %v700
    %813 = vmatpush1.msra.mxu0 %v699
    %814 = vmatprep.subr.mxu0 %v704
    %815 = vmatpush1.msra.mxu0 %v703
    %816 = vmatprep.subr.mxu0 %v708
    %817 = vmatpush1.msra.mxu0 %v707
    %818 = vmatprep.subr.mxu0 %v712
    %819 = vmatpush1.msra.mxu0 %v711
    %820 = vmatprep.subr.mxu0 %v716
    %821 = vmatpush1.msra.mxu0 %v715
    %822 = vmatprep.subr.mxu0 %v720
    %823 = vmatpush1.msra.mxu0 %v719
    %824 = vmatprep.subr.mxu0 0.0
    %825 = vmatpush1.msra.mxu0 0.0
    %826 = vmatprep.subr.mxu0 0.0
    %827 = vmatpush1.msra.mxu0 0.0
    %828 = vmatprep.subr.mxu0 0.0
    %829 = vmatpush1.msra.mxu0 0.0
    %830 = vmatprep.subr.mxu0 0.0
    %831 = vmatpush1.msra.mxu0 0.0
    %832 = vmatprep.subr.mxu0 0.0
    %833 = vmatpush1.msra.mxu0 0.0
    %834 = vmatprep.subr.mxu0 0.0
    %835 = vmatpush1.msra.mxu0 0.0
    %836 = vmatprep.subr.mxu0 0.0
    %837 = vmatpush1.msra.mxu0 0.0
    %838 = vmatprep.subr.mxu0 0.0
    %839 = vmatpush1.msra.mxu0 0.0
    %840 = vmatprep.subr.mxu0 0.0
    %841 = vmatpush1.msra.mxu0 0.0
    %842 = vmatprep.subr.mxu0 0.0
    %843 = vmatpush1.msra.mxu0 0.0
    %844 = vmatprep.subr.mxu0 0.0
    %845 = vmatpush1.msra.mxu0 0.0
    %846 = vmatprep.subr.mxu0 0.0
    %847 = vmatpush1.msra.mxu0 0.0
    %848 = vmatprep.subr.mxu0 0.0
    %849 = vmatpush1.msra.mxu0 0.0
    %850 = vmatprep.subr.mxu0 0.0
    %851 = vmatpush1.msra.mxu0 0.0
    %852 = vmatprep.subr.mxu0 0.0
    %853 = vmatpush1.msra.mxu0 0.0
    %854 = vmatprep.subr.mxu0 0.0
    %855 = vmatpush1.msra.mxu0 0.0
    %856 = vmatprep.mubr.f32.mxu0 0.0
    %857 = vmatmul.mubr.f32.gmra.mrb[0].mxu0 0.0
    %v858 = vpop.f32.mrb[0].mxu0
    %v859 = vadd.f32 0.0, %v858
    %v860 = vpop.f32.mrb[0].mxu0
    %v861 = vadd.f32 0.0, %v860
    %862 = vdwg.mxu0
    %v863 = vadd.f32 %v653, %v788
    %v864 = vadd.f32 %v654, %v790
    %v865 = vadd.f32 %v655, %v859
    %v866 = vadd.f32 %v656, %v861
    %v867 = vxor.u32 %v863, 2147483648
    %v868 = vxor.u32 %v864, 2147483648
    %v869 = vxor.u32 %v865, 2147483648
    %v870 = vmul.f32 %v867, 1.442695
    %v871 = vpow.pop %v870
    %v872 = vmul.f32 %v868, 1.442695
    %v873 = vpow.pop %v872
    %v874 = vmul.f32 %v869, 1.442695
    %v875 = vpow.pop %v874
    %v876 = vadd.f32 %v871, 1.0
    %v877 = vadd.f32 %v873, 1.0
    %v878 = vadd.f32 %v875, 1.0
    %v879 = vrcp.pop %v876
    %v880 = vmul.f32 1.0, %v879
    %v881 = vrcp.pop %v877
    %v882 = vmul.f32 1.0, %v881
    %v883 = vrcp.pop %v878
    %v884 = vmul.f32 1.0, %v883
    %v885 = vtanh.pop %v866
    %v886 = vmul.f32 %v882, 0.0
    %v887 = vmul.f32 %v880, %v885
    %v888 = vadd.f32 %v886, %v887
    %v889 = vtanh.pop %v888
    %v890 = vmul.f32 %v884, %v889
    %vm891 = vcmp.eq.s32.totalorder %v652, 0
    %v892 = vsel %vm891, 1, 0
    %893 = vset.pattern.permute.xlu0 0
    %894 = vperm.xlu0 %893, %v892
    %v895 = vpop.permute.xlu0 %894
    %vm896 = vcmp.eq.s32.totalorder %v895, 1
    %v897 = vsel %vm896, %v890, 0.0
    %v898 = vld [vmem:[#allocation3 + $0x20] sm:$0xff]
    %v899 = vld [vmem:[#allocation3 + $0x28] sm:$0xff]
    %v900 = vld [vmem:[#allocation3 + $0x30] sm:$0xff]
    %v901 = vld [vmem:[#allocation3 + $0x38] sm:$0xff]
    %902 = vmatprep.subr.mxu0 %v658
    %903 = vmatpush1.msra.mxu0 %v657
    %904 = vmatprep.subr.mxu0 %v662
    %905 = vmatpush1.msra.mxu0 %v661
    %906 = vmatprep.subr.mxu0 %v666
    %907 = vmatpush1.msra.mxu0 %v665
    %908 = vmatprep.subr.mxu0 %v670
    %909 = vmatpush1.msra.mxu0 %v669
    %910 = vmatprep.subr.mxu0 %v674
    %911 = vmatpush1.msra.mxu0 %v673
    %912 = vmatprep.subr.mxu0 %v678
    %913 = vmatpush1.msra.mxu0 %v677
    %914 = vmatprep.subr.mxu0 %v682
    %915 = vmatpush1.msra.mxu0 %v681
    %916 = vmatprep.subr.mxu0 %v686
    %917 = vmatpush1.msra.mxu0 %v685
    %918 = vmatprep.subr.mxu0 %v690
    %919 = vmatpush1.msra.mxu0 %v689
    %920 = vmatprep.subr.mxu0 %v694
    %921 = vmatpush1.msra.mxu0 %v693
    %922 = vmatprep.subr.mxu0 %v698
    %923 = vmatpush1.msra.mxu0 %v697
    %924 = vmatprep.subr.mxu0 %v702
    %925 = vmatpush1.msra.mxu0 %v701
    %926 = vmatprep.subr.mxu0 %v706
    %927 = vmatpush1.msra.mxu0 %v705
    %928 = vmatprep.subr.mxu0 %v710
    %929 = vmatpush1.msra.mxu0 %v709
    %930 = vmatprep.subr.mxu0 %v714
    %931 = vmatpush1.msra.mxu0 %v713
    %932 = vmatprep.subr.mxu0 %v718
    %933 = vmatpush1.msra.mxu0 %v717
    %934 = vmatprep.subr.mxu0 0.0
    %935 = vmatpush1.msra.mxu0 0.0
    %936 = vmatprep.subr.mxu0 0.0
    %937 = vmatpush1.msra.mxu0 0.0
    %938 = vmatprep.subr.mxu0 0.0
    %939 = vmatpush1.msra.mxu0 0.0
    %940 = vmatprep.subr.mxu0 0.0
    %941 = vmatpush1.msra.mxu0 0.0
    %942 = vmatprep.subr.mxu0 0.0
    %943 = vmatpush1.msra.mxu0 0.0
    %944 = vmatprep.subr.mxu0 0.0
    %945 = vmatpush1.msra.mxu0 0.0
    %946 = vmatprep.subr.mxu0 0.0
    %947 = vmatpush1.msra.mxu0 0.0
    %948 = vmatprep.subr.mxu0 0.0
    %949 = vmatpush1.msra.mxu0 0.0
    %950 = vmatprep.subr.mxu0 0.0
    %951 = vmatpush1.msra.mxu0 0.0
    %952 = vmatprep.subr.mxu0 0.0
    %953 = vmatpush1.msra.mxu0 0.0
    %954 = vmatprep.subr.mxu0 0.0
    %955 = vmatpush1.msra.mxu0 0.0
    %956 = vmatprep.subr.mxu0 0.0
    %957 = vmatpush1.msra.mxu0 0.0
    %958 = vmatprep.subr.mxu0 0.0
    %959 = vmatpush1.msra.mxu0 0.0
    %960 = vmatprep.subr.mxu0 0.0
    %961 = vmatpush1.msra.mxu0 0.0
    %962 = vmatprep.subr.mxu0 0.0
    %963 = vmatpush1.msra.mxu0 0.0
    %964 = vmatprep.subr.mxu0 0.0
    %965 = vmatpush1.msra.mxu0 0.0
    %966 = vmatprep.mubr.f32.mxu0 0.0
    %967 = vmatmul.mubr.f32.gmra.mrb[0].mxu0 %v890
    %v968 = vpop.f32.mrb[0].mxu0
    %v969 = vadd.f32 0.0, %v968
    %v970 = vpop.f32.mrb[0].mxu0
    %v971 = vadd.f32 0.0, %v970
    %972 = vdwg.mxu0
    %973 = vmatprep.subr.mxu0 %v660
    %974 = vmatpush1.msra.mxu0 %v659
    %975 = vmatprep.subr.mxu0 %v664
    %976 = vmatpush1.msra.mxu0 %v663
    %977 = vmatprep.subr.mxu0 %v668
    %978 = vmatpush1.msra.mxu0 %v667
    %979 = vmatprep.subr.mxu0 %v672
    %980 = vmatpush1.msra.mxu0 %v671
    %981 = vmatprep.subr.mxu0 %v676
    %982 = vmatpush1.msra.mxu0 %v675
    %983 = vmatprep.subr.mxu0 %v680
    %984 = vmatpush1.msra.mxu0 %v679
    %985 = vmatprep.subr.mxu0 %v684
    %986 = vmatpush1.msra.mxu0 %v683
    %987 = vmatprep.subr.mxu0 %v688
    %988 = vmatpush1.msra.mxu0 %v687
    %989 = vmatprep.subr.mxu0 %v692
    %990 = vmatpush1.msra.mxu0 %v691
    %991 = vmatprep.subr.mxu0 %v696
    %992 = vmatpush1.msra.mxu0 %v695
    %993 = vmatprep.subr.mxu0 %v700
    %994 = vmatpush1.msra.mxu0 %v699
    %995 = vmatprep.subr.mxu0 %v704
    %996 = vmatpush1.msra.mxu0 %v703
    %997 = vmatprep.subr.mxu0 %v708
    %998 = vmatpush1.msra.mxu0 %v707
    %999 = vmatprep.subr.mxu0 %v712
    %1000 = vmatpush1.msra.mxu0 %v711
    %1001 = vmatprep.subr.mxu0 %v716
    %1002 = vmatpush1.msra.mxu0 %v715
    %1003 = vmatprep.subr.mxu0 %v720
    %1004 = vmatpush1.msra.mxu0 %v719
    %1005 = vmatprep.subr.mxu0 0.0
    %1006 = vmatpush1.msra.mxu0 0.0
    %1007 = vmatprep.subr.mxu0 0.0
    %1008 = vmatpush1.msra.mxu0 0.0
    %1009 = vmatprep.subr.mxu0 0.0
    %1010 = vmatpush1.msra.mxu0 0.0
    %1011 = vmatprep.subr.mxu0 0.0
    %1012 = vmatpush1.msra.mxu0 0.0
    %1013 = vmatprep.subr.mxu0 0.0
    %1014 = vmatpush1.msra.mxu0 0.0
    %1015 = vmatprep.subr.mxu0 0.0
    %1016 = vmatpush1.msra.mxu0 0.0
    %1017 = vmatprep.subr.mxu0 0.0
    %1018 = vmatpush1.msra.mxu0 0.0
    %1019 = vmatprep.subr.mxu0 0.0
    %1020 = vmatpush1.msra.mxu0 0.0
    %1021 = vmatprep.subr.mxu0 0.0
    %1022 = vmatpush1.msra.mxu0 0.0
    %1023 = vmatprep.subr.mxu0 0.0
    %1024 = vmatpush1.msra.mxu0 0.0
    %1025 = vmatprep.subr.mxu0 0.0
    %1026 = vmatpush1.msra.mxu0 0.0
    %1027 = vmatprep.subr.mxu0 0.0
    %1028 = vmatpush1.msra.mxu0 0.0
    %1029 = vmatprep.subr.mxu0 0.0
    %1030 = vmatpush1.msra.mxu0 0.0
    %1031 = vmatprep.subr.mxu0 0.0
    %1032 = vmatpush1.msra.mxu0 0.0
    %1033 = vmatprep.subr.mxu0 0.0
    %1034 = vmatpush1.msra.mxu0 0.0
    %1035 = vmatprep.subr.mxu0 0.0
    %1036 = vmatpush1.msra.mxu0 0.0
    %1037 = vmatprep.mubr.f32.mxu0 0.0
    %1038 = vmatmul.mubr.f32.gmra.mrb[0].mxu0 %v890
    %v1039 = vpop.f32.mrb[0].mxu0
    %v1040 = vadd.f32 0.0, %v1039
    %v1041 = vpop.f32.mrb[0].mxu0
    %v1042 = vadd.f32 0.0, %v1041
    %1043 = vdwg.mxu0
    %v1044 = vadd.f32 %v898, %v969
    %v1045 = vadd.f32 %v899, %v971
    %v1046 = vadd.f32 %v900, %v1040
    %v1047 = vadd.f32 %v901, %v1042
    %v1048 = vxor.u32 %v1044, 2147483648
    %v1049 = vxor.u32 %v1045, 2147483648
    %v1050 = vxor.u32 %v1046, 2147483648
    %v1051 = vmul.f32 %v1048, 1.442695
    %v1052 = vpow.pop %v1051
    %v1053 = vmul.f32 %v1049, 1.442695
    %v1054 = vpow.pop %v1053
    %v1055 = vmul.f32 %v1050, 1.442695
    %v1056 = vpow.pop %v1055
    %v1057 = vadd.f32 %v1052, 1.0
    %v1058 = vadd.f32 %v1054, 1.0
    %v1059 = vadd.f32 %v1056, 1.0
    %v1060 = vrcp.pop %v1057
    %v1061 = vmul.f32 1.0, %v1060
    %v1062 = vrcp.pop %v1058
    %v1063 = vmul.f32 1.0, %v1062
    %v1064 = vrcp.pop %v1059
    %v1065 = vmul.f32 1.0, %v1064
    %v1066 = vtanh.pop %v1047
    %v1067 = vmul.f32 %v1063, %v888
    %v1068 = vmul.f32 %v1061, %v1066
    %v1069 = vadd.f32 %v1067, %v1068
    %v1070 = vtanh.pop %v1069
    %v1071 = vmul.f32 %v1065, %v1070
    %vm1072 = vcmp.eq.s32.totalorder %v652, 1
    %v1073 = vsel %vm1072, 1, 0
    %1074 = vset.pattern.permute.xlu0 0
    %1075 = vperm.xlu0 %1074, %v1073
    %v1076 = vpop.permute.xlu0 %1075
    %vm1077 = vcmp.eq.s32.totalorder %v1076, 1
    %v1078 = vsel %vm1077, %v1071, %v897
    %v1079 = vld [vmem:[#allocation3 + $0x40] sm:$0xff]
    %v1080 = vld [vmem:[#allocation3 + $0x48] sm:$0xff]
    %v1081 = vld [vmem:[#allocation3 + $0x50] sm:$0xff]
    %v1082 = vld [vmem:[#allocation3 + $0x58] sm:$0xff]
    %1083 = vmatprep.subr.mxu0 %v658
    %1084 = vmatpush1.msra.mxu0 %v657
    %1085 = vmatprep.subr.mxu0 %v662
    %1086 = vmatpush1.msra.mxu0 %v661
    %1087 = vmatprep.subr.mxu0 %v666
    %1088 = vmatpush1.msra.mxu0 %v665
    %1089 = vmatprep.subr.mxu0 %v670
    %1090 = vmatpush1.msra.mxu0 %v669
    %1091 = vmatprep.subr.mxu0 %v674
    %1092 = vmatpush1.msra.mxu0 %v673
    %1093 = vmatprep.subr.mxu0 %v678
    %1094 = vmatpush1.msra.mxu0 %v677
    %1095 = vmatprep.subr.mxu0 %v682
    %1096 = vmatpush1.msra.mxu0 %v681
    %1097 = vmatprep.subr.mxu0 %v686
    %1098 = vmatpush1.msra.mxu0 %v685
    %1099 = vmatprep.subr.mxu0 %v690
    %1100 = vmatpush1.msra.mxu0 %v689
    %1101 = vmatprep.subr.mxu0 %v694
    %1102 = vmatpush1.msra.mxu0 %v693
    %1103 = vmatprep.subr.mxu0 %v698
    %1104 = vmatpush1.msra.mxu0 %v697
    %1105 = vmatprep.subr.mxu0 %v702
    %1106 = vmatpush1.msra.mxu0 %v701
    %1107 = vmatprep.subr.mxu0 %v706
    %1108 = vmatpush1.msra.mxu0 %v705
    %1109 = vmatprep.subr.mxu0 %v710
    %1110 = vmatpush1.msra.mxu0 %v709
    %1111 = vmatprep.subr.mxu0 %v714
    %1112 = vmatpush1.msra.mxu0 %v713
    %1113 = vmatprep.subr.mxu0 %v718
    %1114 = vmatpush1.msra.mxu0 %v717
    %1115 = vmatprep.subr.mxu0 0.0
    %1116 = vmatpush1.msra.mxu0 0.0
    %1117 = vmatprep.subr.mxu0 0.0
    %1118 = vmatpush1.msra.mxu0 0.0
    %1119 = vmatprep.subr.mxu0 0.0
    %1120 = vmatpush1.msra.mxu0 0.0
    %1121 = vmatprep.subr.mxu0 0.0
    %1122 = vmatpush1.msra.mxu0 0.0
    %1123 = vmatprep.subr.mxu0 0.0
    %1124 = vmatpush1.msra.mxu0 0.0
    %1125 = vmatprep.subr.mxu0 0.0
    %1126 = vmatpush1.msra.mxu0 0.0
    %1127 = vmatprep.subr.mxu0 0.0
    %1128 = vmatpush1.msra.mxu0 0.0
    %1129 = vmatprep.subr.mxu0 0.0
    %1130 = vmatpush1.msra.mxu0 0.0
    %1131 = vmatprep.subr.mxu0 0.0
    %1132 = vmatpush1.msra.mxu0 0.0
    %1133 = vmatprep.subr.mxu0 0.0
    %1134 = vmatpush1.msra.mxu0 0.0
    %1135 = vmatprep.subr.mxu0 0.0
    %1136 = vmatpush1.msra.mxu0 0.0
    %1137 = vmatprep.subr.mxu0 0.0
    %1138 = vmatpush1.msra.mxu0 0.0
    %1139 = vmatprep.subr.mxu0 0.0
    %1140 = vmatpush1.msra.mxu0 0.0
    %1141 = vmatprep.subr.mxu0 0.0
    %1142 = vmatpush1.msra.mxu0 0.0
    %1143 = vmatprep.subr.mxu0 0.0
    %1144 = vmatpush1.msra.mxu0 0.0
    %1145 = vmatprep.subr.mxu0 0.0
    %1146 = vmatpush1.msra.mxu0 0.0
    %1147 = vmatprep.mubr.f32.mxu0 0.0
    %1148 = vmatmul.mubr.f32.gmra.mrb[0].mxu0 %v1071
    %v1149 = vpop.f32.mrb[0].mxu0
    %v1150 = vadd.f32 0.0, %v1149
    %v1151 = vpop.f32.mrb[0].mxu0
    %v1152 = vadd.f32 0.0, %v1151
    %1153 = vdwg.mxu0
    %1154 = vmatprep.subr.mxu0 %v660
    %1155 = vmatpush1.msra.mxu0 %v659
    %1156 = vmatprep.subr.mxu0 %v664
    %1157 = vmatpush1.msra.mxu0 %v663
    %1158 = vmatprep.subr.mxu0 %v668
    %1159 = vmatpush1.msra.mxu0 %v667
    %1160 = vmatprep.subr.mxu0 %v672
    %1161 = vmatpush1.msra.mxu0 %v671
    %1162 = vmatprep.subr.mxu0 %v676
    %1163 = vmatpush1.msra.mxu0 %v675
    %1164 = vmatprep.subr.mxu0 %v680
    %1165 = vmatpush1.msra.mxu0 %v679
    %1166 = vmatprep.subr.mxu0 %v684
    %1167 = vmatpush1.msra.mxu0 %v683
    %1168 = vmatprep.subr.mxu0 %v688
    %1169 = vmatpush1.msra.mxu0 %v687
    %1170 = vmatprep.subr.mxu0 %v692
    %1171 = vmatpush1.msra.mxu0 %v691
    %1172 = vmatprep.subr.mxu0 %v696
    %1173 = vmatpush1.msra.mxu0 %v695
    %1174 = vmatprep.subr.mxu0 %v700
    %1175 = vmatpush1.msra.mxu0 %v699
    %1176 = vmatprep.subr.mxu0 %v704
    %1177 = vmatpush1.msra.mxu0 %v703
    %1178 = vmatprep.subr.mxu0 %v708
    %1179 = vmatpush1.msra.mxu0 %v707
    %1180 = vmatprep.subr.mxu0 %v712
    %1181 = vmatpush1.msra.mxu0 %v711
    %1182 = vmatprep.subr.mxu0 %v716
    %1183 = vmatpush1.msra.mxu0 %v715
    %1184 = vmatprep.subr.mxu0 %v720
    %1185 = vmatpush1.msra.mxu0 %v719
    %1186 = vmatprep.subr.mxu0 0.0
    %1187 = vmatpush1.msra.mxu0 0.0
    %1188 = vmatprep.subr.mxu0 0.0
    %1189 = vmatpush1.msra.mxu0 0.0
    %1190 = vmatprep.subr.mxu0 0.0
    %1191 = vmatpush1.msra.mxu0 0.0
    %1192 = vmatprep.subr.mxu0 0.0
    %1193 = vmatpush1.msra.mxu0 0.0
    %1194 = vmatprep.subr.mxu0 0.0
    %1195 = vmatpush1.msra.mxu0 0.0
    %1196 = vmatprep.subr.mxu0 0.0
    %1197 = vmatpush1.msra.mxu0 0.0
    %1198 = vmatprep.subr.mxu0 0.0
    %1199 = vmatpush1.msra.mxu0 0.0
    %1200 = vmatprep.subr.mxu0 0.0
    %1201 = vmatpush1.msra.mxu0 0.0
    %1202 = vmatprep.subr.mxu0 0.0
    %1203 = vmatpush1.msra.mxu0 0.0
    %1204 = vmatprep.subr.mxu0 0.0
    %1205 = vmatpush1.msra.mxu0 0.0
    %1206 = vmatprep.subr.mxu0 0.0
    %1207 = vmatpush1.msra.mxu0 0.0
    %1208 = vmatprep.subr.mxu0 0.0
    %1209 = vmatpush1.msra.mxu0 0.0
    %1210 = vmatprep.subr.mxu0 0.0
    %1211 = vmatpush1.msra.mxu0 0.0
    %1212 = vmatprep.subr.mxu0 0.0
    %1213 = vmatpush1.msra.mxu0 0.0
    %1214 = vmatprep.subr.mxu0 0.0
    %1215 = vmatpush1.msra.mxu0 0.0
    %1216 = vmatprep.subr.mxu0 0.0
    %1217 = vmatpush1.msra.mxu0 0.0
    %1218 = vmatprep.mubr.f32.mxu0 0.0
    %1219 = vmatmul.mubr.f32.gmra.mrb[0].mxu0 %v1071
    %v1220 = vpop.f32.mrb[0].mxu0
    %v1221 = vadd.f32 0.0, %v1220
    %v1222 = vpop.f32.mrb[0].mxu0
    %v1223 = vadd.f32 0.0, %v1222
    %1224 = vdwg.mxu0
    %v1225 = vadd.f32 %v1079, %v1150
    %v1226 = vadd.f32 %v1080, %v1152
    %v1227 = vadd.f32 %v1081, %v1221
    %v1228 = vadd.f32 %v1082, %v1223
    %v1229 = vxor.u32 %v1225, 2147483648
    %v1230 = vxor.u32 %v1226, 2147483648
    %v1231 = vxor.u32 %v1227, 2147483648
    %v1232 = vmul.f32 %v1229, 1.442695
    %v1233 = vpow.pop %v1232
    %v1234 = vmul.f32 %v1230, 1.442695
    %v1235 = vpow.pop %v1234
    %v1236 = vmul.f32 %v1231, 1.442695
    %v1237 = vpow.pop %v1236
    %v1238 = vadd.f32 %v1233, 1.0
    %v1239 = vadd.f32 %v1235, 1.0
    %v1240 = vadd.f32 %v1237, 1.0
    %v1241 = vrcp.pop %v1238
    %v1242 = vmul.f32 1.0, %v1241
    %v1243 = vrcp.pop %v1239
    %v1244 = vmul.f32 1.0, %v1243
    %v1245 = vrcp.pop %v1240
    %v1246 = vmul.f32 1.0, %v1245
    %v1247 = vtanh.pop %v1228
    %v1248 = vmul.f32 %v1244, %v1069
    %v1249 = vmul.f32 %v1242, %v1247
    %v1250 = vadd.f32 %v1248, %v1249
    %v1251 = vtanh.pop %v1250
    %v1252 = vmul.f32 %v1246, %v1251
    %vm1253 = vcmp.eq.s32.totalorder %v652, 2
    %v1254 = vsel %vm1253, 1, 0
    %1255 = vset.pattern.permute.xlu0 0
    %1256 = vperm.xlu0 %1255, %v1254
    %v1257 = vpop.permute.xlu0 %1256
    %vm1258 = vcmp.eq.s32.totalorder %v1257, 1
    %v1259 = vsel %vm1258, %v1252, %v1078
    %v1260 = vld [vmem:[#allocation3 + $0x60] sm:$0xff]
    %v1261 = vld [vmem:[#allocation3 + $0x68] sm:$0xff]
    %v1262 = vld [vmem:[#allocation3 + $0x70] sm:$0xff]
    %v1263 = vld [vmem:[#allocation3 + $0x78] sm:$0xff]
    %1264 = vmatprep.subr.mxu0 %v658
    %1265 = vmatpush1.msra.mxu0 %v657
    %1266 = vmatprep.subr.mxu0 %v662
    %1267 = vmatpush1.msra.mxu0 %v661
    %1268 = vmatprep.subr.mxu0 %v666
    %1269 = vmatpush1.msra.mxu0 %v665
    %1270 = vmatprep.subr.mxu0 %v670
    %1271 = vmatpush1.msra.mxu0 %v669
    %1272 = vmatprep.subr.mxu0 %v674
    %1273 = vmatpush1.msra.mxu0 %v673
    %1274 = vmatprep.subr.mxu0 %v678
    %1275 = vmatpush1.msra.mxu0 %v677
    %1276 = vmatprep.subr.mxu0 %v682
    %1277 = vmatpush1.msra.mxu0 %v681
    %1278 = vmatprep.subr.mxu0 %v686
    %1279 = vmatpush1.msra.mxu0 %v685
    %1280 = vmatprep.subr.mxu0 %v690
    %1281 = vmatpush1.msra.mxu0 %v689
    %1282 = vmatprep.subr.mxu0 %v694
    %1283 = vmatpush1.msra.mxu0 %v693
    %1284 = vmatprep.subr.mxu0 %v698
    %1285 = vmatpush1.msra.mxu0 %v697
    %1286 = vmatprep.subr.mxu0 %v702
    %1287 = vmatpush1.msra.mxu0 %v701
    %1288 = vmatprep.subr.mxu0 %v706
    %1289 = vmatpush1.msra.mxu0 %v705
    %1290 = vmatprep.subr.mxu0 %v710
    %1291 = vmatpush1.msra.mxu0 %v709
    %1292 = vmatprep.subr.mxu0 %v714
    %1293 = vmatpush1.msra.mxu0 %v713
    %1294 = vmatprep.subr.mxu0 %v718
    %1295 = vmatpush1.msra.mxu0 %v717
    %1296 = vmatprep.subr.mxu0 0.0
    %1297 = vmatpush1.msra.mxu0 0.0
    %1298 = vmatprep.subr.mxu0 0.0
    %1299 = vmatpush1.msra.mxu0 0.0
    %1300 = vmatprep.subr.mxu0 0.0
    %1301 = vmatpush1.msra.mxu0 0.0
    %1302 = vmatprep.subr.mxu0 0.0
    %1303 = vmatpush1.msra.mxu0 0.0
    %1304 = vmatprep.subr.mxu0 0.0
    %1305 = vmatpush1.msra.mxu0 0.0
    %1306 = vmatprep.subr.mxu0 0.0
    %1307 = vmatpush1.msra.mxu0 0.0
    %1308 = vmatprep.subr.mxu0 0.0
    %1309 = vmatpush1.msra.mxu0 0.0
    %1310 = vmatprep.subr.mxu0 0.0
    %1311 = vmatpush1.msra.mxu0 0.0
    %1312 = vmatprep.subr.mxu0 0.0
    %1313 = vmatpush1.msra.mxu0 0.0
    %1314 = vmatprep.subr.mxu0 0.0
    %1315 = vmatpush1.msra.mxu0 0.0
    %1316 = vmatprep.subr.mxu0 0.0
    %1317 = vmatpush1.msra.mxu0 0.0
    %1318 = vmatprep.subr.mxu0 0.0
    %1319 = vmatpush1.msra.mxu0 0.0
    %1320 = vmatprep.subr.mxu0 0.0
    %1321 = vmatpush1.msra.mxu0 0.0
    %1322 = vmatprep.subr.mxu0 0.0
    %1323 = vmatpush1.msra.mxu0 0.0
    %1324 = vmatprep.subr.mxu0 0.0
    %1325 = vmatpush1.msra.mxu0 0.0
    %1326 = vmatprep.subr.mxu0 0.0
    %1327 = vmatpush1.msra.mxu0 0.0
    %1328 = vmatprep.mubr.f32.mxu0 0.0
    %1329 = vmatmul.mubr.f32.gmra.mrb[0].mxu0 %v1252
    %v1330 = vpop.f32.mrb[0].mxu0
    %v1331 = vadd.f32 0.0, %v1330
    %v1332 = vpop.f32.mrb[0].mxu0
    %v1333 = vadd.f32 0.0, %v1332
    %1334 = vdwg.mxu0
    %1335 = vmatprep.subr.mxu0 %v660
    %1336 = vmatpush1.msra.mxu0 %v659
    %1337 = vmatprep.subr.mxu0 %v664
    %1338 = vmatpush1.msra.mxu0 %v663
    %1339 = vmatprep.subr.mxu0 %v668
    %1340 = vmatpush1.msra.mxu0 %v667
    %1341 = vmatprep.subr.mxu0 %v672
    %1342 = vmatpush1.msra.mxu0 %v671
    %1343 = vmatprep.subr.mxu0 %v676
    %1344 = vmatpush1.msra.mxu0 %v675
    %1345 = vmatprep.subr.mxu0 %v680
    %1346 = vmatpush1.msra.mxu0 %v679
    %1347 = vmatprep.subr.mxu0 %v684
    %1348 = vmatpush1.msra.mxu0 %v683
    %1349 = vmatprep.subr.mxu0 %v688
    %1350 = vmatpush1.msra.mxu0 %v687
    %1351 = vmatprep.subr.mxu0 %v692
    %1352 = vmatpush1.msra.mxu0 %v691
    %1353 = vmatprep.subr.mxu0 %v696
    %1354 = vmatpush1.msra.mxu0 %v695
    %1355 = vmatprep.subr.mxu0 %v700
    %1356 = vmatpush1.msra.mxu0 %v699
    %1357 = vmatprep.subr.mxu0 %v704
    %1358 = vmatpush1.msra.mxu0 %v703
    %1359 = vmatprep.subr.mxu0 %v708
    %1360 = vmatpush1.msra.mxu0 %v707
    %1361 = vmatprep.subr.mxu0 %v712
    %1362 = vmatpush1.msra.mxu0 %v711
    %1363 = vmatprep.subr.mxu0 %v716
    %1364 = vmatpush1.msra.mxu0 %v715
    %1365 = vmatprep.subr.mxu0 %v720
    %1366 = vmatpush1.msra.mxu0 %v719
    %1367 = vmatprep.subr.mxu0 0.0
    %1368 = vmatpush1.msra.mxu0 0.0
    %1369 = vmatprep.subr.mxu0 0.0
    %1370 = vmatpush1.msra.mxu0 0.0
    %1371 = vmatprep.subr.mxu0 0.0
    %1372 = vmatpush1.msra.mxu0 0.0
    %1373 = vmatprep.subr.mxu0 0.0
    %1374 = vmatpush1.msra.mxu0 0.0
    %1375 = vmatprep.subr.mxu0 0.0
    %1376 = vmatpush1.msra.mxu0 0.0
    %1377 = vmatprep.subr.mxu0 0.0
    %1378 = vmatpush1.msra.mxu0 0.0
    %1379 = vmatprep.subr.mxu0 0.0
    %1380 = vmatpush1.msra.mxu0 0.0
    %1381 = vmatprep.subr.mxu0 0.0
    %1382 = vmatpush1.msra.mxu0 0.0
    %1383 = vmatprep.subr.mxu0 0.0
    %1384 = vmatpush1.msra.mxu0 0.0
    %1385 = vmatprep.subr.mxu0 0.0
    %1386 = vmatpush1.msra.mxu0 0.0
    %1387 = vmatprep.subr.mxu0 0.0
    %1388 = vmatpush1.msra.mxu0 0.0
    %1389 = vmatprep.subr.mxu0 0.0
    %1390 = vmatpush1.msra.mxu0 0.0
    %1391 = vmatprep.subr.mxu0 0.0
    %1392 = vmatpush1.msra.mxu0 0.0
    %1393 = vmatprep.subr.mxu0 0.0
    %1394 = vmatpush1.msra.mxu0 0.0
    %1395 = vmatprep.subr.mxu0 0.0
    %1396 = vmatpush1.msra.mxu0 0.0
    %1397 = vmatprep.subr.mxu0 0.0
    %1398 = vmatpush1.msra.mxu0 0.0
    %1399 = vmatprep.mubr.f32.mxu0 0.0
    %1400 = vmatmul.mubr.f32.gmra.mrb[0].mxu0 %v1252
    %v1401 = vpop.f32.mrb[0].mxu0
    %v1402 = vadd.f32 0.0, %v1401
    %v1403 = vpop.f32.mrb[0].mxu0
    %v1404 = vadd.f32 0.0, %v1403
    %1405 = vdwg.mxu0
    %v1406 = vadd.f32 %v1260, %v1331
    %v1407 = vadd.f32 %v1261, %v1333
    %v1408 = vadd.f32 %v1262, %v1402
    %v1409 = vadd.f32 %v1263, %v1404
    %v1410 = vxor.u32 %v1406, 2147483648
    %v1411 = vxor.u32 %v1407, 2147483648
    %v1412 = vxor.u32 %v1408, 2147483648
    %v1413 = vmul.f32 %v1410, 1.442695
    %v1414 = vpow.pop %v1413
    %v1415 = vmul.f32 %v1411, 1.442695
    %v1416 = vpow.pop %v1415
    %v1417 = vmul.f32 %v1412, 1.442695
    %v1418 = vpow.pop %v1417
    %v1419 = vadd.f32 %v1414, 1.0
    %v1420 = vadd.f32 %v1416, 1.0
    %v1421 = vadd.f32 %v1418, 1.0
    %v1422 = vrcp.pop %v1419
    %v1423 = vmul.f32 1.0, %v1422
    %v1424 = vrcp.pop %v1420
    %v1425 = vmul.f32 1.0, %v1424
    %v1426 = vrcp.pop %v1421
    %v1427 = vmul.f32 1.0, %v1426
    %v1428 = vtanh.pop %v1409
    %v1429 = vmul.f32 %v1425, %v1250
    %v1430 = vmul.f32 %v1423, %v1428
    %v1431 = vadd.f32 %v1429, %v1430
    %v1432 = vtanh.pop %v1431
    %v1433 = vmul.f32 %v1427, %v1432
    %vm1434 = vcmp.eq.s32.totalorder %v652, 3
    %v1435 = vsel %vm1434, 1, 0
    %1436 = vset.pattern.permute.xlu0 0
    %1437 = vperm.xlu0 %1436, %v1435
    %v1438 = vpop.permute.xlu0 %1437
    %vm1439 = vcmp.eq.s32.totalorder %v1438, 1
    %v1440 = vsel %vm1439, %v1433, %v1259
    %v1441 = vld [vmem:[#allocation3 + $0x80] sm:$0xff]
    %v1442 = vld [vmem:[#allocation3 + $0x88] sm:$0xff]
    %v1443 = vld [vmem:[#allocation3 + $0x90] sm:$0xff]
    %v1444 = vld [vmem:[#allocation3 + $0x98] sm:$0xff]
    %1445 = vmatprep.subr.mxu0 %v658
    %1446 = vmatpush1.msra.mxu0 %v657
    %1447 = vmatprep.subr.mxu0 %v662
    %1448 = vmatpush1.msra.mxu0 %v661
    %1449 = vmatprep.subr.mxu0 %v666
    %1450 = vmatpush1.msra.mxu0 %v665
    %1451 = vmatprep.subr.mxu0 %v670
    %1452 = vmatpush1.msra.mxu0 %v669
    %1453 = vmatprep.subr.mxu0 %v674
    %1454 = vmatpush1.msra.mxu0 %v673
    %1455 = vmatprep.subr.mxu0 %v678
    %1456 = vmatpush1.msra.mxu0 %v677
    %1457 = vmatprep.subr.mxu0 %v682
    %1458 = vmatpush1.msra.mxu0 %v681
    %1459 = vmatprep.subr.mxu0 %v686
    %1460 = vmatpush1.msra.mxu0 %v685
    %1461 = vmatprep.subr.mxu0 %v690
    %1462 = vmatpush1.msra.mxu0 %v689
    %1463 = vmatprep.subr.mxu0 %v694
    %1464 = vmatpush1.msra.mxu0 %v693
    %1465 = vmatprep.subr.mxu0 %v698
    %1466 = vmatpush1.msra.mxu0 %v697
    %1467 = vmatprep.subr.mxu0 %v702
    %1468 = vmatpush1.msra.mxu0 %v701
    %1469 = vmatprep.subr.mxu0 %v706
    %1470 = vmatpush1.msra.mxu0 %v705
    %1471 = vmatprep.subr.mxu0 %v710
    %1472 = vmatpush1.msra.mxu0 %v709
    %1473 = vmatprep.subr.mxu0 %v714
    %1474 = vmatpush1.msra.mxu0 %v713
    %1475 = vmatprep.subr.mxu0 %v718
    %1476 = vmatpush1.msra.mxu0 %v717
    %1477 = vmatprep.subr.mxu0 0.0
    %1478 = vmatpush1.msra.mxu0 0.0
    %1479 = vmatprep.subr.mxu0 0.0
    %1480 = vmatpush1.msra.mxu0 0.0
    %1481 = vmatprep.subr.mxu0 0.0
    %1482 = vmatpush1.msra.mxu0 0.0
    %1483 = vmatprep.subr.mxu0 0.0
    %1484 = vmatpush1.msra.mxu0 0.0
    %1485 = vmatprep.subr.mxu0 0.0
    %1486 = vmatpush1.msra.mxu0 0.0
    %1487 = vmatprep.subr.mxu0 0.0
    %1488 = vmatpush1.msra.mxu0 0.0
    %1489 = vmatprep.subr.mxu0 0.0
    %1490 = vmatpush1.msra.mxu0 0.0
    %1491 = vmatprep.subr.mxu0 0.0
    %1492 = vmatpush1.msra.mxu0 0.0
    %1493 = vmatprep.subr.mxu0 0.0
    %1494 = vmatpush1.msra.mxu0 0.0
    %1495 = vmatprep.subr.mxu0 0.0
    %1496 = vmatpush1.msra.mxu0 0.0
    %1497 = vmatprep.subr.mxu0 0.0
    %1498 = vmatpush1.msra.mxu0 0.0
    %1499 = vmatprep.subr.mxu0 0.0
    %1500 = vmatpush1.msra.mxu0 0.0
    %1501 = vmatprep.subr.mxu0 0.0
    %1502 = vmatpush1.msra.mxu0 0.0
    %1503 = vmatprep.subr.mxu0 0.0
    %1504 = vmatpush1.msra.mxu0 0.0
    %1505 = vmatprep.subr.mxu0 0.0
    %1506 = vmatpush1.msra.mxu0 0.0
    %1507 = vmatprep.subr.mxu0 0.0
    %1508 = vmatpush1.msra.mxu0 0.0
    %1509 = vmatprep.mubr.f32.mxu0 0.0
    %1510 = vmatmul.mubr.f32.gmra.mrb[0].mxu0 %v1433
    %v1511 = vpop.f32.mrb[0].mxu0
    %v1512 = vadd.f32 0.0, %v1511
    %v1513 = vpop.f32.mrb[0].mxu0
    %v1514 = vadd.f32 0.0, %v1513
    %1515 = vdwg.mxu0
    %1516 = vmatprep.subr.mxu0 %v660
    %1517 = vmatpush1.msra.mxu0 %v659
    %1518 = vmatprep.subr.mxu0 %v664
    %1519 = vmatpush1.msra.mxu0 %v663
    %1520 = vmatprep.subr.mxu0 %v668
    %1521 = vmatpush1.msra.mxu0 %v667
    %1522 = vmatprep.subr.mxu0 %v672
    %1523 = vmatpush1.msra.mxu0 %v671
    %1524 = vmatprep.subr.mxu0 %v676
    %1525 = vmatpush1.msra.mxu0 %v675
    %1526 = vmatprep.subr.mxu0 %v680
    %1527 = vmatpush1.msra.mxu0 %v679
    %1528 = vmatprep.subr.mxu0 %v684
    %1529 = vmatpush1.msra.mxu0 %v683
    %1530 = vmatprep.subr.mxu0 %v688
    %1531 = vmatpush1.msra.mxu0 %v687
    %1532 = vmatprep.subr.mxu0 %v692
    %1533 = vmatpush1.msra.mxu0 %v691
    %1534 = vmatprep.subr.mxu0 %v696
    %1535 = vmatpush1.msra.mxu0 %v695
    %1536 = vmatprep.subr.mxu0 %v700
    %1537 = vmatpush1.msra.mxu0 %v699
    %1538 = vmatprep.subr.mxu0 %v704
    %1539 = vmatpush1.msra.mxu0 %v703
    %1540 = vmatprep.subr.mxu0 %v708
    %1541 = vmatpush1.msra.mxu0 %v707
    %1542 = vmatprep.subr.mxu0 %v712
    %1543 = vmatpush1.msra.mxu0 %v711
    %1544 = vmatprep.subr.mxu0 %v716
    %1545 = vmatpush1.msra.mxu0 %v715
    %1546 = vmatprep.subr.mxu0 %v720
    %1547 = vmatpush1.msra.mxu0 %v719
    %1548 = vmatprep.subr.mxu0 0.0
    %1549 = vmatpush1.msra.mxu0 0.0
    %1550 = vmatprep.subr.mxu0 0.0
    %1551 = vmatpush1.msra.mxu0 0.0
    %1552 = vmatprep.subr.mxu0 0.0
    %1553 = vmatpush1.msra.mxu0 0.0
    %1554 = vmatprep.subr.mxu0 0.0
    %1555 = vmatpush1.msra.mxu0 0.0
    %1556 = vmatprep.subr.mxu0 0.0
    %1557 = vmatpush1.msra.mxu0 0.0
    %1558 = vmatprep.subr.mxu0 0.0
    %1559 = vmatpush1.msra.mxu0 0.0
    %1560 = vmatprep.subr.mxu0 0.0
    %1561 = vmatpush1.msra.mxu0 0.0
    %1562 = vmatprep.subr.mxu0 0.0
    %1563 = vmatpush1.msra.mxu0 0.0
    %1564 = vmatprep.subr.mxu0 0.0
    %1565 = vmatpush1.msra.mxu0 0.0
    %1566 = vmatprep.subr.mxu0 0.0
    %1567 = vmatpush1.msra.mxu0 0.0
    %1568 = vmatprep.subr.mxu0 0.0
    %1569 = vmatpush1.msra.mxu0 0.0
    %1570 = vmatprep.subr.mxu0 0.0
    %1571 = vmatpush1.msra.mxu0 0.0
    %1572 = vmatprep.subr.mxu0 0.0
    %1573 = vmatpush1.msra.mxu0 0.0
    %1574 = vmatprep.subr.mxu0 0.0
    %1575 = vmatpush1.msra.mxu0 0.0
    %1576 = vmatprep.subr.mxu0 0.0
    %1577 = vmatpush1.msra.mxu0 0.0
    %1578 = vmatprep.subr.mxu0 0.0
    %1579 = vmatpush1.msra.mxu0 0.0
    %1580 = vmatprep.mubr.f32.mxu0 0.0
    %1581 = vmatmul.mubr.f32.gmra.mrb[0].mxu0 %v1433
    %v1582 = vpop.f32.mrb[0].mxu0
    %v1583 = vadd.f32 0.0, %v1582
    %v1584 = vpop.f32.mrb[0].mxu0
    %v1585 = vadd.f32 0.0, %v1584
    %1586 = vdwg.mxu0
    %v1587 = vadd.f32 %v1441, %v1512
    %v1588 = vadd.f32 %v1442, %v1514
    %v1589 = vadd.f32 %v1443, %v1583
    %v1590 = vadd.f32 %v1444, %v1585
    %v1591 = vxor.u32 %v1587, 2147483648
    %v1592 = vxor.u32 %v1588, 2147483648
    %v1593 = vxor.u32 %v1589, 2147483648
    %v1594 = vmul.f32 %v1591, 1.442695
    %v1595 = vpow.pop %v1594
    %v1596 = vmul.f32 %v1592, 1.442695
    %v1597 = vpow.pop %v1596
    %v1598 = vmul.f32 %v1593, 1.442695
    %v1599 = vpow.pop %v1598
    %v1600 = vadd.f32 %v1595, 1.0
    %v1601 = vadd.f32 %v1597, 1.0
    %v1602 = vadd.f32 %v1599, 1.0
    %v1603 = vrcp.pop %v1600
    %v1604 = vmul.f32 1.0, %v1603
    %v1605 = vrcp.pop %v1601
    %v1606 = vmul.f32 1.0, %v1605
    %v1607 = vrcp.pop %v1602
    %v1608 = vmul.f32 1.0, %v1607
    %v1609 = vtanh.pop %v1590
    %v1610 = vmul.f32 %v1606, %v1431
    %v1611 = vmul.f32 %v1604, %v1609
    %v1612 = vadd.f32 %v1610, %v1611
    %v1613 = vtanh.pop %v1612
    %v1614 = vmul.f32 %v1608, %v1613
    %vm1615 = vcmp.eq.s32.totalorder %v652, 4
    %v1616 = vsel %vm1615, 1, 0
    %1617 = vset.pattern.permute.xlu0 0
    %1618 = vperm.xlu0 %1617, %v1616
    %v1619 = vpop.permute.xlu0 %1618
    %vm1620 = vcmp.eq.s32.totalorder %v1619, 1
    %v1621 = vsel %vm1620, %v1614, %v1440
    %v1622 = vld [vmem:[#allocation3 + $0xa0] sm:$0xff]
    %v1623 = vld [vmem:[#allocation3 + $0xa8] sm:$0xff]
    %v1624 = vld [vmem:[#allocation3 + $0xb0] sm:$0xff]
    %v1625 = vld [vmem:[#allocation3 + $0xb8] sm:$0xff]
    %1626 = vmatprep.subr.mxu0 %v658
    %1627 = vmatpush1.msra.mxu0 %v657
    %1628 = vmatprep.subr.mxu0 %v662
    %1629 = vmatpush1.msra.mxu0 %v661
    %1630 = vmatprep.subr.mxu0 %v666
    %1631 = vmatpush1.msra.mxu0 %v665
    %1632 = vmatprep.subr.mxu0 %v670
    %1633 = vmatpush1.msra.mxu0 %v669
    %1634 = vmatprep.subr.mxu0 %v674
    %1635 = vmatpush1.msra.mxu0 %v673
    %1636 = vmatprep.subr.mxu0 %v678
    %1637 = vmatpush1.msra.mxu0 %v677
    %1638 = vmatprep.subr.mxu0 %v682
    %1639 = vmatpush1.msra.mxu0 %v681
    %1640 = vmatprep.subr.mxu0 %v686
    %1641 = vmatpush1.msra.mxu0 %v685
    %1642 = vmatprep.subr.mxu0 %v690
    %1643 = vmatpush1.msra.mxu0 %v689
    %1644 = vmatprep.subr.mxu0 %v694
    %1645 = vmatpush1.msra.mxu0 %v693
    %1646 = vmatprep.subr.mxu0 %v698
    %1647 = vmatpush1.msra.mxu0 %v697
    %1648 = vmatprep.subr.mxu0 %v702
    %1649 = vmatpush1.msra.mxu0 %v701
    %1650 = vmatprep.subr.mxu0 %v706
    %1651 = vmatpush1.msra.mxu0 %v705
    %1652 = vmatprep.subr.mxu0 %v710
    %1653 = vmatpush1.msra.mxu0 %v709
    %1654 = vmatprep.subr.mxu0 %v714
    %1655 = vmatpush1.msra.mxu0 %v713
    %1656 = vmatprep.subr.mxu0 %v718
    %1657 = vmatpush1.msra.mxu0 %v717
    %1658 = vmatprep.subr.mxu0 0.0
    %1659 = vmatpush1.msra.mxu0 0.0
    %1660 = vmatprep.subr.mxu0 0.0
    %1661 = vmatpush1.msra.mxu0 0.0
    %1662 = vmatprep.subr.mxu0 0.0
    %1663 = vmatpush1.msra.mxu0 0.0
    %1664 = vmatprep.subr.mxu0 0.0
    %1665 = vmatpush1.msra.mxu0 0.0
    %1666 = vmatprep.subr.mxu0 0.0
    %1667 = vmatpush1.msra.mxu0 0.0
    %1668 = vmatprep.subr.mxu0 0.0
    %1669 = vmatpush1.msra.mxu0 0.0
    %1670 = vmatprep.subr.mxu0 0.0
    %1671 = vmatpush1.msra.mxu0 0.0
    %1672 = vmatprep.subr.mxu0 0.0
    %1673 = vmatpush1.msra.mxu0 0.0
    %1674 = vmatprep.subr.mxu0 0.0
    %1675 = vmatpush1.msra.mxu0 0.0
    %1676 = vmatprep.subr.mxu0 0.0
    %1677 = vmatpush1.msra.mxu0 0.0
    %1678 = vmatprep.subr.mxu0 0.0
    %1679 = vmatpush1.msra.mxu0 0.0
    %1680 = vmatprep.subr.mxu0 0.0
    %1681 = vmatpush1.msra.mxu0 0.0
    %1682 = vmatprep.subr.mxu0 0.0
    %1683 = vmatpush1.msra.mxu0 0.0
    %1684 = vmatprep.subr.mxu0 0.0
    %1685 = vmatpush1.msra.mxu0 0.0
    %1686 = vmatprep.subr.mxu0 0.0
    %1687 = vmatpush1.msra.mxu0 0.0
    %1688 = vmatprep.subr.mxu0 0.0
    %1689 = vmatpush1.msra.mxu0 0.0
    %1690 = vmatprep.mubr.f32.mxu0 0.0
    %1691 = vmatmul.mubr.f32.gmra.mrb[0].mxu0 %v1614
    %v1692 = vpop.f32.mrb[0].mxu0
    %v1693 = vadd.f32 0.0, %v1692
    %v1694 = vpop.f32.mrb[0].mxu0
    %v1695 = vadd.f32 0.0, %v1694
    %1696 = vdwg.mxu0
    %1697 = vmatprep.subr.mxu0 %v660
    %1698 = vmatpush1.msra.mxu0 %v659
    %1699 = vmatprep.subr.mxu0 %v664
    %1700 = vmatpush1.msra.mxu0 %v663
    %1701 = vmatprep.subr.mxu0 %v668
    %1702 = vmatpush1.msra.mxu0 %v667
    %1703 = vmatprep.subr.mxu0 %v672
    %1704 = vmatpush1.msra.mxu0 %v671
    %1705 = vmatprep.subr.mxu0 %v676
    %1706 = vmatpush1.msra.mxu0 %v675
    %1707 = vmatprep.subr.mxu0 %v680
    %1708 = vmatpush1.msra.mxu0 %v679
    %1709 = vmatprep.subr.mxu0 %v684
    %1710 = vmatpush1.msra.mxu0 %v683
    %1711 = vmatprep.subr.mxu0 %v688
    %1712 = vmatpush1.msra.mxu0 %v687
    %1713 = vmatprep.subr.mxu0 %v692
    %1714 = vmatpush1.msra.mxu0 %v691
    %1715 = vmatprep.subr.mxu0 %v696
    %1716 = vmatpush1.msra.mxu0 %v695
    %1717 = vmatprep.subr.mxu0 %v700
    %1718 = vmatpush1.msra.mxu0 %v699
    %1719 = vmatprep.subr.mxu0 %v704
    %1720 = vmatpush1.msra.mxu0 %v703
    %1721 = vmatprep.subr.mxu0 %v708
    %1722 = vmatpush1.msra.mxu0 %v707
    %1723 = vmatprep.subr.mxu0 %v712
    %1724 = vmatpush1.msra.mxu0 %v711
    %1725 = vmatprep.subr.mxu0 %v716
    %1726 = vmatpush1.msra.mxu0 %v715
    %1727 = vmatprep.subr.mxu0 %v720
    %1728 = vmatpush1.msra.mxu0 %v719
    %1729 = vmatprep.subr.mxu0 0.0
    %1730 = vmatpush1.msra.mxu0 0.0
    %1731 = vmatprep.subr.mxu0 0.0
    %1732 = vmatpush1.msra.mxu0 0.0
    %1733 = vmatprep.subr.mxu0 0.0
    %1734 = vmatpush1.msra.mxu0 0.0
    %1735 = vmatprep.subr.mxu0 0.0
    %1736 = vmatpush1.msra.mxu0 0.0
    %1737 = vmatprep.subr.mxu0 0.0
    %1738 = vmatpush1.msra.mxu0 0.0
    %1739 = vmatprep.subr.mxu0 0.0
    %1740 = vmatpush1.msra.mxu0 0.0
    %1741 = vmatprep.subr.mxu0 0.0
    %1742 = vmatpush1.msra.mxu0 0.0
    %1743 = vmatprep.subr.mxu0 0.0
    %1744 = vmatpush1.msra.mxu0 0.0
    %1745 = vmatprep.subr.mxu0 0.0
    %1746 = vmatpush1.msra.mxu0 0.0
    %1747 = vmatprep.subr.mxu0 0.0
    %1748 = vmatpush1.msra.mxu0 0.0
    %1749 = vmatprep.subr.mxu0 0.0
    %1750 = vmatpush1.msra.mxu0 0.0
    %1751 = vmatprep.subr.mxu0 0.0
    %1752 = vmatpush1.msra.mxu0 0.0
    %1753 = vmatprep.subr.mxu0 0.0
    %1754 = vmatpush1.msra.mxu0 0.0
    %1755 = vmatprep.subr.mxu0 0.0
    %1756 = vmatpush1.msra.mxu0 0.0
    %1757 = vmatprep.subr.mxu0 0.0
    %1758 = vmatpush1.msra.mxu0 0.0
    %1759 = vmatprep.subr.mxu0 0.0
    %1760 = vmatpush1.msra.mxu0 0.0
    %1761 = vmatprep.mubr.f32.mxu0 0.0
    %1762 = vmatmul.mubr.f32.gmra.mrb[0].mxu0 %v1614
    %v1763 = vpop.f32.mrb[0].mxu0
    %v1764 = vadd.f32 0.0, %v1763
    %v1765 = vpop.f32.mrb[0].mxu0
    %v1766 = vadd.f32 0.0, %v1765
    %1767 = vdwg.mxu0
    %v1768 = vadd.f32 %v1622, %v1693
    %v1769 = vadd.f32 %v1623, %v1695
    %v1770 = vadd.f32 %v1624, %v1764
    %v1771 = vadd.f32 %v1625, %v1766
    %v1772 = vxor.u32 %v1768, 2147483648
    %v1773 = vxor.u32 %v1769, 2147483648
    %v1774 = vxor.u32 %v1770, 2147483648
    %v1775 = vmul.f32 %v1772, 1.442695
    %v1776 = vpow.pop %v1775
    %v1777 = vmul.f32 %v1773, 1.442695
    %v1778 = vpow.pop %v1777
    %v1779 = vmul.f32 %v1774, 1.442695
    %v1780 = vpow.pop %v1779
    %v1781 = vadd.f32 %v1776, 1.0
    %v1782 = vadd.f32 %v1778, 1.0
    %v1783 = vadd.f32 %v1780, 1.0
    %v1784 = vrcp.pop %v1781
    %v1785 = vmul.f32 1.0, %v1784
    %v1786 = vrcp.pop %v1782
    %v1787 = vmul.f32 1.0, %v1786
    %v1788 = vrcp.pop %v1783
    %v1789 = vmul.f32 1.0, %v1788
    %v1790 = vtanh.pop %v1771
    %v1791 = vmul.f32 %v1787, %v1612
    %v1792 = vmul.f32 %v1785, %v1790
    %v1793 = vadd.f32 %v1791, %v1792
    %v1794 = vtanh.pop %v1793
    %v1795 = vmul.f32 %v1789, %v1794
    %vm1796 = vcmp.eq.s32.totalorder %v652, 5
    %v1797 = vsel %vm1796, 1, 0
    %1798 = vset.pattern.permute.xlu0 0
    %1799 = vperm.xlu0 %1798, %v1797
    %v1800 = vpop.permute.xlu0 %1799
    %vm1801 = vcmp.eq.s32.totalorder %v1800, 1
    %v1802 = vsel %vm1801, %v1795, %v1621
    %v1803 = vld [vmem:[#allocation3 + $0xc0] sm:$0xff]
    %v1804 = vld [vmem:[#allocation3 + $0xc8] sm:$0xff]
    %v1805 = vld [vmem:[#allocation3 + $0xd0] sm:$0xff]
    %v1806 = vld [vmem:[#allocation3 + $0xd8] sm:$0xff]
    %1807 = vmatprep.subr.mxu0 %v658
    %1808 = vmatpush1.msra.mxu0 %v657
    %1809 = vmatprep.subr.mxu0 %v662
    %1810 = vmatpush1.msra.mxu0 %v661
    %1811 = vmatprep.subr.mxu0 %v666
    %1812 = vmatpush1.msra.mxu0 %v665
    %1813 = vmatprep.subr.mxu0 %v670
    %1814 = vmatpush1.msra.mxu0 %v669
    %1815 = vmatprep.subr.mxu0 %v674
    %1816 = vmatpush1.msra.mxu0 %v673
    %1817 = vmatprep.subr.mxu0 %v678
    %1818 = vmatpush1.msra.mxu0 %v677
    %1819 = vmatprep.subr.mxu0 %v682
    %1820 = vmatpush1.msra.mxu0 %v681
    %1821 = vmatprep.subr.mxu0 %v686
    %1822 = vmatpush1.msra.mxu0 %v685
    %1823 = vmatprep.subr.mxu0 %v690
    %1824 = vmatpush1.msra.mxu0 %v689
    %1825 = vmatprep.subr.mxu0 %v694
    %1826 = vmatpush1.msra.mxu0 %v693
    %1827 = vmatprep.subr.mxu0 %v698
    %1828 = vmatpush1.msra.mxu0 %v697
    %1829 = vmatprep.subr.mxu0 %v702
    %1830 = vmatpush1.msra.mxu0 %v701
    %1831 = vmatprep.subr.mxu0 %v706
    %1832 = vmatpush1.msra.mxu0 %v705
    %1833 = vmatprep.subr.mxu0 %v710
    %1834 = vmatpush1.msra.mxu0 %v709
    %1835 = vmatprep.subr.mxu0 %v714
    %1836 = vmatpush1.msra.mxu0 %v713
    %1837 = vmatprep.subr.mxu0 %v718
    %1838 = vmatpush1.msra.mxu0 %v717
    %1839 = vmatprep.subr.mxu0 0.0
    %1840 = vmatpush1.msra.mxu0 0.0
    %1841 = vmatprep.subr.mxu0 0.0
    %1842 = vmatpush1.msra.mxu0 0.0
    %1843 = vmatprep.subr.mxu0 0.0
    %1844 = vmatpush1.msra.mxu0 0.0
    %1845 = vmatprep.subr.mxu0 0.0
    %1846 = vmatpush1.msra.mxu0 0.0
    %1847 = vmatprep.subr.mxu0 0.0
    %1848 = vmatpush1.msra.mxu0 0.0
    %1849 = vmatprep.subr.mxu0 0.0
    %1850 = vmatpush1.msra.mxu0 0.0
    %1851 = vmatprep.subr.mxu0 0.0
    %1852 = vmatpush1.msra.mxu0 0.0
    %1853 = vmatprep.subr.mxu0 0.0
    %1854 = vmatpush1.msra.mxu0 0.0
    %1855 = vmatprep.subr.mxu0 0.0
    %1856 = vmatpush1.msra.mxu0 0.0
    %1857 = vmatprep.subr.mxu0 0.0
    %1858 = vmatpush1.msra.mxu0 0.0
    %1859 = vmatprep.subr.mxu0 0.0
    %1860 = vmatpush1.msra.mxu0 0.0
    %1861 = vmatprep.subr.mxu0 0.0
    %1862 = vmatpush1.msra.mxu0 0.0
    %1863 = vmatprep.subr.mxu0 0.0
    %1864 = vmatpush1.msra.mxu0 0.0
    %1865 = vmatprep.subr.mxu0 0.0
    %1866 = vmatpush1.msra.mxu0 0.0
    %1867 = vmatprep.subr.mxu0 0.0
    %1868 = vmatpush1.msra.mxu0 0.0
    %1869 = vmatprep.subr.mxu0 0.0
    %1870 = vmatpush1.msra.mxu0 0.0
    %1871 = vmatprep.mubr.f32.mxu0 0.0
    %1872 = vmatmul.mubr.f32.gmra.mrb[0].mxu0 %v1795
    %v1873 = vpop.f32.mrb[0].mxu0
    %v1874 = vadd.f32 0.0, %v1873
    %v1875 = vpop.f32.mrb[0].mxu0
    %v1876 = vadd.f32 0.0, %v1875
    %1877 = vdwg.mxu0
    %1878 = vmatprep.subr.mxu0 %v660
    %1879 = vmatpush1.msra.mxu0 %v659
    %1880 = vmatprep.subr.mxu0 %v664
    %1881 = vmatpush1.msra.mxu0 %v663
    %1882 = vmatprep.subr.mxu0 %v668
    %1883 = vmatpush1.msra.mxu0 %v667
    %1884 = vmatprep.subr.mxu0 %v672
    %1885 = vmatpush1.msra.mxu0 %v671
    %1886 = vmatprep.subr.mxu0 %v676
    %1887 = vmatpush1.msra.mxu0 %v675
    %1888 = vmatprep.subr.mxu0 %v680
    %1889 = vmatpush1.msra.mxu0 %v679
    %1890 = vmatprep.subr.mxu0 %v684
    %1891 = vmatpush1.msra.mxu0 %v683
    %1892 = vmatprep.subr.mxu0 %v688
    %1893 = vmatpush1.msra.mxu0 %v687
    %1894 = vmatprep.subr.mxu0 %v692
    %1895 = vmatpush1.msra.mxu0 %v691
    %1896 = vmatprep.subr.mxu0 %v696
    %1897 = vmatpush1.msra.mxu0 %v695
    %1898 = vmatprep.subr.mxu0 %v700
    %1899 = vmatpush1.msra.mxu0 %v699
    %1900 = vmatprep.subr.mxu0 %v704
    %1901 = vmatpush1.msra.mxu0 %v703
    %1902 = vmatprep.subr.mxu0 %v708
    %1903 = vmatpush1.msra.mxu0 %v707
    %1904 = vmatprep.subr.mxu0 %v712
    %1905 = vmatpush1.msra.mxu0 %v711
    %1906 = vmatprep.subr.mxu0 %v716
    %1907 = vmatpush1.msra.mxu0 %v715
    %1908 = vmatprep.subr.mxu0 %v720
    %1909 = vmatpush1.msra.mxu0 %v719
    %1910 = vmatprep.subr.mxu0 0.0
    %1911 = vmatpush1.msra.mxu0 0.0
    %1912 = vmatprep.subr.mxu0 0.0
    %1913 = vmatpush1.msra.mxu0 0.0
    %1914 = vmatprep.subr.mxu0 0.0
    %1915 = vmatpush1.msra.mxu0 0.0
    %1916 = vmatprep.subr.mxu0 0.0
    %1917 = vmatpush1.msra.mxu0 0.0
    %1918 = vmatprep.subr.mxu0 0.0
    %1919 = vmatpush1.msra.mxu0 0.0
    %1920 = vmatprep.subr.mxu0 0.0
    %1921 = vmatpush1.msra.mxu0 0.0
    %1922 = vmatprep.subr.mxu0 0.0
    %1923 = vmatpush1.msra.mxu0 0.0
    %1924 = vmatprep.subr.mxu0 0.0
    %1925 = vmatpush1.msra.mxu0 0.0
    %1926 = vmatprep.subr.mxu0 0.0
    %1927 = vmatpush1.msra.mxu0 0.0
    %1928 = vmatprep.subr.mxu0 0.0
    %1929 = vmatpush1.msra.mxu0 0.0
    %1930 = vmatprep.subr.mxu0 0.0
    %1931 = vmatpush1.msra.mxu0 0.0
    %1932 = vmatprep.subr.mxu0 0.0
    %1933 = vmatpush1.msra.mxu0 0.0
    %1934 = vmatprep.subr.mxu0 0.0
    %1935 = vmatpush1.msra.mxu0 0.0
    %1936 = vmatprep.subr.mxu0 0.0
    %1937 = vmatpush1.msra.mxu0 0.0
    %1938 = vmatprep.subr.mxu0 0.0
    %1939 = vmatpush1.msra.mxu0 0.0
    %1940 = vmatprep.subr.mxu0 0.0
    %1941 = vmatpush1.msra.mxu0 0.0
    %1942 = vmatprep.mubr.f32.mxu0 0.0
    %1943 = vmatmul.mubr.f32.gmra.mrb[0].mxu0 %v1795
    %v1944 = vpop.f32.mrb[0].mxu0
    %v1945 = vadd.f32 0.0, %v1944
    %v1946 = vpop.f32.mrb[0].mxu0
    %v1947 = vadd.f32 0.0, %v1946
    %1948 = vdwg.mxu0
    %v1949 = vadd.f32 %v1803, %v1874
    %v1950 = vadd.f32 %v1804, %v1876
    %v1951 = vadd.f32 %v1805, %v1945
    %v1952 = vadd.f32 %v1806, %v1947
    %v1953 = vxor.u32 %v1949, 2147483648
    %v1954 = vxor.u32 %v1950, 2147483648
    %v1955 = vxor.u32 %v1951, 2147483648
    %v1956 = vmul.f32 %v1953, 1.442695
    %v1957 = vpow.pop %v1956
    %v1958 = vmul.f32 %v1954, 1.442695
    %v1959 = vpow.pop %v1958
    %v1960 = vmul.f32 %v1955, 1.442695
    %v1961 = vpow.pop %v1960
    %v1962 = vadd.f32 %v1957, 1.0
    %v1963 = vadd.f32 %v1959, 1.0
    %v1964 = vadd.f32 %v1961, 1.0
    %v1965 = vrcp.pop %v1962
    %v1966 = vmul.f32 1.0, %v1965
    %v1967 = vrcp.pop %v1963
    %v1968 = vmul.f32 1.0, %v1967
    %v1969 = vrcp.pop %v1964
    %v1970 = vmul.f32 1.0, %v1969
    %v1971 = vtanh.pop %v1952
    %v1972 = vmul.f32 %v1968, %v1793
    %v1973 = vmul.f32 %v1966, %v1971
    %v1974 = vadd.f32 %v1972, %v1973
    %v1975 = vtanh.pop %v1974
    %v1976 = vmul.f32 %v1970, %v1975
    %vm1977 = vcmp.eq.s32.totalorder %v652, 6
    %v1978 = vsel %vm1977, 1, 0
    %1979 = vset.pattern.permute.xlu0 0
    %1980 = vperm.xlu0 %1979, %v1978
    %v1981 = vpop.permute.xlu0 %1980
    %vm1982 = vcmp.eq.s32.totalorder %v1981, 1
    %v1983 = vsel %vm1982, %v1976, %v1802
    %v1984 = vld [vmem:[#allocation3 + $0xe0] sm:$0xff]
    %v1985 = vld [vmem:[#allocation3 + $0xe8] sm:$0xff]
    %v1986 = vld [vmem:[#allocation3 + $0xf0] sm:$0xff]
    %v1987 = vld [vmem:[#allocation3 + $0xf8] sm:$0xff]
    %1988 = vmatprep.subr.mxu0 %v658
    %1989 = vmatpush1.msra.mxu0 %v657
    %1990 = vmatprep.subr.mxu0 %v662
    %1991 = vmatpush1.msra.mxu0 %v661
    %1992 = vmatprep.subr.mxu0 %v666
    %1993 = vmatpush1.msra.mxu0 %v665
    %1994 = vmatprep.subr.mxu0 %v670
    %1995 = vmatpush1.msra.mxu0 %v669
    %1996 = vmatprep.subr.mxu0 %v674
    %1997 = vmatpush1.msra.mxu0 %v673
    %1998 = vmatprep.subr.mxu0 %v678
    %1999 = vmatpush1.msra.mxu0 %v677
    %2000 = vmatprep.subr.mxu0 %v682
    %2001 = vmatpush1.msra.mxu0 %v681
    %2002 = vmatprep.subr.mxu0 %v686
    %2003 = vmatpush1.msra.mxu0 %v685
    %2004 = vmatprep.subr.mxu0 %v690
    %2005 = vmatpush1.msra.mxu0 %v689
    %2006 = vmatprep.subr.mxu0 %v694
    %2007 = vmatpush1.msra.mxu0 %v693
    %2008 = vmatprep.subr.mxu0 %v698
    %2009 = vmatpush1.msra.mxu0 %v697
    %2010 = vmatprep.subr.mxu0 %v702
    %2011 = vmatpush1.msra.mxu0 %v701
    %2012 = vmatprep.subr.mxu0 %v706
    %2013 = vmatpush1.msra.mxu0 %v705
    %2014 = vmatprep.subr.mxu0 %v710
    %2015 = vmatpush1.msra.mxu0 %v709
    %2016 = vmatprep.subr.mxu0 %v714
    %2017 = vmatpush1.msra.mxu0 %v713
    %2018 = vmatprep.subr.mxu0 %v718
    %2019 = vmatpush1.msra.mxu0 %v717
    %2020 = vmatprep.subr.mxu0 0.0
    %2021 = vmatpush1.msra.mxu0 0.0
    %2022 = vmatprep.subr.mxu0 0.0
    %2023 = vmatpush1.msra.mxu0 0.0
    %2024 = vmatprep.subr.mxu0 0.0
    %2025 = vmatpush1.msra.mxu0 0.0
    %2026 = vmatprep.subr.mxu0 0.0
    %2027 = vmatpush1.msra.mxu0 0.0
    %2028 = vmatprep.subr.mxu0 0.0
    %2029 = vmatpush1.msra.mxu0 0.0
    %2030 = vmatprep.subr.mxu0 0.0
    %2031 = vmatpush1.msra.mxu0 0.0
    %2032 = vmatprep.subr.mxu0 0.0
    %2033 = vmatpush1.msra.mxu0 0.0
    %2034 = vmatprep.subr.mxu0 0.0
    %2035 = vmatpush1.msra.mxu0 0.0
    %2036 = vmatprep.subr.mxu0 0.0
    %2037 = vmatpush1.msra.mxu0 0.0
    %2038 = vmatprep.subr.mxu0 0.0
    %2039 = vmatpush1.msra.mxu0 0.0
    %2040 = vmatprep.subr.mxu0 0.0
    %2041 = vmatpush1.msra.mxu0 0.0
    %2042 = vmatprep.subr.mxu0 0.0
    %2043 = vmatpush1.msra.mxu0 0.0
    %2044 = vmatprep.subr.mxu0 0.0
    %2045 = vmatpush1.msra.mxu0 0.0
    %2046 = vmatprep.subr.mxu0 0.0
    %2047 = vmatpush1.msra.mxu0 0.0
    %2048 = vmatprep.subr.mxu0 0.0
    %2049 = vmatpush1.msra.mxu0 0.0
    %2050 = vmatprep.subr.mxu0 0.0
    %2051 = vmatpush1.msra.mxu0 0.0
    %2052 = vmatprep.mubr.f32.mxu0 0.0
    %2053 = vmatmul.mubr.f32.gmra.mrb[0].mxu0 %v1976
    %v2054 = vpop.f32.mrb[0].mxu0
    %v2055 = vadd.f32 0.0, %v2054
    %v2056 = vpop.f32.mrb[0].mxu0
    %v2057 = vadd.f32 0.0, %v2056
    %2058 = vdwg.mxu0
    %2059 = vmatprep.subr.mxu0 %v660
    %2060 = vmatpush1.msra.mxu0 %v659
    %2061 = vmatprep.subr.mxu0 %v664
    %2062 = vmatpush1.msra.mxu0 %v663
    %2063 = vmatprep.subr.mxu0 %v668
    %2064 = vmatpush1.msra.mxu0 %v667
    %2065 = vmatprep.subr.mxu0 %v672
    %2066 = vmatpush1.msra.mxu0 %v671
    %2067 = vmatprep.subr.mxu0 %v676
    %2068 = vmatpush1.msra.mxu0 %v675
    %2069 = vmatprep.subr.mxu0 %v680
    %2070 = vmatpush1.msra.mxu0 %v679
    %2071 = vmatprep.subr.mxu0 %v684
    %2072 = vmatpush1.msra.mxu0 %v683
    %2073 = vmatprep.subr.mxu0 %v688
    %2074 = vmatpush1.msra.mxu0 %v687
    %2075 = vmatprep.subr.mxu0 %v692
    %2076 = vmatpush1.msra.mxu0 %v691
    %2077 = vmatprep.subr.mxu0 %v696
    %2078 = vmatpush1.msra.mxu0 %v695
    %2079 = vmatprep.subr.mxu0 %v700
    %2080 = vmatpush1.msra.mxu0 %v699
    %2081 = vmatprep.subr.mxu0 %v704
    %2082 = vmatpush1.msra.mxu0 %v703
    %2083 = vmatprep.subr.mxu0 %v708
    %2084 = vmatpush1.msra.mxu0 %v707
    %2085 = vmatprep.subr.mxu0 %v712
    %2086 = vmatpush1.msra.mxu0 %v711
    %2087 = vmatprep.subr.mxu0 %v716
    %2088 = vmatpush1.msra.mxu0 %v715
    %2089 = vmatprep.subr.mxu0 %v720
    %2090 = vmatpush1.msra.mxu0 %v719
    %2091 = vmatprep.subr.mxu0 0.0
    %2092 = vmatpush1.msra.mxu0 0.0
    %2093 = vmatprep.subr.mxu0 0.0
    %2094 = vmatpush1.msra.mxu0 0.0
    %2095 = vmatprep.subr.mxu0 0.0
    %2096 = vmatpush1.msra.mxu0 0.0
    %2097 = vmatprep.subr.mxu0 0.0
    %2098 = vmatpush1.msra.mxu0 0.0
    %2099 = vmatprep.subr.mxu0 0.0
    %2100 = vmatpush1.msra.mxu0 0.0
    %2101 = vmatprep.subr.mxu0 0.0
    %2102 = vmatpush1.msra.mxu0 0.0
    %2103 = vmatprep.subr.mxu0 0.0
    %2104 = vmatpush1.msra.mxu0 0.0
    %2105 = vmatprep.subr.mxu0 0.0
    %2106 = vmatpush1.msra.mxu0 0.0
    %2107 = vmatprep.subr.mxu0 0.0
    %2108 = vmatpush1.msra.mxu0 0.0
    %2109 = vmatprep.subr.mxu0 0.0
    %2110 = vmatpush1.msra.mxu0 0.0
    %2111 = vmatprep.subr.mxu0 0.0
    %2112 = vmatpush1.msra.mxu0 0.0
    %2113 = vmatprep.subr.mxu0 0.0
    %2114 = vmatpush1.msra.mxu0 0.0
    %2115 = vmatprep.subr.mxu0 0.0
    %2116 = vmatpush1.msra.mxu0 0.0
    %2117 = vmatprep.subr.mxu0 0.0
    %2118 = vmatpush1.msra.mxu0 0.0
    %2119 = vmatprep.subr.mxu0 0.0
    %2120 = vmatpush1.msra.mxu0 0.0
    %2121 = vmatprep.subr.mxu0 0.0
    %2122 = vmatpush1.msra.mxu0 0.0
    %2123 = vmatprep.mubr.f32.mxu0 0.0
    %2124 = vmatmul.mubr.f32.gmra.mrb[0].mxu0 %v1976
    %v2125 = vpop.f32.mrb[0].mxu0
    %v2126 = vadd.f32 0.0, %v2125
    %v2127 = vpop.f32.mrb[0].mxu0
    %v2128 = vadd.f32 0.0, %v2127
    %2129 = vdwg.mxu0
    %v2130 = vadd.f32 %v1984, %v2055
    %v2131 = vadd.f32 %v1985, %v2057
    %v2132 = vadd.f32 %v1986, %v2126
    %v2133 = vadd.f32 %v1987, %v2128
    %v2134 = vxor.u32 %v2130, 2147483648
    %v2135 = vxor.u32 %v2131, 2147483648
    %v2136 = vxor.u32 %v2132, 2147483648
    %v2137 = vmul.f32 %v2134, 1.442695
    %v2138 = vpow.pop %v2137
    %v2139 = vmul.f32 %v2135, 1.442695
    %v2140 = vpow.pop %v2139
    %v2141 = vmul.f32 %v2136, 1.442695
    %v2142 = vpow.pop %v2141
    %v2143 = vadd.f32 %v2138, 1.0
    %v2144 = vadd.f32 %v2140, 1.0
    %v2145 = vadd.f32 %v2142, 1.0
    %v2146 = vrcp.pop %v2143
    %v2147 = vmul.f32 1.0, %v2146
    %v2148 = vrcp.pop %v2144
    %v2149 = vmul.f32 1.0, %v2148
    %v2150 = vrcp.pop %v2145
    %v2151 = vmul.f32 1.0, %v2150
    %v2152 = vtanh.pop %v2133
    %v2153 = vmul.f32 %v2149, %v1974
    %v2154 = vmul.f32 %v2147, %v2152
    %v2155 = vadd.f32 %v2153, %v2154
    %v2156 = vtanh.pop %v2155
    %v2157 = vmul.f32 %v2151, %v2156
    %vm2158 = vcmp.eq.s32.totalorder %v652, 7
    %v2159 = vsel %vm2158, 1, 0
    %2160 = vset.pattern.permute.xlu0 0
    %2161 = vperm.xlu0 %2160, %v2159
    %v2162 = vpop.permute.xlu0 %2161
    %vm2163 = vcmp.eq.s32.totalorder %v2162, 1
    %v2164 = vsel %vm2163, %v2157, %v1983
    %v2165 = vld [vmem:[%s6] sm:$0x1]
    %v2167 = vlaneseq
    %v2168 = vshrl.u32 %v2167, 7
    %v2169 = vsub.s32 0, %v2168
    %v2170 = vrot.slane %v2165, %v2169
    %v2172 = vmul.f32 %v2164, %v2170
    %2173 = vadd.xlane.f32.xlu0 %v2172
    %v2174 = vpop.xlane.xlu0 %2173
    %v2175 = vld [vmem:[#allocation4] sm:$0x1]
    %v2177 = vlaneseq
    %v2178 = vshrl.u32 %v2177, 7
    %v2179 = vsub.s32 0, %v2178
    %v2180 = vrot.slane %v2175, %v2179
    %v2182 = vadd.f32 %v2174, %v2180
    %vm2183 = vcmask 7168
    %2184 = vst.msk [vmem:[%s8] sm:$0xff] %vm2183, %v2182
    // Predicated region
    $region38: #{spam_classifier_forward.1} parent=1 // pred_check
      _
    $region39: #{spam_classifier_forward.1} parent=1 // pred_check_branch
      %2186 = sbr.rel (0) target = $region41
    $region40: #{spam_classifier_forward.1} parent=1 // pred_region
      _
    $region41: #{spam_classifier_forward.1} parent=1 // pred_fallthru
      _
    // Predicated region
    $region42: #{spam_classifier_forward.1} parent=1 // pred_check
      _
    $region43: #{spam_classifier_forward.1} parent=1 // pred_check_branch
      %2188 = sbr.rel (0) target = $region45
    $region44: #{spam_classifier_forward.1} parent=1 // pred_region
      _
    $region45: #{spam_classifier_forward.1} parent=1 // pred_fallthru
      _
    %2189 = vsyncpa [#allocation6], 1

</llo_original>
